<compile_context>
chip_gen: v5e
topology: v5e:2x2
jax: 0.10.0
libtpu: 0.0.40
codegen_flags: <defaults>
</compile_context>

<pallas_src>
import numpy as np
import jax
import jax.numpy as jnp
from jax import lax
from jax.experimental import pallas as pl
from jax.experimental.pallas import tpu as pltpu

NUM_GROUPS = 4
EPS = 1e-5
KSIZE = 4      # conv kernel size
STRIDE = 2
PAD = 1


# ----------------------------- Pallas kernel ------------------------------- #

def _gn_prelu(y, gsp_ref, gamma_ref, beta_ref, alpha):
    """GroupNorm(4) + affine + PReLU on a (P, C) tile.  Stats in f32.

    gsp_ref: (C, C) block-diagonal group matrix pre-scaled by 1/(P*cg).
    """
    colsum = jnp.sum(y, axis=0, keepdims=True)                              # (1, C)
    mean = jnp.dot(colsum, gsp_ref[...], preferred_element_type=jnp.float32)
    diff = y - mean
    colss = jnp.sum(diff * diff, axis=0, keepdims=True)                     # (1, C)
    var = jnp.dot(colss, gsp_ref[...], preferred_element_type=jnp.float32)
    yn = diff * lax.rsqrt(var + EPS)
    yn = yn * gamma_ref[...] + beta_ref[...]
    return jnp.where(yn >= 0.0, yn, alpha * yn)                             # PReLU


def _patchgan_kernel(patches_ref,
                     w1_ref, b1_ref, gm1_ref, bt1_ref, gs1_ref,
                     sel2_ref, w2_ref, b2_ref, gm2_ref, bt2_ref, gs2_ref,
                     sel3_ref, w3_ref, b3_ref, gm3_ref, bt3_ref, gs3_ref,
                     sel4_ref, w4_ref, b4_ref, gm4_ref, bt4_ref, gs4_ref,
                     alphas_ref, wf_ref, bf_ref, o_ref):
    """Whole network for one sample per grid step.

    patches_ref : (1, P1, 16*Cin)  pre-im2col'd layer-1 patches
    w1_ref      : (16*Cin, 32)     layer-1 weights, im2col layout
    sel*_ref    : (16*P, R)        tap-major 0/1 gather matrices (layers 2-4)
    w*_ref      : (16, Cin, Cout)  per-tap weights (layers 2-4)
    b*/gm*/bt*  : (1, Cout)        bias / gamma / beta
    gs*_ref     : (Cout, Cout)     scaled group-spread matrices
    alphas_ref  : (4,) f32 in SMEM (PReLU slopes)
    wf_ref      : (256, 1); bf_ref: (1, 1)
    o_ref       : (1, Pf, 1)
    """
    # ---- layer 1: patches already im2col'd -> one lane-dense MXU matmul ------
    y = jnp.dot(patches_ref[0], w1_ref[...], preferred_element_type=jnp.float32)
    y = y + b1_ref[...]
    act = _gn_prelu(y, gs1_ref, gm1_ref, bt1_ref, alphas_ref[0])            # (P1, 32)

    # ---- layers 2-4: one gather matmul + 16 tap-weight matmuls per layer -----
    layers = ((sel2_ref, w2_ref, b2_ref, gm2_ref, bt2_ref, gs2_ref),
              (sel3_ref, w3_ref, b3_ref, gm3_ref, bt3_ref, gs3_ref),
              (sel4_ref, w4_ref, b4_ref, gm4_ref, bt4_ref, gs4_ref))
    for l, (sel_ref, w_ref, b_ref, gm_ref, bt_ref, gs_ref) in enumerate(layers):
        ntap, _, cout = w_ref.shape
        P = sel_ref.shape[0] // ntap
        # all 16 tap gathers folded into ONE matmul: (16*P, R) @ (R, Cin)
        g = jnp.dot(sel_ref[...], act, preferred_element_type=jnp.float32)  # (16*P, Cin)
        y = jnp.zeros((P, cout), jnp.float32)
        for t in range(ntap):                                               # static unroll
            y = y + jnp.dot(g[t * P:(t + 1) * P, :], w_ref[t],
                            preferred_element_type=jnp.float32)
        y = y + b_ref[...]
        act = _gn_prelu(y, gs_ref, gm_ref, bt_ref, alphas_ref[l + 1])

    # ---- fused final 1x1 conv epilogue ---------------------------------------
    logit = jnp.dot(act, wf_ref[...], preferred_element_type=jnp.float32)
    o_ref[0] = (logit + bf_ref[...]).astype(o_ref.dtype)


# ----------------------- host-side constant builders ------------------------ #

def _sel_matrix(H, W):
    """Tap-major stacked 0/1 gather matrix (16*P, R) for a k4 s2 p1 conv."""
    Ho, Wo = H // STRIDE, W // STRIDE
    P, R = Ho * Wo, H * W
    sel = np.zeros((KSIZE * KSIZE * P, R), np.float32)
    for t in range(KSIZE * KSIZE):
        i, j = t // KSIZE, t % KSIZE
        for p in range(P):
            ho, wo = p // Wo, p % Wo
            hi, wi = STRIDE * ho + i - PAD, STRIDE * wo + j - PAD
            if 0 <= hi < H and 0 <= wi < W:
                sel[t * P + p, hi * W + wi] = 1.0
    return jnp.asarray(sel)


def _group_spread(C, P):
    """(C, C) block-diagonal group matrix pre-scaled by 1/(P*cg)."""
    cg = C // NUM_GROUPS
    G = np.zeros((C, C), np.float32)
    for c in range(C):
        g0 = (c // cg) * cg
        G[g0:g0 + cg, c] = 1.0 / float(P * cg)
    return jnp.asarray(G)


def _im2col_layer1(x):
    """XLA-side im2col for layer 1: (N,H,W,C) -> (N, Ho*Wo, 16*C), tap-major features."""
    N, H, W, C = x.shape
    Ho, Wo = H // STRIDE, W // STRIDE
    xp = jnp.pad(x, ((0, 0), (PAD, PAD), (PAD, PAD), (0, 0)))
    taps = []
    for i in range(KSIZE):
        for j in range(KSIZE):
            slab = xp[:, i:i + STRIDE * (Ho - 1) + 1:STRIDE,
                      j:j + STRIDE * (Wo - 1) + 1:STRIDE, :]        # (N, Ho, Wo, C)
            taps.append(slab.reshape(N, Ho * Wo, C))
    return jnp.concatenate(taps, axis=-1)                           # (N, P1, 16*C)


def _const_spec(arr):
    """Full-array VMEM block with a constant index map (fetched once, held resident)."""
    nd = arr.ndim
    return pl.BlockSpec(tuple(arr.shape), lambda n, _nd=nd: (0,) * _nd)


# ------------------------------- wrapper ----------------------------------- #

def patchgan_forward(params, x_nchw, y_nchw):
    x = jnp.concatenate([x_nchw, y_nchw], axis=1)        # torch.cat([x, y], axis=1)
    x = jnp.transpose(x, (0, 2, 3, 1))                   # NCHW -> NHWC
    N, H, W, Cin = x.shape
    blocks = params["blocks"]

    # layer-1 im2col done once in XLA: lane-dense (N, P1, 16*Cin) patches
    patches = _im2col_layer1(x)
    _, P1, F1 = patches.shape

    flat_inputs = [patches]
    in_specs = [pl.BlockSpec((1, P1, F1), lambda n: (n, 0, 0))]

    h, w = H, W
    for l, (wt, b, gamma, beta, _alpha) in enumerate(blocks):
        kh, kw, cin, cout = wt.shape
        ho, wo = h // STRIDE, w // STRIDE
        pout = ho * wo
        if l == 0:
            layer_consts = [wt.reshape(kh * kw * cin, cout)]        # im2col weight layout
        else:
            layer_consts = [_sel_matrix(h, w),                      # (16*P, R)
                            wt.reshape(kh * kw, cin, cout)]         # per-tap weights
        layer_consts += [b.reshape(1, cout), gamma.reshape(1, cout),
                         beta.reshape(1, cout), _group_spread(cout, pout)]
        flat_inputs += layer_consts
        in_specs += [_const_spec(a) for a in layer_consts]
        h, w = ho, wo

    alphas = jnp.stack([jnp.reshape(blk[4], ()) for blk in blocks]).astype(jnp.float32)
    final_b = params["final_b"].reshape(1, 1)
    flat_inputs += [alphas, params["final_w"], final_b]
    in_specs += [pl.BlockSpec(memory_space=pltpu.MemorySpace.SMEM),  # true scalars -> SMEM
                 _const_spec(params["final_w"]),
                 _const_spec(final_b)]

    pf = h * w                        # spatial size after the 4 stride-2 blocks (1 here)
    out = pl.pallas_call(
        _patchgan_kernel,
        out_shape=jax.ShapeDtypeStruct((N, pf, 1), jnp.float32),
        grid_spec=pltpu.PrefetchScalarGridSpec(
            num_scalar_prefetch=0,
            grid=(N,),
            in_specs=in_specs,
            out_specs=pl.BlockSpec((1, pf, 1), lambda n: (n, 0, 0)),
        ),
        compiler_params=pltpu.CompilerParams(
            dimension_semantics=("parallel",)),          # batch across v7x's 2 TCs
    )(*flat_inputs)
    return jnp.transpose(out.reshape(N, h, w, 1), (0, 3, 1, 2))     # -> NCHW


# --------------------------- pure-JAX reference ----------------------------- #

def _ref_block(x, w, b, gamma, beta, alpha):
    y = lax.conv_general_dilated(
        x, w, window_strides=(2, 2), padding=((1, 1), (1, 1)),
        dimension_numbers=("NHWC", "HWIO", "NHWC"))
    y = y + b
    N, H, W, C = y.shape
    cg = C // NUM_GROUPS
    yg = y.reshape(N, H, W, NUM_GROUPS, cg)
    mean = jnp.mean(yg, axis=(1, 2, 4), keepdims=True)
    var = jnp.mean((yg - mean) ** 2, axis=(1, 2, 4), keepdims=True)
    yn = ((yg - mean) / jnp.sqrt(var + EPS)).reshape(N, H, W, C)
    yn = yn * gamma + beta
    return jnp.where(yn >= 0, yn, alpha * yn)


def reference_forward(params, x_nchw, y_nchw):
    x = jnp.concatenate([x_nchw, y_nchw], axis=1)
    x = jnp.transpose(x, (0, 2, 3, 1))
    for (w, b, gamma, beta, alpha) in params["blocks"]:
        x = _ref_block(x, w, b, gamma, beta, alpha)
    x = jnp.tensordot(x, params["final_w"], axes=[[3], [0]]) + params["final_b"]
    return jnp.transpose(x, (0, 3, 1, 2))


# ------------------------------ param init ---------------------------------- #

def init_params(key, in_size):
    sizes = [(in_size, 32), (32, 64), (64, 128), (128, 256)]
    blocks = []
    for cin, cout in sizes:
        key, kw, kb, kg, kbe = jax.random.split(key, 5)
        fan_in = cin * 16
        w = jax.random.normal(kw, (4, 4, cin, cout), jnp.float32) / jnp.sqrt(fan_in)
        b = 0.01 * jax.random.normal(kb, (cout,), jnp.float32)
        gamma = 1.0 + 0.1 * jax.random.normal(kg, (cout,), jnp.float32)
        beta = 0.1 * jax.random.normal(kbe, (cout,), jnp.float32)
        alpha = jnp.float32(0.25)      # nn.PReLU() default init
        blocks.append((w, b, gamma, beta, alpha))
    key, kw, kb = jax.random.split(key, 3)
    final_w = jax.random.normal(kw, (256, 1), jnp.float32) / 16.0
    final_b = 0.01 * jax.random.normal(kb, (1,), jnp.float32)
    return {"blocks": blocks, "final_w": final_w, "final_b": final_b}


# ---------------------------------- main ------------------------------------ #

if __name__ == "__main__":
    key = jax.random.PRNGKey(0)
    kx, ky, kp = jax.random.split(key, 3)

    in_size = 4                         # channels AFTER torch.cat([x, y], axis=1)
    N, H, W = 2, 16, 16
    x = jax.random.normal(kx, (N, in_size // 2, H, W), jnp.float32)   # NCHW
    y = jax.random.normal(ky, (N, in_size // 2, H, W), jnp.float32)   # NCHW
    params = init_params(kp, in_size)

    fwd = jax.jit(patchgan_forward)
    out = jax.block_until_ready(fwd(params, x, y))
    assert out.shape == (N, 1, 1, 1), out.shape

    ref = jax.block_until_ready(reference_forward(params, x, y))
    np.testing.assert_allclose(np.asarray(out), np.asarray(ref),
                               rtol=1e-4, atol=1e-4)

    print("KERNEL_OK")
</pallas_src>

<mosaic_0001>
module attributes {stable_mosaic.version = 11 : i64} {
  func.func @_patchgan_kernel(%arg0: i32, %arg1: memref<1x64x64xf32, #tpu.memory_space<vmem>>, %arg2: memref<64x32xf32, #tpu.memory_space<vmem>>, %arg3: memref<1x32xf32, #tpu.memory_space<vmem>>, %arg4: memref<1x32xf32, #tpu.memory_space<vmem>>, %arg5: memref<1x32xf32, #tpu.memory_space<vmem>>, %arg6: memref<32x32xf32, #tpu.memory_space<vmem>>, %arg7: memref<256x64xf32, #tpu.memory_space<vmem>>, %arg8: memref<16x32x64xf32, #tpu.memory_space<vmem>>, %arg9: memref<1x64xf32, #tpu.memory_space<vmem>>, %arg10: memref<1x64xf32, #tpu.memory_space<vmem>>, %arg11: memref<1x64xf32, #tpu.memory_space<vmem>>, %arg12: memref<64x64xf32, #tpu.memory_space<vmem>>, %arg13: memref<64x16xf32, #tpu.memory_space<vmem>>, %arg14: memref<16x64x128xf32, #tpu.memory_space<vmem>>, %arg15: memref<1x128xf32, #tpu.memory_space<vmem>>, %arg16: memref<1x128xf32, #tpu.memory_space<vmem>>, %arg17: memref<1x128xf32, #tpu.memory_space<vmem>>, %arg18: memref<128x128xf32, #tpu.memory_space<vmem>>, %arg19: memref<16x4xf32, #tpu.memory_space<vmem>>, %arg20: memref<16x128x256xf32, #tpu.memory_space<vmem>>, %arg21: memref<1x256xf32, #tpu.memory_space<vmem>>, %arg22: memref<1x256xf32, #tpu.memory_space<vmem>>, %arg23: memref<1x256xf32, #tpu.memory_space<vmem>>, %arg24: memref<256x256xf32, #tpu.memory_space<vmem>>, %arg25: memref<4xf32, #tpu.memory_space<smem>>, %arg26: memref<256x1xf32, #tpu.memory_space<vmem>>, %arg27: memref<1x1xf32, #tpu.memory_space<vmem>>, %arg28: memref<1x1x1xf32, #tpu.memory_space<vmem>>) attributes {dimension_semantics = [#tpu.dimension_semantics<parallel>], iteration_bounds = array<i64: 2>, scalar_prefetch = 0 : i64, scratch_operands = 0 : i64, tpu.core_type = #tpu.core_type<tc>, window_params = [{transform_indices = @transform_0, window_bounds = array<i64: 1, 64, 64>}, {pipeline_mode = #tpu.pipeline_mode<synchronous>, transform_indices = @transform_1, window_bounds = array<i64: 64, 32>}, {pipeline_mode = #tpu.pipeline_mode<synchronous>, transform_indices = @transform_2, window_bounds = array<i64: 1, 32>}, {pipeline_mode = #tpu.pipeline_mode<synchronous>, transform_indices = @transform_3, window_bounds = array<i64: 1, 32>}, {pipeline_mode = #tpu.pipeline_mode<synchronous>, transform_indices = @transform_4, window_bounds = array<i64: 1, 32>}, {pipeline_mode = #tpu.pipeline_mode<synchronous>, transform_indices = @transform_5, window_bounds = array<i64: 32, 32>}, {pipeline_mode = #tpu.pipeline_mode<synchronous>, transform_indices = @transform_6, window_bounds = array<i64: 256, 64>}, {pipeline_mode = #tpu.pipeline_mode<synchronous>, transform_indices = @transform_7, window_bounds = array<i64: 16, 32, 64>}, {pipeline_mode = #tpu.pipeline_mode<synchronous>, transform_indices = @transform_8, window_bounds = array<i64: 1, 64>}, {pipeline_mode = #tpu.pipeline_mode<synchronous>, transform_indices = @transform_9, window_bounds = array<i64: 1, 64>}, {pipeline_mode = #tpu.pipeline_mode<synchronous>, transform_indices = @transform_10, window_bounds = array<i64: 1, 64>}, {pipeline_mode = #tpu.pipeline_mode<synchronous>, transform_indices = @transform_11, window_bounds = array<i64: 64, 64>}, {pipeline_mode = #tpu.pipeline_mode<synchronous>, transform_indices = @transform_12, window_bounds = array<i64: 64, 16>}, {pipeline_mode = #tpu.pipeline_mode<synchronous>, transform_indices = @transform_13, window_bounds = array<i64: 16, 64, 128>}, {pipeline_mode = #tpu.pipeline_mode<synchronous>, transform_indices = @transform_14, window_bounds = array<i64: 1, 128>}, {pipeline_mode = #tpu.pipeline_mode<synchronous>, transform_indices = @transform_15, window_bounds = array<i64: 1, 128>}, {pipeline_mode = #tpu.pipeline_mode<synchronous>, transform_indices = @transform_16, window_bounds = array<i64: 1, 128>}, {pipeline_mode = #tpu.pipeline_mode<synchronous>, transform_indices = @transform_17, window_bounds = array<i64: 128, 128>}, {pipeline_mode = #tpu.pipeline_mode<synchronous>, transform_indices = @transform_18, window_bounds = array<i64: 16, 4>}, {pipeline_mode = #tpu.pipeline_mode<synchronous>, transform_indices = @transform_19, window_bounds = array<i64: 16, 128, 256>}, {pipeline_mode = #tpu.pipeline_mode<synchronous>, transform_indices = @transform_20, window_bounds = array<i64: 1, 256>}, {pipeline_mode = #tpu.pipeline_mode<synchronous>, transform_indices = @transform_21, window_bounds = array<i64: 1, 256>}, {pipeline_mode = #tpu.pipeline_mode<synchronous>, transform_indices = @transform_22, window_bounds = array<i64: 1, 256>}, {pipeline_mode = #tpu.pipeline_mode<synchronous>, transform_indices = @transform_23, window_bounds = array<i64: 256, 256>}, {transform_indices = @transform_24, window_bounds = array<i64: 4>}, {pipeline_mode = #tpu.pipeline_mode<synchronous>, transform_indices = @transform_25, window_bounds = array<i64: 256, 1>}, {pipeline_mode = #tpu.pipeline_mode<synchronous>, transform_indices = @transform_26, window_bounds = array<i64: 1, 1>}, {transform_indices = @transform_27, window_bounds = array<i64: 1, 1, 1>}]} {
    %c0 = arith.constant 0 : index
    %c0_0 = arith.constant 0 : index
    %c0_1 = arith.constant 0 : index
    %0 = vector.load %arg1[%c0, %c0_0, %c0_1] : memref<1x64x64xf32, #tpu.memory_space<vmem>>, vector<1x64x64xf32>
    %1 = vector.shape_cast %0 : vector<1x64x64xf32> to vector<64x64xf32>
    %c0_2 = arith.constant 0 : index
    %c0_3 = arith.constant 0 : index
    %2 = vector.load %arg2[%c0_2, %c0_3] : memref<64x32xf32, #tpu.memory_space<vmem>>, vector<64x32xf32>
    %cst = arith.constant dense<0.000000e+00> : vector<64x32xf32>
    %3 = tpu.matmul %1, %2, %cst {dimension_numbers = #tpu.dot_dimension_numbers<[1], [0], [0], [1], [0, 0, 1, 1], [], []>} : vector<64x64xf32>, vector<64x32xf32>, vector<64x32xf32> -> vector<64x32xf32>
    %c0_4 = arith.constant 0 : index
    %c0_5 = arith.constant 0 : index
    %4 = vector.load %arg3[%c0_4, %c0_5] : memref<1x32xf32, #tpu.memory_space<vmem>>, vector<1x32xf32>
    %5 = vector.broadcast %4 : vector<1x32xf32> to vector<64x32xf32>
    %6 = arith.addf %3, %5 : vector<64x32xf32>
    %c0_6 = arith.constant 0 : index
    %7 = memref.load %arg25[%c0_6] : memref<4xf32, #tpu.memory_space<smem>>
    %cst_7 = arith.constant dense<0.000000e+00> : vector<32xf32>
    %8 = vector.multi_reduction <add>, %6, %cst_7 [0] : vector<64x32xf32> to vector<32xf32>
    %9 = vector.shape_cast %8 : vector<32xf32> to vector<1x32xf32>
    %c0_8 = arith.constant 0 : index
    %c0_9 = arith.constant 0 : index
    %10 = vector.load %arg6[%c0_8, %c0_9] : memref<32x32xf32, #tpu.memory_space<vmem>>, vector<32x32xf32>
    %cst_10 = arith.constant dense<0.000000e+00> : vector<1x32xf32>
    %11 = tpu.matmul %9, %10, %cst_10 {dimension_numbers = #tpu.dot_dimension_numbers<[1], [0], [0], [1], [0, 0, 1, 1], [], []>} : vector<1x32xf32>, vector<32x32xf32>, vector<1x32xf32> -> vector<1x32xf32>
    %12 = vector.broadcast %11 : vector<1x32xf32> to vector<64x32xf32>
    %13 = arith.subf %6, %12 : vector<64x32xf32>
    %14 = arith.mulf %13, %13 : vector<64x32xf32>
    %cst_11 = arith.constant dense<0.000000e+00> : vector<32xf32>
    %15 = vector.multi_reduction <add>, %14, %cst_11 [0] : vector<64x32xf32> to vector<32xf32>
    %16 = vector.shape_cast %15 : vector<32xf32> to vector<1x32xf32>
    %c0_12 = arith.constant 0 : index
    %c0_13 = arith.constant 0 : index
    %17 = vector.load %arg6[%c0_12, %c0_13] : memref<32x32xf32, #tpu.memory_space<vmem>>, vector<32x32xf32>
    %cst_14 = arith.constant dense<0.000000e+00> : vector<1x32xf32>
    %18 = tpu.matmul %16, %17, %cst_14 {dimension_numbers = #tpu.dot_dimension_numbers<[1], [0], [0], [1], [0, 0, 1, 1], [], []>} : vector<1x32xf32>, vector<32x32xf32>, vector<1x32xf32> -> vector<1x32xf32>
    %cst_15 = arith.constant 9.99999974E-6 : f32
    %19 = vector.broadcast %cst_15 : f32 to vector<1x32xf32>
    %20 = arith.addf %18, %19 : vector<1x32xf32>
    %21 = math.rsqrt %20 : vector<1x32xf32>
    %22 = vector.broadcast %21 : vector<1x32xf32> to vector<64x32xf32>
    %23 = arith.mulf %13, %22 : vector<64x32xf32>
    %c0_16 = arith.constant 0 : index
    %c0_17 = arith.constant 0 : index
    %24 = vector.load %arg4[%c0_16, %c0_17] : memref<1x32xf32, #tpu.memory_space<vmem>>, vector<1x32xf32>
    %25 = vector.broadcast %24 : vector<1x32xf32> to vector<64x32xf32>
    %26 = arith.mulf %23, %25 : vector<64x32xf32>
    %c0_18 = arith.constant 0 : index
    %c0_19 = arith.constant 0 : index
    %27 = vector.load %arg5[%c0_18, %c0_19] : memref<1x32xf32, #tpu.memory_space<vmem>>, vector<1x32xf32>
    %28 = vector.broadcast %27 : vector<1x32xf32> to vector<64x32xf32>
    %29 = arith.addf %26, %28 : vector<64x32xf32>
    %cst_20 = arith.constant 0.000000e+00 : f32
    %30 = vector.broadcast %cst_20 : f32 to vector<64x32xf32>
    %31 = arith.cmpf oge, %29, %30 : vector<64x32xf32>
    %32 = vector.broadcast %7 : f32 to vector<64x32xf32>
    %33 = arith.mulf %32, %29 : vector<64x32xf32>
    %34 = arith.select %31, %29, %33 : vector<64x32xi1>, vector<64x32xf32>
    %c0_21 = arith.constant 0 : index
    %c0_22 = arith.constant 0 : index
    %35 = vector.load %arg7[%c0_21, %c0_22] : memref<256x64xf32, #tpu.memory_space<vmem>>, vector<256x64xf32>
    %cst_23 = arith.constant dense<0.000000e+00> : vector<256x32xf32>
    %36 = tpu.matmul %35, %34, %cst_23 {dimension_numbers = #tpu.dot_dimension_numbers<[1], [0], [0], [1], [0, 0, 1, 1], [], []>} : vector<256x64xf32>, vector<64x32xf32>, vector<256x32xf32> -> vector<256x32xf32>
    %cst_24 = arith.constant 0.000000e+00 : f32
    %37 = vector.broadcast %cst_24 : f32 to vector<16x64xf32>
    %38 = vector.extract_strided_slice %36 {offsets = [0, 0], sizes = [16, 32], strides = [1, 1]} : vector<256x32xf32> to vector<16x32xf32>
    %c0_25 = arith.constant 0 : index
    %c0_26 = arith.constant 0 : index
    %c0_27 = arith.constant 0 : index
    %39 = vector.load %arg8[%c0_25, %c0_26, %c0_27] : memref<16x32x64xf32, #tpu.memory_space<vmem>>, vector<1x32x64xf32>
    %40 = vector.shape_cast %39 : vector<1x32x64xf32> to vector<32x64xf32>
    %cst_28 = arith.constant dense<0.000000e+00> : vector<16x64xf32>
    %41 = tpu.matmul %38, %40, %cst_28 {dimension_numbers = #tpu.dot_dimension_numbers<[1], [0], [0], [1], [0, 0, 1, 1], [], []>} : vector<16x32xf32>, vector<32x64xf32>, vector<16x64xf32> -> vector<16x64xf32>
    %42 = arith.addf %37, %41 : vector<16x64xf32>
    %43 = vector.extract_strided_slice %36 {offsets = [16, 0], sizes = [16, 32], strides = [1, 1]} : vector<256x32xf32> to vector<16x32xf32>
    %c1 = arith.constant 1 : index
    %c0_29 = arith.constant 0 : index
    %c0_30 = arith.constant 0 : index
    %44 = vector.load %arg8[%c1, %c0_29, %c0_30] : memref<16x32x64xf32, #tpu.memory_space<vmem>>, vector<1x32x64xf32>
    %45 = vector.shape_cast %44 : vector<1x32x64xf32> to vector<32x64xf32>
    %cst_31 = arith.constant dense<0.000000e+00> : vector<16x64xf32>
    %46 = tpu.matmul %43, %45, %cst_31 {dimension_numbers = #tpu.dot_dimension_numbers<[1], [0], [0], [1], [0, 0, 1, 1], [], []>} : vector<16x32xf32>, vector<32x64xf32>, vector<16x64xf32> -> vector<16x64xf32>
    %47 = arith.addf %42, %46 : vector<16x64xf32>
    %48 = vector.extract_strided_slice %36 {offsets = [32, 0], sizes = [16, 32], strides = [1, 1]} : vector<256x32xf32> to vector<16x32xf32>
    %c2 = arith.constant 2 : index
    %c0_32 = arith.constant 0 : index
    %c0_33 = arith.constant 0 : index
    %49 = vector.load %arg8[%c2, %c0_32, %c0_33] : memref<16x32x64xf32, #tpu.memory_space<vmem>>, vector<1x32x64xf32>
    %50 = vector.shape_cast %49 : vector<1x32x64xf32> to vector<32x64xf32>
    %cst_34 = arith.constant dense<0.000000e+00> : vector<16x64xf32>
    %51 = tpu.matmul %48, %50, %cst_34 {dimension_numbers = #tpu.dot_dimension_numbers<[1], [0], [0], [1], [0, 0, 1, 1], [], []>} : vector<16x32xf32>, vector<32x64xf32>, vector<16x64xf32> -> vector<16x64xf32>
    %52 = arith.addf %47, %51 : vector<16x64xf32>
    %53 = vector.extract_strided_slice %36 {offsets = [48, 0], sizes = [16, 32], strides = [1, 1]} : vector<256x32xf32> to vector<16x32xf32>
    %c3 = arith.constant 3 : index
    %c0_35 = arith.constant 0 : index
    %c0_36 = arith.constant 0 : index
    %54 = vector.load %arg8[%c3, %c0_35, %c0_36] : memref<16x32x64xf32, #tpu.memory_space<vmem>>, vector<1x32x64xf32>
    %55 = vector.shape_cast %54 : vector<1x32x64xf32> to vector<32x64xf32>
    %cst_37 = arith.constant dense<0.000000e+00> : vector<16x64xf32>
    %56 = tpu.matmul %53, %55, %cst_37 {dimension_numbers = #tpu.dot_dimension_numbers<[1], [0], [0], [1], [0, 0, 1, 1], [], []>} : vector<16x32xf32>, vector<32x64xf32>, vector<16x64xf32> -> vector<16x64xf32>
    %57 = arith.addf %52, %56 : vector<16x64xf32>
    %58 = vector.extract_strided_slice %36 {offsets = [64, 0], sizes = [16, 32], strides = [1, 1]} : vector<256x32xf32> to vector<16x32xf32>
    %c4 = arith.constant 4 : index
    %c0_38 = arith.constant 0 : index
    %c0_39 = arith.constant 0 : index
    %59 = vector.load %arg8[%c4, %c0_38, %c0_39] : memref<16x32x64xf32, #tpu.memory_space<vmem>>, vector<1x32x64xf32>
    %60 = vector.shape_cast %59 : vector<1x32x64xf32> to vector<32x64xf32>
    %cst_40 = arith.constant dense<0.000000e+00> : vector<16x64xf32>
    %61 = tpu.matmul %58, %60, %cst_40 {dimension_numbers = #tpu.dot_dimension_numbers<[1], [0], [0], [1], [0, 0, 1, 1], [], []>} : vector<16x32xf32>, vector<32x64xf32>, vector<16x64xf32> -> vector<16x64xf32>
    %62 = arith.addf %57, %61 : vector<16x64xf32>
    %63 = vector.extract_strided_slice %36 {offsets = [80, 0], sizes = [16, 32], strides = [1, 1]} : vector<256x32xf32> to vector<16x32xf32>
    %c5 = arith.constant 5 : index
    %c0_41 = arith.constant 0 : index
    %c0_42 = arith.constant 0 : index
    %64 = vector.load %arg8[%c5, %c0_41, %c0_42] : memref<16x32x64xf32, #tpu.memory_space<vmem>>, vector<1x32x64xf32>
    %65 = vector.shape_cast %64 : vector<1x32x64xf32> to vector<32x64xf32>
    %cst_43 = arith.constant dense<0.000000e+00> : vector<16x64xf32>
    %66 = tpu.matmul %63, %65, %cst_43 {dimension_numbers = #tpu.dot_dimension_numbers<[1], [0], [0], [1], [0, 0, 1, 1], [], []>} : vector<16x32xf32>, vector<32x64xf32>, vector<16x64xf32> -> vector<16x64xf32>
    %67 = arith.addf %62, %66 : vector<16x64xf32>
    %68 = vector.extract_strided_slice %36 {offsets = [96, 0], sizes = [16, 32], strides = [1, 1]} : vector<256x32xf32> to vector<16x32xf32>
    %c6 = arith.constant 6 : index
    %c0_44 = arith.constant 0 : index
    %c0_45 = arith.constant 0 : index
    %69 = vector.load %arg8[%c6, %c0_44, %c0_45] : memref<16x32x64xf32, #tpu.memory_space<vmem>>, vector<1x32x64xf32>
    %70 = vector.shape_cast %69 : vector<1x32x64xf32> to vector<32x64xf32>
    %cst_46 = arith.constant dense<0.000000e+00> : vector<16x64xf32>
    %71 = tpu.matmul %68, %70, %cst_46 {dimension_numbers = #tpu.dot_dimension_numbers<[1], [0], [0], [1], [0, 0, 1, 1], [], []>} : vector<16x32xf32>, vector<32x64xf32>, vector<16x64xf32> -> vector<16x64xf32>
    %72 = arith.addf %67, %71 : vector<16x64xf32>
    %73 = vector.extract_strided_slice %36 {offsets = [112, 0], sizes = [16, 32], strides = [1, 1]} : vector<256x32xf32> to vector<16x32xf32>
    %c7 = arith.constant 7 : index
    %c0_47 = arith.constant 0 : index
    %c0_48 = arith.constant 0 : index
    %74 = vector.load %arg8[%c7, %c0_47, %c0_48] : memref<16x32x64xf32, #tpu.memory_space<vmem>>, vector<1x32x64xf32>
    %75 = vector.shape_cast %74 : vector<1x32x64xf32> to vector<32x64xf32>
    %cst_49 = arith.constant dense<0.000000e+00> : vector<16x64xf32>
    %76 = tpu.matmul %73, %75, %cst_49 {dimension_numbers = #tpu.dot_dimension_numbers<[1], [0], [0], [1], [0, 0, 1, 1], [], []>} : vector<16x32xf32>, vector<32x64xf32>, vector<16x64xf32> -> vector<16x64xf32>
    %77 = arith.addf %72, %76 : vector<16x64xf32>
    %78 = vector.extract_strided_slice %36 {offsets = [128, 0], sizes = [16, 32], strides = [1, 1]} : vector<256x32xf32> to vector<16x32xf32>
    %c8 = arith.constant 8 : index
    %c0_50 = arith.constant 0 : index
    %c0_51 = arith.constant 0 : index
    %79 = vector.load %arg8[%c8, %c0_50, %c0_51] : memref<16x32x64xf32, #tpu.memory_space<vmem>>, vector<1x32x64xf32>
    %80 = vector.shape_cast %79 : vector<1x32x64xf32> to vector<32x64xf32>
    %cst_52 = arith.constant dense<0.000000e+00> : vector<16x64xf32>
    %81 = tpu.matmul %78, %80, %cst_52 {dimension_numbers = #tpu.dot_dimension_numbers<[1], [0], [0], [1], [0, 0, 1, 1], [], []>} : vector<16x32xf32>, vector<32x64xf32>, vector<16x64xf32> -> vector<16x64xf32>
    %82 = arith.addf %77, %81 : vector<16x64xf32>
    %83 = vector.extract_strided_slice %36 {offsets = [144, 0], sizes = [16, 32], strides = [1, 1]} : vector<256x32xf32> to vector<16x32xf32>
    %c9 = arith.constant 9 : index
    %c0_53 = arith.constant 0 : index
    %c0_54 = arith.constant 0 : index
    %84 = vector.load %arg8[%c9, %c0_53, %c0_54] : memref<16x32x64xf32, #tpu.memory_space<vmem>>, vector<1x32x64xf32>
    %85 = vector.shape_cast %84 : vector<1x32x64xf32> to vector<32x64xf32>
    %cst_55 = arith.constant dense<0.000000e+00> : vector<16x64xf32>
    %86 = tpu.matmul %83, %85, %cst_55 {dimension_numbers = #tpu.dot_dimension_numbers<[1], [0], [0], [1], [0, 0, 1, 1], [], []>} : vector<16x32xf32>, vector<32x64xf32>, vector<16x64xf32> -> vector<16x64xf32>
    %87 = arith.addf %82, %86 : vector<16x64xf32>
    %88 = vector.extract_strided_slice %36 {offsets = [160, 0], sizes = [16, 32], strides = [1, 1]} : vector<256x32xf32> to vector<16x32xf32>
    %c10 = arith.constant 10 : index
    %c0_56 = arith.constant 0 : index
    %c0_57 = arith.constant 0 : index
    %89 = vector.load %arg8[%c10, %c0_56, %c0_57] : memref<16x32x64xf32, #tpu.memory_space<vmem>>, vector<1x32x64xf32>
    %90 = vector.shape_cast %89 : vector<1x32x64xf32> to vector<32x64xf32>
    %cst_58 = arith.constant dense<0.000000e+00> : vector<16x64xf32>
    %91 = tpu.matmul %88, %90, %cst_58 {dimension_numbers = #tpu.dot_dimension_numbers<[1], [0], [0], [1], [0, 0, 1, 1], [], []>} : vector<16x32xf32>, vector<32x64xf32>, vector<16x64xf32> -> vector<16x64xf32>
    %92 = arith.addf %87, %91 : vector<16x64xf32>
    %93 = vector.extract_strided_slice %36 {offsets = [176, 0], sizes = [16, 32], strides = [1, 1]} : vector<256x32xf32> to vector<16x32xf32>
    %c11 = arith.constant 11 : index
    %c0_59 = arith.constant 0 : index
    %c0_60 = arith.constant 0 : index
    %94 = vector.load %arg8[%c11, %c0_59, %c0_60] : memref<16x32x64xf32, #tpu.memory_space<vmem>>, vector<1x32x64xf32>
    %95 = vector.shape_cast %94 : vector<1x32x64xf32> to vector<32x64xf32>
    %cst_61 = arith.constant dense<0.000000e+00> : vector<16x64xf32>
    %96 = tpu.matmul %93, %95, %cst_61 {dimension_numbers = #tpu.dot_dimension_numbers<[1], [0], [0], [1], [0, 0, 1, 1], [], []>} : vector<16x32xf32>, vector<32x64xf32>, vector<16x64xf32> -> vector<16x64xf32>
    %97 = arith.addf %92, %96 : vector<16x64xf32>
    %98 = vector.extract_strided_slice %36 {offsets = [192, 0], sizes = [16, 32], strides = [1, 1]} : vector<256x32xf32> to vector<16x32xf32>
    %c12 = arith.constant 12 : index
    %c0_62 = arith.constant 0 : index
    %c0_63 = arith.constant 0 : index
    %99 = vector.load %arg8[%c12, %c0_62, %c0_63] : memref<16x32x64xf32, #tpu.memory_space<vmem>>, vector<1x32x64xf32>
    %100 = vector.shape_cast %99 : vector<1x32x64xf32> to vector<32x64xf32>
    %cst_64 = arith.constant dense<0.000000e+00> : vector<16x64xf32>
    %101 = tpu.matmul %98, %100, %cst_64 {dimension_numbers = #tpu.dot_dimension_numbers<[1], [0], [0], [1], [0, 0, 1, 1], [], []>} : vector<16x32xf32>, vector<32x64xf32>, vector<16x64xf32> -> vector<16x64xf32>
    %102 = arith.addf %97, %101 : vector<16x64xf32>
    %103 = vector.extract_strided_slice %36 {offsets = [208, 0], sizes = [16, 32], strides = [1, 1]} : vector<256x32xf32> to vector<16x32xf32>
    %c13 = arith.constant 13 : index
    %c0_65 = arith.constant 0 : index
    %c0_66 = arith.constant 0 : index
    %104 = vector.load %arg8[%c13, %c0_65, %c0_66] : memref<16x32x64xf32, #tpu.memory_space<vmem>>, vector<1x32x64xf32>
    %105 = vector.shape_cast %104 : vector<1x32x64xf32> to vector<32x64xf32>
    %cst_67 = arith.constant dense<0.000000e+00> : vector<16x64xf32>
    %106 = tpu.matmul %103, %105, %cst_67 {dimension_numbers = #tpu.dot_dimension_numbers<[1], [0], [0], [1], [0, 0, 1, 1], [], []>} : vector<16x32xf32>, vector<32x64xf32>, vector<16x64xf32> -> vector<16x64xf32>
    %107 = arith.addf %102, %106 : vector<16x64xf32>
    %108 = vector.extract_strided_slice %36 {offsets = [224, 0], sizes = [16, 32], strides = [1, 1]} : vector<256x32xf32> to vector<16x32xf32>
    %c14 = arith.constant 14 : index
    %c0_68 = arith.constant 0 : index
    %c0_69 = arith.constant 0 : index
    %109 = vector.load %arg8[%c14, %c0_68, %c0_69] : memref<16x32x64xf32, #tpu.memory_space<vmem>>, vector<1x32x64xf32>
    %110 = vector.shape_cast %109 : vector<1x32x64xf32> to vector<32x64xf32>
    %cst_70 = arith.constant dense<0.000000e+00> : vector<16x64xf32>
    %111 = tpu.matmul %108, %110, %cst_70 {dimension_numbers = #tpu.dot_dimension_numbers<[1], [0], [0], [1], [0, 0, 1, 1], [], []>} : vector<16x32xf32>, vector<32x64xf32>, vector<16x64xf32> -> vector<16x64xf32>
    %112 = arith.addf %107, %111 : vector<16x64xf32>
    %113 = vector.extract_strided_slice %36 {offsets = [240, 0], sizes = [16, 32], strides = [1, 1]} : vector<256x32xf32> to vector<16x32xf32>
    %c15 = arith.constant 15 : index
    %c0_71 = arith.constant 0 : index
    %c0_72 = arith.constant 0 : index
    %114 = vector.load %arg8[%c15, %c0_71, %c0_72] : memref<16x32x64xf32, #tpu.memory_space<vmem>>, vector<1x32x64xf32>
    %115 = vector.shape_cast %114 : vector<1x32x64xf32> to vector<32x64xf32>
    %cst_73 = arith.constant dense<0.000000e+00> : vector<16x64xf32>
    %116 = tpu.matmul %113, %115, %cst_73 {dimension_numbers = #tpu.dot_dimension_numbers<[1], [0], [0], [1], [0, 0, 1, 1], [], []>} : vector<16x32xf32>, vector<32x64xf32>, vector<16x64xf32> -> vector<16x64xf32>
    %117 = arith.addf %112, %116 : vector<16x64xf32>
    %c0_74 = arith.constant 0 : index
    %c0_75 = arith.constant 0 : index
    %118 = vector.load %arg9[%c0_74, %c0_75] : memref<1x64xf32, #tpu.memory_space<vmem>>, vector<1x64xf32>
    %119 = vector.broadcast %118 : vector<1x64xf32> to vector<16x64xf32>
    %120 = arith.addf %117, %119 : vector<16x64xf32>
    %c1_76 = arith.constant 1 : index
    %121 = memref.load %arg25[%c1_76] : memref<4xf32, #tpu.memory_space<smem>>
    %cst_77 = arith.constant dense<0.000000e+00> : vector<64xf32>
    %122 = vector.multi_reduction <add>, %120, %cst_77 [0] : vector<16x64xf32> to vector<64xf32>
    %123 = vector.shape_cast %122 : vector<64xf32> to vector<1x64xf32>
    %c0_78 = arith.constant 0 : index
    %c0_79 = arith.constant 0 : index
    %124 = vector.load %arg12[%c0_78, %c0_79] : memref<64x64xf32, #tpu.memory_space<vmem>>, vector<64x64xf32>
    %cst_80 = arith.constant dense<0.000000e+00> : vector<1x64xf32>
    %125 = tpu.matmul %123, %124, %cst_80 {dimension_numbers = #tpu.dot_dimension_numbers<[1], [0], [0], [1], [0, 0, 1, 1], [], []>} : vector<1x64xf32>, vector<64x64xf32>, vector<1x64xf32> -> vector<1x64xf32>
    %126 = vector.broadcast %125 : vector<1x64xf32> to vector<16x64xf32>
    %127 = arith.subf %120, %126 : vector<16x64xf32>
    %128 = arith.mulf %127, %127 : vector<16x64xf32>
    %cst_81 = arith.constant dense<0.000000e+00> : vector<64xf32>
    %129 = vector.multi_reduction <add>, %128, %cst_81 [0] : vector<16x64xf32> to vector<64xf32>
    %130 = vector.shape_cast %129 : vector<64xf32> to vector<1x64xf32>
    %c0_82 = arith.constant 0 : index
    %c0_83 = arith.constant 0 : index
    %131 = vector.load %arg12[%c0_82, %c0_83] : memref<64x64xf32, #tpu.memory_space<vmem>>, vector<64x64xf32>
    %cst_84 = arith.constant dense<0.000000e+00> : vector<1x64xf32>
    %132 = tpu.matmul %130, %131, %cst_84 {dimension_numbers = #tpu.dot_dimension_numbers<[1], [0], [0], [1], [0, 0, 1, 1], [], []>} : vector<1x64xf32>, vector<64x64xf32>, vector<1x64xf32> -> vector<1x64xf32>
    %cst_85 = arith.constant 9.99999974E-6 : f32
    %133 = vector.broadcast %cst_85 : f32 to vector<1x64xf32>
    %134 = arith.addf %132, %133 : vector<1x64xf32>
    %135 = math.rsqrt %134 : vector<1x64xf32>
    %136 = vector.broadcast %135 : vector<1x64xf32> to vector<16x64xf32>
    %137 = arith.mulf %127, %136 : vector<16x64xf32>
    %c0_86 = arith.constant 0 : index
    %c0_87 = arith.constant 0 : index
    %138 = vector.load %arg10[%c0_86, %c0_87] : memref<1x64xf32, #tpu.memory_space<vmem>>, vector<1x64xf32>
    %139 = vector.broadcast %138 : vector<1x64xf32> to vector<16x64xf32>
    %140 = arith.mulf %137, %139 : vector<16x64xf32>
    %c0_88 = arith.constant 0 : index
    %c0_89 = arith.constant 0 : index
    %141 = vector.load %arg11[%c0_88, %c0_89] : memref<1x64xf32, #tpu.memory_space<vmem>>, vector<1x64xf32>
    %142 = vector.broadcast %141 : vector<1x64xf32> to vector<16x64xf32>
    %143 = arith.addf %140, %142 : vector<16x64xf32>
    %cst_90 = arith.constant 0.000000e+00 : f32
    %144 = vector.broadcast %cst_90 : f32 to vector<16x64xf32>
    %145 = arith.cmpf oge, %143, %144 : vector<16x64xf32>
    %146 = vector.broadcast %121 : f32 to vector<16x64xf32>
    %147 = arith.mulf %146, %143 : vector<16x64xf32>
    %148 = arith.select %145, %143, %147 : vector<16x64xi1>, vector<16x64xf32>
    %c0_91 = arith.constant 0 : index
    %c0_92 = arith.constant 0 : index
    %149 = vector.load %arg13[%c0_91, %c0_92] : memref<64x16xf32, #tpu.memory_space<vmem>>, vector<64x16xf32>
    %cst_93 = arith.constant dense<0.000000e+00> : vector<64x64xf32>
    %150 = tpu.matmul %149, %148, %cst_93 {dimension_numbers = #tpu.dot_dimension_numbers<[1], [0], [0], [1], [0, 0, 1, 1], [], []>} : vector<64x16xf32>, vector<16x64xf32>, vector<64x64xf32> -> vector<64x64xf32>
    %cst_94 = arith.constant 0.000000e+00 : f32
    %151 = vector.broadcast %cst_94 : f32 to vector<4x128xf32>
    %152 = vector.extract_strided_slice %150 {offsets = [0, 0], sizes = [4, 64], strides = [1, 1]} : vector<64x64xf32> to vector<4x64xf32>
    %c0_95 = arith.constant 0 : index
    %c0_96 = arith.constant 0 : index
    %c0_97 = arith.constant 0 : index
    %153 = vector.load %arg14[%c0_95, %c0_96, %c0_97] : memref<16x64x128xf32, #tpu.memory_space<vmem>>, vector<1x64x128xf32>
    %154 = vector.shape_cast %153 : vector<1x64x128xf32> to vector<64x128xf32>
    %cst_98 = arith.constant dense<0.000000e+00> : vector<4x128xf32>
    %155 = tpu.matmul %152, %154, %cst_98 {dimension_numbers = #tpu.dot_dimension_numbers<[1], [0], [0], [1], [0, 0, 1, 1], [], []>} : vector<4x64xf32>, vector<64x128xf32>, vector<4x128xf32> -> vector<4x128xf32>
    %156 = arith.addf %151, %155 : vector<4x128xf32>
    %157 = vector.extract_strided_slice %150 {offsets = [4, 0], sizes = [4, 64], strides = [1, 1]} : vector<64x64xf32> to vector<4x64xf32>
    %c1_99 = arith.constant 1 : index
    %c0_100 = arith.constant 0 : index
    %c0_101 = arith.constant 0 : index
    %158 = vector.load %arg14[%c1_99, %c0_100, %c0_101] : memref<16x64x128xf32, #tpu.memory_space<vmem>>, vector<1x64x128xf32>
    %159 = vector.shape_cast %158 : vector<1x64x128xf32> to vector<64x128xf32>
    %cst_102 = arith.constant dense<0.000000e+00> : vector<4x128xf32>
    %160 = tpu.matmul %157, %159, %cst_102 {dimension_numbers = #tpu.dot_dimension_numbers<[1], [0], [0], [1], [0, 0, 1, 1], [], []>} : vector<4x64xf32>, vector<64x128xf32>, vector<4x128xf32> -> vector<4x128xf32>
    %161 = arith.addf %156, %160 : vector<4x128xf32>
    %162 = vector.extract_strided_slice %150 {offsets = [8, 0], sizes = [4, 64], strides = [1, 1]} : vector<64x64xf32> to vector<4x64xf32>
    %c2_103 = arith.constant 2 : index
    %c0_104 = arith.constant 0 : index
    %c0_105 = arith.constant 0 : index
    %163 = vector.load %arg14[%c2_103, %c0_104, %c0_105] : memref<16x64x128xf32, #tpu.memory_space<vmem>>, vector<1x64x128xf32>
    %164 = vector.shape_cast %163 : vector<1x64x128xf32> to vector<64x128xf32>
    %cst_106 = arith.constant dense<0.000000e+00> : vector<4x128xf32>
    %165 = tpu.matmul %162, %164, %cst_106 {dimension_numbers = #tpu.dot_dimension_numbers<[1], [0], [0], [1], [0, 0, 1, 1], [], []>} : vector<4x64xf32>, vector<64x128xf32>, vector<4x128xf32> -> vector<4x128xf32>
    %166 = arith.addf %161, %165 : vector<4x128xf32>
    %167 = vector.extract_strided_slice %150 {offsets = [12, 0], sizes = [4, 64], strides = [1, 1]} : vector<64x64xf32> to vector<4x64xf32>
    %c3_107 = arith.constant 3 : index
    %c0_108 = arith.constant 0 : index
    %c0_109 = arith.constant 0 : index
    %168 = vector.load %arg14[%c3_107, %c0_108, %c0_109] : memref<16x64x128xf32, #tpu.memory_space<vmem>>, vector<1x64x128xf32>
    %169 = vector.shape_cast %168 : vector<1x64x128xf32> to vector<64x128xf32>
    %cst_110 = arith.constant dense<0.000000e+00> : vector<4x128xf32>
    %170 = tpu.matmul %167, %169, %cst_110 {dimension_numbers = #tpu.dot_dimension_numbers<[1], [0], [0], [1], [0, 0, 1, 1], [], []>} : vector<4x64xf32>, vector<64x128xf32>, vector<4x128xf32> -> vector<4x128xf32>
    %171 = arith.addf %166, %170 : vector<4x128xf32>
    %172 = vector.extract_strided_slice %150 {offsets = [16, 0], sizes = [4, 64], strides = [1, 1]} : vector<64x64xf32> to vector<4x64xf32>
    %c4_111 = arith.constant 4 : index
    %c0_112 = arith.constant 0 : index
    %c0_113 = arith.constant 0 : index
    %173 = vector.load %arg14[%c4_111, %c0_112, %c0_113] : memref<16x64x128xf32, #tpu.memory_space<vmem>>, vector<1x64x128xf32>
    %174 = vector.shape_cast %173 : vector<1x64x128xf32> to vector<64x128xf32>
    %cst_114 = arith.constant dense<0.000000e+00> : vector<4x128xf32>
    %175 = tpu.matmul %172, %174, %cst_114 {dimension_numbers = #tpu.dot_dimension_numbers<[1], [0], [0], [1], [0, 0, 1, 1], [], []>} : vector<4x64xf32>, vector<64x128xf32>, vector<4x128xf32> -> vector<4x128xf32>
    %176 = arith.addf %171, %175 : vector<4x128xf32>
    %177 = vector.extract_strided_slice %150 {offsets = [20, 0], sizes = [4, 64], strides = [1, 1]} : vector<64x64xf32> to vector<4x64xf32>
    %c5_115 = arith.constant 5 : index
    %c0_116 = arith.constant 0 : index
    %c0_117 = arith.constant 0 : index
    %178 = vector.load %arg14[%c5_115, %c0_116, %c0_117] : memref<16x64x128xf32, #tpu.memory_space<vmem>>, vector<1x64x128xf32>
    %179 = vector.shape_cast %178 : vector<1x64x128xf32> to vector<64x128xf32>
    %cst_118 = arith.constant dense<0.000000e+00> : vector<4x128xf32>
    %180 = tpu.matmul %177, %179, %cst_118 {dimension_numbers = #tpu.dot_dimension_numbers<[1], [0], [0], [1], [0, 0, 1, 1], [], []>} : vector<4x64xf32>, vector<64x128xf32>, vector<4x128xf32> -> vector<4x128xf32>
    %181 = arith.addf %176, %180 : vector<4x128xf32>
    %182 = vector.extract_strided_slice %150 {offsets = [24, 0], sizes = [4, 64], strides = [1, 1]} : vector<64x64xf32> to vector<4x64xf32>
    %c6_119 = arith.constant 6 : index
    %c0_120 = arith.constant 0 : index
    %c0_121 = arith.constant 0 : index
    %183 = vector.load %arg14[%c6_119, %c0_120, %c0_121] : memref<16x64x128xf32, #tpu.memory_space<vmem>>, vector<1x64x128xf32>
    %184 = vector.shape_cast %183 : vector<1x64x128xf32> to vector<64x128xf32>
    %cst_122 = arith.constant dense<0.000000e+00> : vector<4x128xf32>
    %185 = tpu.matmul %182, %184, %cst_122 {dimension_numbers = #tpu.dot_dimension_numbers<[1], [0], [0], [1], [0, 0, 1, 1], [], []>} : vector<4x64xf32>, vector<64x128xf32>, vector<4x128xf32> -> vector<4x128xf32>
    %186 = arith.addf %181, %185 : vector<4x128xf32>
    %187 = vector.extract_strided_slice %150 {offsets = [28, 0], sizes = [4, 64], strides = [1, 1]} : vector<64x64xf32> to vector<4x64xf32>
    %c7_123 = arith.constant 7 : index
    %c0_124 = arith.constant 0 : index
    %c0_125 = arith.constant 0 : index
    %188 = vector.load %arg14[%c7_123, %c0_124, %c0_125] : memref<16x64x128xf32, #tpu.memory_space<vmem>>, vector<1x64x128xf32>
    %189 = vector.shape_cast %188 : vector<1x64x128xf32> to vector<64x128xf32>
    %cst_126 = arith.constant dense<0.000000e+00> : vector<4x128xf32>
    %190 = tpu.matmul %187, %189, %cst_126 {dimension_numbers = #tpu.dot_dimension_numbers<[1], [0], [0], [1], [0, 0, 1, 1], [], []>} : vector<4x64xf32>, vector<64x128xf32>, vector<4x128xf32> -> vector<4x128xf32>
    %191 = arith.addf %186, %190 : vector<4x128xf32>
    %192 = vector.extract_strided_slice %150 {offsets = [32, 0], sizes = [4, 64], strides = [1, 1]} : vector<64x64xf32> to vector<4x64xf32>
    %c8_127 = arith.constant 8 : index
    %c0_128 = arith.constant 0 : index
    %c0_129 = arith.constant 0 : index
    %193 = vector.load %arg14[%c8_127, %c0_128, %c0_129] : memref<16x64x128xf32, #tpu.memory_space<vmem>>, vector<1x64x128xf32>
    %194 = vector.shape_cast %193 : vector<1x64x128xf32> to vector<64x128xf32>
    %cst_130 = arith.constant dense<0.000000e+00> : vector<4x128xf32>
    %195 = tpu.matmul %192, %194, %cst_130 {dimension_numbers = #tpu.dot_dimension_numbers<[1], [0], [0], [1], [0, 0, 1, 1], [], []>} : vector<4x64xf32>, vector<64x128xf32>, vector<4x128xf32> -> vector<4x128xf32>
    %196 = arith.addf %191, %195 : vector<4x128xf32>
    %197 = vector.extract_strided_slice %150 {offsets = [36, 0], sizes = [4, 64], strides = [1, 1]} : vector<64x64xf32> to vector<4x64xf32>
    %c9_131 = arith.constant 9 : index
    %c0_132 = arith.constant 0 : index
    %c0_133 = arith.constant 0 : index
    %198 = vector.load %arg14[%c9_131, %c0_132, %c0_133] : memref<16x64x128xf32, #tpu.memory_space<vmem>>, vector<1x64x128xf32>
    %199 = vector.shape_cast %198 : vector<1x64x128xf32> to vector<64x128xf32>
    %cst_134 = arith.constant dense<0.000000e+00> : vector<4x128xf32>
    %200 = tpu.matmul %197, %199, %cst_134 {dimension_numbers = #tpu.dot_dimension_numbers<[1], [0], [0], [1], [0, 0, 1, 1], [], []>} : vector<4x64xf32>, vector<64x128xf32>, vector<4x128xf32> -> vector<4x128xf32>
    %201 = arith.addf %196, %200 : vector<4x128xf32>
    %202 = vector.extract_strided_slice %150 {offsets = [40, 0], sizes = [4, 64], strides = [1, 1]} : vector<64x64xf32> to vector<4x64xf32>
    %c10_135 = arith.constant 10 : index
    %c0_136 = arith.constant 0 : index
    %c0_137 = arith.constant 0 : index
    %203 = vector.load %arg14[%c10_135, %c0_136, %c0_137] : memref<16x64x128xf32, #tpu.memory_space<vmem>>, vector<1x64x128xf32>
    %204 = vector.shape_cast %203 : vector<1x64x128xf32> to vector<64x128xf32>
    %cst_138 = arith.constant dense<0.000000e+00> : vector<4x128xf32>
    %205 = tpu.matmul %202, %204, %cst_138 {dimension_numbers = #tpu.dot_dimension_numbers<[1], [0], [0], [1], [0, 0, 1, 1], [], []>} : vector<4x64xf32>, vector<64x128xf32>, vector<4x128xf32> -> vector<4x128xf32>
    %206 = arith.addf %201, %205 : vector<4x128xf32>
    %207 = vector.extract_strided_slice %150 {offsets = [44, 0], sizes = [4, 64], strides = [1, 1]} : vector<64x64xf32> to vector<4x64xf32>
    %c11_139 = arith.constant 11 : index
    %c0_140 = arith.constant 0 : index
    %c0_141 = arith.constant 0 : index
    %208 = vector.load %arg14[%c11_139, %c0_140, %c0_141] : memref<16x64x128xf32, #tpu.memory_space<vmem>>, vector<1x64x128xf32>
    %209 = vector.shape_cast %208 : vector<1x64x128xf32> to vector<64x128xf32>
    %cst_142 = arith.constant dense<0.000000e+00> : vector<4x128xf32>
    %210 = tpu.matmul %207, %209, %cst_142 {dimension_numbers = #tpu.dot_dimension_numbers<[1], [0], [0], [1], [0, 0, 1, 1], [], []>} : vector<4x64xf32>, vector<64x128xf32>, vector<4x128xf32> -> vector<4x128xf32>
    %211 = arith.addf %206, %210 : vector<4x128xf32>
    %212 = vector.extract_strided_slice %150 {offsets = [48, 0], sizes = [4, 64], strides = [1, 1]} : vector<64x64xf32> to vector<4x64xf32>
    %c12_143 = arith.constant 12 : index
    %c0_144 = arith.constant 0 : index
    %c0_145 = arith.constant 0 : index
    %213 = vector.load %arg14[%c12_143, %c0_144, %c0_145] : memref<16x64x128xf32, #tpu.memory_space<vmem>>, vector<1x64x128xf32>
    %214 = vector.shape_cast %213 : vector<1x64x128xf32> to vector<64x128xf32>
    %cst_146 = arith.constant dense<0.000000e+00> : vector<4x128xf32>
    %215 = tpu.matmul %212, %214, %cst_146 {dimension_numbers = #tpu.dot_dimension_numbers<[1], [0], [0], [1], [0, 0, 1, 1], [], []>} : vector<4x64xf32>, vector<64x128xf32>, vector<4x128xf32> -> vector<4x128xf32>
    %216 = arith.addf %211, %215 : vector<4x128xf32>
    %217 = vector.extract_strided_slice %150 {offsets = [52, 0], sizes = [4, 64], strides = [1, 1]} : vector<64x64xf32> to vector<4x64xf32>
    %c13_147 = arith.constant 13 : index
    %c0_148 = arith.constant 0 : index
    %c0_149 = arith.constant 0 : index
    %218 = vector.load %arg14[%c13_147, %c0_148, %c0_149] : memref<16x64x128xf32, #tpu.memory_space<vmem>>, vector<1x64x128xf32>
    %219 = vector.shape_cast %218 : vector<1x64x128xf32> to vector<64x128xf32>
    %cst_150 = arith.constant dense<0.000000e+00> : vector<4x128xf32>
    %220 = tpu.matmul %217, %219, %cst_150 {dimension_numbers = #tpu.dot_dimension_numbers<[1], [0], [0], [1], [0, 0, 1, 1], [], []>} : vector<4x64xf32>, vector<64x128xf32>, vector<4x128xf32> -> vector<4x128xf32>
    %221 = arith.addf %216, %220 : vector<4x128xf32>
    %222 = vector.extract_strided_slice %150 {offsets = [56, 0], sizes = [4, 64], strides = [1, 1]} : vector<64x64xf32> to vector<4x64xf32>
    %c14_151 = arith.constant 14 : index
    %c0_152 = arith.constant 0 : index
    %c0_153 = arith.constant 0 : index
    %223 = vector.load %arg14[%c14_151, %c0_152, %c0_153] : memref<16x64x128xf32, #tpu.memory_space<vmem>>, vector<1x64x128xf32>
    %224 = vector.shape_cast %223 : vector<1x64x128xf32> to vector<64x128xf32>
    %cst_154 = arith.constant dense<0.000000e+00> : vector<4x128xf32>
    %225 = tpu.matmul %222, %224, %cst_154 {dimension_numbers = #tpu.dot_dimension_numbers<[1], [0], [0], [1], [0, 0, 1, 1], [], []>} : vector<4x64xf32>, vector<64x128xf32>, vector<4x128xf32> -> vector<4x128xf32>
    %226 = arith.addf %221, %225 : vector<4x128xf32>
    %227 = vector.extract_strided_slice %150 {offsets = [60, 0], sizes = [4, 64], strides = [1, 1]} : vector<64x64xf32> to vector<4x64xf32>
    %c15_155 = arith.constant 15 : index
    %c0_156 = arith.constant 0 : index
    %c0_157 = arith.constant 0 : index
    %228 = vector.load %arg14[%c15_155, %c0_156, %c0_157] : memref<16x64x128xf32, #tpu.memory_space<vmem>>, vector<1x64x128xf32>
    %229 = vector.shape_cast %228 : vector<1x64x128xf32> to vector<64x128xf32>
    %cst_158 = arith.constant dense<0.000000e+00> : vector<4x128xf32>
    %230 = tpu.matmul %227, %229, %cst_158 {dimension_numbers = #tpu.dot_dimension_numbers<[1], [0], [0], [1], [0, 0, 1, 1], [], []>} : vector<4x64xf32>, vector<64x128xf32>, vector<4x128xf32> -> vector<4x128xf32>
    %231 = arith.addf %226, %230 : vector<4x128xf32>
    %c0_159 = arith.constant 0 : index
    %c0_160 = arith.constant 0 : index
    %232 = vector.load %arg15[%c0_159, %c0_160] : memref<1x128xf32, #tpu.memory_space<vmem>>, vector<1x128xf32>
    %233 = vector.broadcast %232 : vector<1x128xf32> to vector<4x128xf32>
    %234 = arith.addf %231, %233 : vector<4x128xf32>
    %c2_161 = arith.constant 2 : index
    %235 = memref.load %arg25[%c2_161] : memref<4xf32, #tpu.memory_space<smem>>
    %cst_162 = arith.constant dense<0.000000e+00> : vector<128xf32>
    %236 = vector.multi_reduction <add>, %234, %cst_162 [0] : vector<4x128xf32> to vector<128xf32>
    %237 = vector.shape_cast %236 : vector<128xf32> to vector<1x128xf32>
    %c0_163 = arith.constant 0 : index
    %c0_164 = arith.constant 0 : index
    %238 = vector.load %arg18[%c0_163, %c0_164] : memref<128x128xf32, #tpu.memory_space<vmem>>, vector<128x128xf32>
    %cst_165 = arith.constant dense<0.000000e+00> : vector<1x128xf32>
    %239 = tpu.matmul %237, %238, %cst_165 {dimension_numbers = #tpu.dot_dimension_numbers<[1], [0], [0], [1], [0, 0, 1, 1], [], []>} : vector<1x128xf32>, vector<128x128xf32>, vector<1x128xf32> -> vector<1x128xf32>
    %240 = vector.broadcast %239 : vector<1x128xf32> to vector<4x128xf32>
    %241 = arith.subf %234, %240 : vector<4x128xf32>
    %242 = arith.mulf %241, %241 : vector<4x128xf32>
    %cst_166 = arith.constant dense<0.000000e+00> : vector<128xf32>
    %243 = vector.multi_reduction <add>, %242, %cst_166 [0] : vector<4x128xf32> to vector<128xf32>
    %244 = vector.shape_cast %243 : vector<128xf32> to vector<1x128xf32>
    %c0_167 = arith.constant 0 : index
    %c0_168 = arith.constant 0 : index
    %245 = vector.load %arg18[%c0_167, %c0_168] : memref<128x128xf32, #tpu.memory_space<vmem>>, vector<128x128xf32>
    %cst_169 = arith.constant dense<0.000000e+00> : vector<1x128xf32>
    %246 = tpu.matmul %244, %245, %cst_169 {dimension_numbers = #tpu.dot_dimension_numbers<[1], [0], [0], [1], [0, 0, 1, 1], [], []>} : vector<1x128xf32>, vector<128x128xf32>, vector<1x128xf32> -> vector<1x128xf32>
    %cst_170 = arith.constant 9.99999974E-6 : f32
    %247 = vector.broadcast %cst_170 : f32 to vector<1x128xf32>
    %248 = arith.addf %246, %247 : vector<1x128xf32>
    %249 = math.rsqrt %248 : vector<1x128xf32>
    %250 = vector.broadcast %249 : vector<1x128xf32> to vector<4x128xf32>
    %251 = arith.mulf %241, %250 : vector<4x128xf32>
    %c0_171 = arith.constant 0 : index
    %c0_172 = arith.constant 0 : index
    %252 = vector.load %arg16[%c0_171, %c0_172] : memref<1x128xf32, #tpu.memory_space<vmem>>, vector<1x128xf32>
    %253 = vector.broadcast %252 : vector<1x128xf32> to vector<4x128xf32>
    %254 = arith.mulf %251, %253 : vector<4x128xf32>
    %c0_173 = arith.constant 0 : index
    %c0_174 = arith.constant 0 : index
    %255 = vector.load %arg17[%c0_173, %c0_174] : memref<1x128xf32, #tpu.memory_space<vmem>>, vector<1x128xf32>
    %256 = vector.broadcast %255 : vector<1x128xf32> to vector<4x128xf32>
    %257 = arith.addf %254, %256 : vector<4x128xf32>
    %cst_175 = arith.constant 0.000000e+00 : f32
    %258 = vector.broadcast %cst_175 : f32 to vector<4x128xf32>
    %259 = arith.cmpf oge, %257, %258 : vector<4x128xf32>
    %260 = vector.broadcast %235 : f32 to vector<4x128xf32>
    %261 = arith.mulf %260, %257 : vector<4x128xf32>
    %262 = arith.select %259, %257, %261 : vector<4x128xi1>, vector<4x128xf32>
    %c0_176 = arith.constant 0 : index
    %c0_177 = arith.constant 0 : index
    %263 = vector.load %arg19[%c0_176, %c0_177] : memref<16x4xf32, #tpu.memory_space<vmem>>, vector<16x4xf32>
    %cst_178 = arith.constant dense<0.000000e+00> : vector<16x128xf32>
    %264 = tpu.matmul %263, %262, %cst_178 {dimension_numbers = #tpu.dot_dimension_numbers<[1], [0], [0], [1], [0, 0, 1, 1], [], []>} : vector<16x4xf32>, vector<4x128xf32>, vector<16x128xf32> -> vector<16x128xf32>
    %cst_179 = arith.constant 0.000000e+00 : f32
    %265 = vector.broadcast %cst_179 : f32 to vector<1x256xf32>
    %266 = vector.extract_strided_slice %264 {offsets = [0, 0], sizes = [1, 128], strides = [1, 1]} : vector<16x128xf32> to vector<1x128xf32>
    %c0_180 = arith.constant 0 : index
    %c0_181 = arith.constant 0 : index
    %c0_182 = arith.constant 0 : index
    %267 = vector.load %arg20[%c0_180, %c0_181, %c0_182] : memref<16x128x256xf32, #tpu.memory_space<vmem>>, vector<1x128x256xf32>
    %268 = vector.shape_cast %267 : vector<1x128x256xf32> to vector<128x256xf32>
    %cst_183 = arith.constant dense<0.000000e+00> : vector<1x256xf32>
    %269 = tpu.matmul %266, %268, %cst_183 {dimension_numbers = #tpu.dot_dimension_numbers<[1], [0], [0], [1], [0, 0, 1, 1], [], []>} : vector<1x128xf32>, vector<128x256xf32>, vector<1x256xf32> -> vector<1x256xf32>
    %270 = arith.addf %265, %269 : vector<1x256xf32>
    %271 = vector.extract_strided_slice %264 {offsets = [1, 0], sizes = [1, 128], strides = [1, 1]} : vector<16x128xf32> to vector<1x128xf32>
    %c1_184 = arith.constant 1 : index
    %c0_185 = arith.constant 0 : index
    %c0_186 = arith.constant 0 : index
    %272 = vector.load %arg20[%c1_184, %c0_185, %c0_186] : memref<16x128x256xf32, #tpu.memory_space<vmem>>, vector<1x128x256xf32>
    %273 = vector.shape_cast %272 : vector<1x128x256xf32> to vector<128x256xf32>
    %cst_187 = arith.constant dense<0.000000e+00> : vector<1x256xf32>
    %274 = tpu.matmul %271, %273, %cst_187 {dimension_numbers = #tpu.dot_dimension_numbers<[1], [0], [0], [1], [0, 0, 1, 1], [], []>} : vector<1x128xf32>, vector<128x256xf32>, vector<1x256xf32> -> vector<1x256xf32>
    %275 = arith.addf %270, %274 : vector<1x256xf32>
    %276 = vector.extract_strided_slice %264 {offsets = [2, 0], sizes = [1, 128], strides = [1, 1]} : vector<16x128xf32> to vector<1x128xf32>
    %c2_188 = arith.constant 2 : index
    %c0_189 = arith.constant 0 : index
    %c0_190 = arith.constant 0 : index
    %277 = vector.load %arg20[%c2_188, %c0_189, %c0_190] : memref<16x128x256xf32, #tpu.memory_space<vmem>>, vector<1x128x256xf32>
    %278 = vector.shape_cast %277 : vector<1x128x256xf32> to vector<128x256xf32>
    %cst_191 = arith.constant dense<0.000000e+00> : vector<1x256xf32>
    %279 = tpu.matmul %276, %278, %cst_191 {dimension_numbers = #tpu.dot_dimension_numbers<[1], [0], [0], [1], [0, 0, 1, 1], [], []>} : vector<1x128xf32>, vector<128x256xf32>, vector<1x256xf32> -> vector<1x256xf32>
    %280 = arith.addf %275, %279 : vector<1x256xf32>
    %281 = vector.extract_strided_slice %264 {offsets = [3, 0], sizes = [1, 128], strides = [1, 1]} : vector<16x128xf32> to vector<1x128xf32>
    %c3_192 = arith.constant 3 : index
    %c0_193 = arith.constant 0 : index
    %c0_194 = arith.constant 0 : index
    %282 = vector.load %arg20[%c3_192, %c0_193, %c0_194] : memref<16x128x256xf32, #tpu.memory_space<vmem>>, vector<1x128x256xf32>
    %283 = vector.shape_cast %282 : vector<1x128x256xf32> to vector<128x256xf32>
    %cst_195 = arith.constant dense<0.000000e+00> : vector<1x256xf32>
    %284 = tpu.matmul %281, %283, %cst_195 {dimension_numbers = #tpu.dot_dimension_numbers<[1], [0], [0], [1], [0, 0, 1, 1], [], []>} : vector<1x128xf32>, vector<128x256xf32>, vector<1x256xf32> -> vector<1x256xf32>
    %285 = arith.addf %280, %284 : vector<1x256xf32>
    %286 = vector.extract_strided_slice %264 {offsets = [4, 0], sizes = [1, 128], strides = [1, 1]} : vector<16x128xf32> to vector<1x128xf32>
    %c4_196 = arith.constant 4 : index
    %c0_197 = arith.constant 0 : index
    %c0_198 = arith.constant 0 : index
    %287 = vector.load %arg20[%c4_196, %c0_197, %c0_198] : memref<16x128x256xf32, #tpu.memory_space<vmem>>, vector<1x128x256xf32>
    %288 = vector.shape_cast %287 : vector<1x128x256xf32> to vector<128x256xf32>
    %cst_199 = arith.constant dense<0.000000e+00> : vector<1x256xf32>
    %289 = tpu.matmul %286, %288, %cst_199 {dimension_numbers = #tpu.dot_dimension_numbers<[1], [0], [0], [1], [0, 0, 1, 1], [], []>} : vector<1x128xf32>, vector<128x256xf32>, vector<1x256xf32> -> vector<1x256xf32>
    %290 = arith.addf %285, %289 : vector<1x256xf32>
    %291 = vector.extract_strided_slice %264 {offsets = [5, 0], sizes = [1, 128], strides = [1, 1]} : vector<16x128xf32> to vector<1x128xf32>
    %c5_200 = arith.constant 5 : index
    %c0_201 = arith.constant 0 : index
    %c0_202 = arith.constant 0 : index
    %292 = vector.load %arg20[%c5_200, %c0_201, %c0_202] : memref<16x128x256xf32, #tpu.memory_space<vmem>>, vector<1x128x256xf32>
    %293 = vector.shape_cast %292 : vector<1x128x256xf32> to vector<128x256xf32>
    %cst_203 = arith.constant dense<0.000000e+00> : vector<1x256xf32>
    %294 = tpu.matmul %291, %293, %cst_203 {dimension_numbers = #tpu.dot_dimension_numbers<[1], [0], [0], [1], [0, 0, 1, 1], [], []>} : vector<1x128xf32>, vector<128x256xf32>, vector<1x256xf32> -> vector<1x256xf32>
    %295 = arith.addf %290, %294 : vector<1x256xf32>
    %296 = vector.extract_strided_slice %264 {offsets = [6, 0], sizes = [1, 128], strides = [1, 1]} : vector<16x128xf32> to vector<1x128xf32>
    %c6_204 = arith.constant 6 : index
    %c0_205 = arith.constant 0 : index
    %c0_206 = arith.constant 0 : index
    %297 = vector.load %arg20[%c6_204, %c0_205, %c0_206] : memref<16x128x256xf32, #tpu.memory_space<vmem>>, vector<1x128x256xf32>
    %298 = vector.shape_cast %297 : vector<1x128x256xf32> to vector<128x256xf32>
    %cst_207 = arith.constant dense<0.000000e+00> : vector<1x256xf32>
    %299 = tpu.matmul %296, %298, %cst_207 {dimension_numbers = #tpu.dot_dimension_numbers<[1], [0], [0], [1], [0, 0, 1, 1], [], []>} : vector<1x128xf32>, vector<128x256xf32>, vector<1x256xf32> -> vector<1x256xf32>
    %300 = arith.addf %295, %299 : vector<1x256xf32>
    %301 = vector.extract_strided_slice %264 {offsets = [7, 0], sizes = [1, 128], strides = [1, 1]} : vector<16x128xf32> to vector<1x128xf32>
    %c7_208 = arith.constant 7 : index
    %c0_209 = arith.constant 0 : index
    %c0_210 = arith.constant 0 : index
    %302 = vector.load %arg20[%c7_208, %c0_209, %c0_210] : memref<16x128x256xf32, #tpu.memory_space<vmem>>, vector<1x128x256xf32>
    %303 = vector.shape_cast %302 : vector<1x128x256xf32> to vector<128x256xf32>
    %cst_211 = arith.constant dense<0.000000e+00> : vector<1x256xf32>
    %304 = tpu.matmul %301, %303, %cst_211 {dimension_numbers = #tpu.dot_dimension_numbers<[1], [0], [0], [1], [0, 0, 1, 1], [], []>} : vector<1x128xf32>, vector<128x256xf32>, vector<1x256xf32> -> vector<1x256xf32>
    %305 = arith.addf %300, %304 : vector<1x256xf32>
    %306 = vector.extract_strided_slice %264 {offsets = [8, 0], sizes = [1, 128], strides = [1, 1]} : vector<16x128xf32> to vector<1x128xf32>
    %c8_212 = arith.constant 8 : index
    %c0_213 = arith.constant 0 : index
    %c0_214 = arith.constant 0 : index
    %307 = vector.load %arg20[%c8_212, %c0_213, %c0_214] : memref<16x128x256xf32, #tpu.memory_space<vmem>>, vector<1x128x256xf32>
    %308 = vector.shape_cast %307 : vector<1x128x256xf32> to vector<128x256xf32>
    %cst_215 = arith.constant dense<0.000000e+00> : vector<1x256xf32>
    %309 = tpu.matmul %306, %308, %cst_215 {dimension_numbers = #tpu.dot_dimension_numbers<[1], [0], [0], [1], [0, 0, 1, 1], [], []>} : vector<1x128xf32>, vector<128x256xf32>, vector<1x256xf32> -> vector<1x256xf32>
    %310 = arith.addf %305, %309 : vector<1x256xf32>
    %311 = vector.extract_strided_slice %264 {offsets = [9, 0], sizes = [1, 128], strides = [1, 1]} : vector<16x128xf32> to vector<1x128xf32>
    %c9_216 = arith.constant 9 : index
    %c0_217 = arith.constant 0 : index
    %c0_218 = arith.constant 0 : index
    %312 = vector.load %arg20[%c9_216, %c0_217, %c0_218] : memref<16x128x256xf32, #tpu.memory_space<vmem>>, vector<1x128x256xf32>
    %313 = vector.shape_cast %312 : vector<1x128x256xf32> to vector<128x256xf32>
    %cst_219 = arith.constant dense<0.000000e+00> : vector<1x256xf32>
    %314 = tpu.matmul %311, %313, %cst_219 {dimension_numbers = #tpu.dot_dimension_numbers<[1], [0], [0], [1], [0, 0, 1, 1], [], []>} : vector<1x128xf32>, vector<128x256xf32>, vector<1x256xf32> -> vector<1x256xf32>
    %315 = arith.addf %310, %314 : vector<1x256xf32>
    %316 = vector.extract_strided_slice %264 {offsets = [10, 0], sizes = [1, 128], strides = [1, 1]} : vector<16x128xf32> to vector<1x128xf32>
    %c10_220 = arith.constant 10 : index
    %c0_221 = arith.constant 0 : index
    %c0_222 = arith.constant 0 : index
    %317 = vector.load %arg20[%c10_220, %c0_221, %c0_222] : memref<16x128x256xf32, #tpu.memory_space<vmem>>, vector<1x128x256xf32>
    %318 = vector.shape_cast %317 : vector<1x128x256xf32> to vector<128x256xf32>
    %cst_223 = arith.constant dense<0.000000e+00> : vector<1x256xf32>
    %319 = tpu.matmul %316, %318, %cst_223 {dimension_numbers = #tpu.dot_dimension_numbers<[1], [0], [0], [1], [0, 0, 1, 1], [], []>} : vector<1x128xf32>, vector<128x256xf32>, vector<1x256xf32> -> vector<1x256xf32>
    %320 = arith.addf %315, %319 : vector<1x256xf32>
    %321 = vector.extract_strided_slice %264 {offsets = [11, 0], sizes = [1, 128], strides = [1, 1]} : vector<16x128xf32> to vector<1x128xf32>
    %c11_224 = arith.constant 11 : index
    %c0_225 = arith.constant 0 : index
    %c0_226 = arith.constant 0 : index
    %322 = vector.load %arg20[%c11_224, %c0_225, %c0_226] : memref<16x128x256xf32, #tpu.memory_space<vmem>>, vector<1x128x256xf32>
    %323 = vector.shape_cast %322 : vector<1x128x256xf32> to vector<128x256xf32>
    %cst_227 = arith.constant dense<0.000000e+00> : vector<1x256xf32>
    %324 = tpu.matmul %321, %323, %cst_227 {dimension_numbers = #tpu.dot_dimension_numbers<[1], [0], [0], [1], [0, 0, 1, 1], [], []>} : vector<1x128xf32>, vector<128x256xf32>, vector<1x256xf32> -> vector<1x256xf32>
    %325 = arith.addf %320, %324 : vector<1x256xf32>
    %326 = vector.extract_strided_slice %264 {offsets = [12, 0], sizes = [1, 128], strides = [1, 1]} : vector<16x128xf32> to vector<1x128xf32>
    %c12_228 = arith.constant 12 : index
    %c0_229 = arith.constant 0 : index
    %c0_230 = arith.constant 0 : index
    %327 = vector.load %arg20[%c12_228, %c0_229, %c0_230] : memref<16x128x256xf32, #tpu.memory_space<vmem>>, vector<1x128x256xf32>
    %328 = vector.shape_cast %327 : vector<1x128x256xf32> to vector<128x256xf32>
    %cst_231 = arith.constant dense<0.000000e+00> : vector<1x256xf32>
    %329 = tpu.matmul %326, %328, %cst_231 {dimension_numbers = #tpu.dot_dimension_numbers<[1], [0], [0], [1], [0, 0, 1, 1], [], []>} : vector<1x128xf32>, vector<128x256xf32>, vector<1x256xf32> -> vector<1x256xf32>
    %330 = arith.addf %325, %329 : vector<1x256xf32>
    %331 = vector.extract_strided_slice %264 {offsets = [13, 0], sizes = [1, 128], strides = [1, 1]} : vector<16x128xf32> to vector<1x128xf32>
    %c13_232 = arith.constant 13 : index
    %c0_233 = arith.constant 0 : index
    %c0_234 = arith.constant 0 : index
    %332 = vector.load %arg20[%c13_232, %c0_233, %c0_234] : memref<16x128x256xf32, #tpu.memory_space<vmem>>, vector<1x128x256xf32>
    %333 = vector.shape_cast %332 : vector<1x128x256xf32> to vector<128x256xf32>
    %cst_235 = arith.constant dense<0.000000e+00> : vector<1x256xf32>
    %334 = tpu.matmul %331, %333, %cst_235 {dimension_numbers = #tpu.dot_dimension_numbers<[1], [0], [0], [1], [0, 0, 1, 1], [], []>} : vector<1x128xf32>, vector<128x256xf32>, vector<1x256xf32> -> vector<1x256xf32>
    %335 = arith.addf %330, %334 : vector<1x256xf32>
    %336 = vector.extract_strided_slice %264 {offsets = [14, 0], sizes = [1, 128], strides = [1, 1]} : vector<16x128xf32> to vector<1x128xf32>
    %c14_236 = arith.constant 14 : index
    %c0_237 = arith.constant 0 : index
    %c0_238 = arith.constant 0 : index
    %337 = vector.load %arg20[%c14_236, %c0_237, %c0_238] : memref<16x128x256xf32, #tpu.memory_space<vmem>>, vector<1x128x256xf32>
    %338 = vector.shape_cast %337 : vector<1x128x256xf32> to vector<128x256xf32>
    %cst_239 = arith.constant dense<0.000000e+00> : vector<1x256xf32>
    %339 = tpu.matmul %336, %338, %cst_239 {dimension_numbers = #tpu.dot_dimension_numbers<[1], [0], [0], [1], [0, 0, 1, 1], [], []>} : vector<1x128xf32>, vector<128x256xf32>, vector<1x256xf32> -> vector<1x256xf32>
    %340 = arith.addf %335, %339 : vector<1x256xf32>
    %341 = vector.extract_strided_slice %264 {offsets = [15, 0], sizes = [1, 128], strides = [1, 1]} : vector<16x128xf32> to vector<1x128xf32>
    %c15_240 = arith.constant 15 : index
    %c0_241 = arith.constant 0 : index
    %c0_242 = arith.constant 0 : index
    %342 = vector.load %arg20[%c15_240, %c0_241, %c0_242] : memref<16x128x256xf32, #tpu.memory_space<vmem>>, vector<1x128x256xf32>
    %343 = vector.shape_cast %342 : vector<1x128x256xf32> to vector<128x256xf32>
    %cst_243 = arith.constant dense<0.000000e+00> : vector<1x256xf32>
    %344 = tpu.matmul %341, %343, %cst_243 {dimension_numbers = #tpu.dot_dimension_numbers<[1], [0], [0], [1], [0, 0, 1, 1], [], []>} : vector<1x128xf32>, vector<128x256xf32>, vector<1x256xf32> -> vector<1x256xf32>
    %345 = arith.addf %340, %344 : vector<1x256xf32>
    %c0_244 = arith.constant 0 : index
    %c0_245 = arith.constant 0 : index
    %346 = vector.load %arg21[%c0_244, %c0_245] : memref<1x256xf32, #tpu.memory_space<vmem>>, vector<1x256xf32>
    %347 = arith.addf %345, %346 : vector<1x256xf32>
    %c3_246 = arith.constant 3 : index
    %348 = memref.load %arg25[%c3_246] : memref<4xf32, #tpu.memory_space<smem>>
    %cst_247 = arith.constant dense<0.000000e+00> : vector<256xf32>
    %349 = vector.multi_reduction <add>, %347, %cst_247 [0] : vector<1x256xf32> to vector<256xf32>
    %350 = vector.shape_cast %349 : vector<256xf32> to vector<1x256xf32>
    %c0_248 = arith.constant 0 : index
    %c0_249 = arith.constant 0 : index
    %351 = vector.load %arg24[%c0_248, %c0_249] : memref<256x256xf32, #tpu.memory_space<vmem>>, vector<256x256xf32>
    %cst_250 = arith.constant dense<0.000000e+00> : vector<1x256xf32>
    %352 = tpu.matmul %350, %351, %cst_250 {dimension_numbers = #tpu.dot_dimension_numbers<[1], [0], [0], [1], [0, 0, 1, 1], [], []>} : vector<1x256xf32>, vector<256x256xf32>, vector<1x256xf32> -> vector<1x256xf32>
    %353 = arith.subf %347, %352 : vector<1x256xf32>
    %354 = arith.mulf %353, %353 : vector<1x256xf32>
    %cst_251 = arith.constant dense<0.000000e+00> : vector<256xf32>
    %355 = vector.multi_reduction <add>, %354, %cst_251 [0] : vector<1x256xf32> to vector<256xf32>
    %356 = vector.shape_cast %355 : vector<256xf32> to vector<1x256xf32>
    %c0_252 = arith.constant 0 : index
    %c0_253 = arith.constant 0 : index
    %357 = vector.load %arg24[%c0_252, %c0_253] : memref<256x256xf32, #tpu.memory_space<vmem>>, vector<256x256xf32>
    %cst_254 = arith.constant dense<0.000000e+00> : vector<1x256xf32>
    %358 = tpu.matmul %356, %357, %cst_254 {dimension_numbers = #tpu.dot_dimension_numbers<[1], [0], [0], [1], [0, 0, 1, 1], [], []>} : vector<1x256xf32>, vector<256x256xf32>, vector<1x256xf32> -> vector<1x256xf32>
    %cst_255 = arith.constant 9.99999974E-6 : f32
    %359 = vector.broadcast %cst_255 : f32 to vector<1x256xf32>
    %360 = arith.addf %358, %359 : vector<1x256xf32>
    %361 = math.rsqrt %360 : vector<1x256xf32>
    %362 = arith.mulf %353, %361 : vector<1x256xf32>
    %c0_256 = arith.constant 0 : index
    %c0_257 = arith.constant 0 : index
    %363 = vector.load %arg22[%c0_256, %c0_257] : memref<1x256xf32, #tpu.memory_space<vmem>>, vector<1x256xf32>
    %364 = arith.mulf %362, %363 : vector<1x256xf32>
    %c0_258 = arith.constant 0 : index
    %c0_259 = arith.constant 0 : index
    %365 = vector.load %arg23[%c0_258, %c0_259] : memref<1x256xf32, #tpu.memory_space<vmem>>, vector<1x256xf32>
    %366 = arith.addf %364, %365 : vector<1x256xf32>
    %cst_260 = arith.constant 0.000000e+00 : f32
    %367 = vector.broadcast %cst_260 : f32 to vector<1x256xf32>
    %368 = arith.cmpf oge, %366, %367 : vector<1x256xf32>
    %369 = vector.broadcast %348 : f32 to vector<1x256xf32>
    %370 = arith.mulf %369, %366 : vector<1x256xf32>
    %371 = arith.select %368, %366, %370 : vector<1x256xi1>, vector<1x256xf32>
    %c0_261 = arith.constant 0 : index
    %c0_262 = arith.constant 0 : index
    %372 = vector.load %arg26[%c0_261, %c0_262] : memref<256x1xf32, #tpu.memory_space<vmem>>, vector<256x1xf32>
    %cst_263 = arith.constant dense<0.000000e+00> : vector<1x1xf32>
    %373 = tpu.matmul %371, %372, %cst_263 {dimension_numbers = #tpu.dot_dimension_numbers<[1], [0], [0], [1], [0, 0, 1, 1], [], []>} : vector<1x256xf32>, vector<256x1xf32>, vector<1x1xf32> -> vector<1x1xf32>
    %c0_264 = arith.constant 0 : index
    %c0_265 = arith.constant 0 : index
    %374 = vector.load %arg27[%c0_264, %c0_265] : memref<1x1xf32, #tpu.memory_space<vmem>>, vector<1x1xf32>
    %375 = arith.addf %373, %374 : vector<1x1xf32>
    %c0_266 = arith.constant 0 : index
    %c0_267 = arith.constant 0 : index
    %c0_268 = arith.constant 0 : index
    %376 = vector.load %arg28[%c0_266, %c0_267, %c0_268] : memref<1x1x1xf32, #tpu.memory_space<vmem>>, vector<1x1x1xf32>
    %377 = vector.shape_cast %376 : vector<1x1x1xf32> to vector<1x1xf32>
    %378 = vector.shape_cast %375 : vector<1x1xf32> to vector<1x1x1xf32>
    tpu.vector_store %arg28[%c0_266, %c0_267, %c0_268], %378 {strides = array<i32>} : memref<1x1x1xf32, #tpu.memory_space<vmem>>, vector<1x1x1xf32>,
    return
  }
  func.func @transform_0(%arg0: i32) -> (i32, i32, i32) {
    %c0_i32 = arith.constant 0 : i32
    %c0_i32_0 = arith.constant 0 : i32
    %c0_i32_1 = arith.constant 0 : i32
    return %arg0, %c0_i32, %c0_i32_0 : i32, i32, i32
  }
  func.func @transform_1(%arg0: i32) -> (i32, i32) {
    %c0_i32 = arith.constant 0 : i32
    %c0_i32_0 = arith.constant 0 : i32
    %c0_i32_1 = arith.constant 0 : i32
    return %c0_i32, %c0_i32_0 : i32, i32
  }
  func.func @transform_2(%arg0: i32) -> (i32, i32) {
    %c0_i32 = arith.constant 0 : i32
    %c0_i32_0 = arith.constant 0 : i32
    %c0_i32_1 = arith.constant 0 : i32
    return %c0_i32, %c0_i32_0 : i32, i32
  }
  func.func @transform_3(%arg0: i32) -> (i32, i32) {
    %c0_i32 = arith.constant 0 : i32
    %c0_i32_0 = arith.constant 0 : i32
    %c0_i32_1 = arith.constant 0 : i32
    return %c0_i32, %c0_i32_0 : i32, i32
  }
  func.func @transform_4(%arg0: i32) -> (i32, i32) {
    %c0_i32 = arith.constant 0 : i32
    %c0_i32_0 = arith.constant 0 : i32
    %c0_i32_1 = arith.constant 0 : i32
    return %c0_i32, %c0_i32_0 : i32, i32
  }
  func.func @transform_5(%arg0: i32) -> (i32, i32) {
    %c0_i32 = arith.constant 0 : i32
    %c0_i32_0 = arith.constant 0 : i32
    %c0_i32_1 = arith.constant 0 : i32
    return %c0_i32, %c0_i32_0 : i32, i32
  }
  func.func @transform_6(%arg0: i32) -> (i32, i32) {
    %c0_i32 = arith.constant 0 : i32
    %c0_i32_0 = arith.constant 0 : i32
    %c0_i32_1 = arith.constant 0 : i32
    return %c0_i32, %c0_i32_0 : i32, i32
  }
  func.func @transform_7(%arg0: i32) -> (i32, i32, i32) {
    %c0_i32 = arith.constant 0 : i32
    %c0_i32_0 = arith.constant 0 : i32
    %c0_i32_1 = arith.constant 0 : i32
    %c0_i32_2 = arith.constant 0 : i32
    return %c0_i32, %c0_i32_0, %c0_i32_1 : i32, i32, i32
  }
  func.func @transform_8(%arg0: i32) -> (i32, i32) {
    %c0_i32 = arith.constant 0 : i32
    %c0_i32_0 = arith.constant 0 : i32
    %c0_i32_1 = arith.constant 0 : i32
    return %c0_i32, %c0_i32_0 : i32, i32
  }
  func.func @transform_9(%arg0: i32) -> (i32, i32) {
    %c0_i32 = arith.constant 0 : i32
    %c0_i32_0 = arith.constant 0 : i32
    %c0_i32_1 = arith.constant 0 : i32
    return %c0_i32, %c0_i32_0 : i32, i32
  }
  func.func @transform_10(%arg0: i32) -> (i32, i32) {
    %c0_i32 = arith.constant 0 : i32
    %c0_i32_0 = arith.constant 0 : i32
    %c0_i32_1 = arith.constant 0 : i32
    return %c0_i32, %c0_i32_0 : i32, i32
  }
  func.func @transform_11(%arg0: i32) -> (i32, i32) {
    %c0_i32 = arith.constant 0 : i32
    %c0_i32_0 = arith.constant 0 : i32
    %c0_i32_1 = arith.constant 0 : i32
    return %c0_i32, %c0_i32_0 : i32, i32
  }
  func.func @transform_12(%arg0: i32) -> (i32, i32) {
    %c0_i32 = arith.constant 0 : i32
    %c0_i32_0 = arith.constant 0 : i32
    %c0_i32_1 = arith.constant 0 : i32
    return %c0_i32, %c0_i32_0 : i32, i32
  }
  func.func @transform_13(%arg0: i32) -> (i32, i32, i32) {
    %c0_i32 = arith.constant 0 : i32
    %c0_i32_0 = arith.constant 0 : i32
    %c0_i32_1 = arith.constant 0 : i32
    %c0_i32_2 = arith.constant 0 : i32
    return %c0_i32, %c0_i32_0, %c0_i32_1 : i32, i32, i32
  }
  func.func @transform_14(%arg0: i32) -> (i32, i32) {
    %c0_i32 = arith.constant 0 : i32
    %c0_i32_0 = arith.constant 0 : i32
    %c0_i32_1 = arith.constant 0 : i32
    return %c0_i32, %c0_i32_0 : i32, i32
  }
  func.func @transform_15(%arg0: i32) -> (i32, i32) {
    %c0_i32 = arith.constant 0 : i32
    %c0_i32_0 = arith.constant 0 : i32
    %c0_i32_1 = arith.constant 0 : i32
    return %c0_i32, %c0_i32_0 : i32, i32
  }
  func.func @transform_16(%arg0: i32) -> (i32, i32) {
    %c0_i32 = arith.constant 0 : i32
    %c0_i32_0 = arith.constant 0 : i32
    %c0_i32_1 = arith.constant 0 : i32
    return %c0_i32, %c0_i32_0 : i32, i32
  }
  func.func @transform_17(%arg0: i32) -> (i32, i32) {
    %c0_i32 = arith.constant 0 : i32
    %c0_i32_0 = arith.constant 0 : i32
    %c0_i32_1 = arith.constant 0 : i32
    return %c0_i32, %c0_i32_0 : i32, i32
  }
  func.func @transform_18(%arg0: i32) -> (i32, i32) {
    %c0_i32 = arith.constant 0 : i32
    %c0_i32_0 = arith.constant 0 : i32
    %c0_i32_1 = arith.constant 0 : i32
    return %c0_i32, %c0_i32_0 : i32, i32
  }
  func.func @transform_19(%arg0: i32) -> (i32, i32, i32) {
    %c0_i32 = arith.constant 0 : i32
    %c0_i32_0 = arith.constant 0 : i32
    %c0_i32_1 = arith.constant 0 : i32
    %c0_i32_2 = arith.constant 0 : i32
    return %c0_i32, %c0_i32_0, %c0_i32_1 : i32, i32, i32
  }
  func.func @transform_20(%arg0: i32) -> (i32, i32) {
    %c0_i32 = arith.constant 0 : i32
    %c0_i32_0 = arith.constant 0 : i32
    %c0_i32_1 = arith.constant 0 : i32
    return %c0_i32, %c0_i32_0 : i32, i32
  }
  func.func @transform_21(%arg0: i32) -> (i32, i32) {
    %c0_i32 = arith.constant 0 : i32
    %c0_i32_0 = arith.constant 0 : i32
    %c0_i32_1 = arith.constant 0 : i32
    return %c0_i32, %c0_i32_0 : i32, i32
  }
  func.func @transform_22(%arg0: i32) -> (i32, i32) {
    %c0_i32 = arith.constant 0 : i32
    %c0_i32_0 = arith.constant 0 : i32
    %c0_i32_1 = arith.constant 0 : i32
    return %c0_i32, %c0_i32_0 : i32, i32
  }
  func.func @transform_23(%arg0: i32) -> (i32, i32) {
    %c0_i32 = arith.constant 0 : i32
    %c0_i32_0 = arith.constant 0 : i32
    %c0_i32_1 = arith.constant 0 : i32
    return %c0_i32, %c0_i32_0 : i32, i32
  }
  func.func @transform_24(%arg0: i32) -> i32 {
    %c0_i32 = arith.constant 0 : i32
    %c0_i32_0 = arith.constant 0 : i32
    return %c0_i32 : i32
  }
  func.func @transform_25(%arg0: i32) -> (i32, i32) {
    %c0_i32 = arith.constant 0 : i32
    %c0_i32_0 = arith.constant 0 : i32
    %c0_i32_1 = arith.constant 0 : i32
    return %c0_i32, %c0_i32_0 : i32, i32
  }
  func.func @transform_26(%arg0: i32) -> (i32, i32) {
    %c0_i32 = arith.constant 0 : i32
    %c0_i32_0 = arith.constant 0 : i32
    %c0_i32_1 = arith.constant 0 : i32
    return %c0_i32, %c0_i32_0 : i32, i32
  }
  func.func @transform_27(%arg0: i32) -> (i32, i32, i32) {
    %c0_i32 = arith.constant 0 : i32
    %c0_i32_0 = arith.constant 0 : i32
    %c0_i32_1 = arith.constant 0 : i32
    return %arg0, %c0_i32, %c0_i32_0 : i32, i32, i32
  }
}

</mosaic_0001>

<llo_original>
// kernel: patchgan_forward.1
$region0: #{patchgan_forward.1}
  #allocation0 [shape = 'u32[]', space=smem, size = 0x4, offset = 0x4, fixed_abs, tag = 'smem constant byte address 0x4 - core index']
  #allocation1 [shape = 'u32[72,128]{1,0:T(1,128)}', space=vmem, size = 0x9000, scoped, tag = 'internal scratch']
  #allocation2 [shape = 'f32[1,1]{1,0:T(1,128)S(1)}', space=vmem, size = 0x200, scoped, tag = 'scoped memory for patchgan_forward.1']
  %s0 = inlined_call_operand.vmem [shape: f32[2,64,64], index: 0, kind: input, shape index: {}]
  %s1 = inlined_call_operand.vmem [shape: f32[64,32], index: 1, kind: input, shape index: {}]
  %s2 = inlined_call_operand.vmem [shape: f32[1,32], index: 2, kind: input, shape index: {}]
  %s3 = inlined_call_operand.vmem [shape: f32[1,32], index: 3, kind: input, shape index: {}]
  %s4 = inlined_call_operand.vmem [shape: f32[1,32], index: 4, kind: input, shape index: {}]
  %s5 = inlined_call_operand.vmem [shape: f32[32,32], index: 5, kind: input, shape index: {}]
  %s6 = inlined_call_operand.vmem [shape: f32[256,64], index: 6, kind: input, shape index: {}]
  %s7 = inlined_call_operand.vmem [shape: f32[16,32,64], index: 7, kind: input, shape index: {}]
  %s8 = inlined_call_operand.vmem [shape: f32[1,64], index: 8, kind: input, shape index: {}]
  %s9 = inlined_call_operand.vmem [shape: f32[1,64], index: 9, kind: input, shape index: {}]
  %s10 = inlined_call_operand.vmem [shape: f32[1,64], index: 10, kind: input, shape index: {}]
  %s11 = inlined_call_operand.vmem [shape: f32[64,64], index: 11, kind: input, shape index: {}]
  %s12 = inlined_call_operand.vmem [shape: f32[64,16], index: 12, kind: input, shape index: {}]
  %s13 = inlined_call_operand.vmem [shape: f32[16,64,128], index: 13, kind: input, shape index: {}]
  %s14 = inlined_call_operand.vmem [shape: f32[1,128], index: 14, kind: input, shape index: {}]
  %s15 = inlined_call_operand.vmem [shape: f32[1,128], index: 15, kind: input, shape index: {}]
  %s16 = inlined_call_operand.vmem [shape: f32[1,128], index: 16, kind: input, shape index: {}]
  %s17 = inlined_call_operand.vmem [shape: f32[128,128], index: 17, kind: input, shape index: {}]
  %s18 = inlined_call_operand.vmem [shape: f32[16,4], index: 18, kind: input, shape index: {}]
  %s19 = inlined_call_operand.vmem [shape: f32[16,128,256], index: 19, kind: input, shape index: {}]
  %s20 = inlined_call_operand.vmem [shape: f32[1,256], index: 20, kind: input, shape index: {}]
  %s21 = inlined_call_operand.vmem [shape: f32[1,256], index: 21, kind: input, shape index: {}]
  %s22 = inlined_call_operand.vmem [shape: f32[1,256], index: 22, kind: input, shape index: {}]
  %s23 = inlined_call_operand.vmem [shape: f32[256,256], index: 23, kind: input, shape index: {}]
  %s24 = inlined_call_operand.vmem [shape: f32[4], index: 24, kind: input, shape index: {}]
  %s25 = inlined_call_operand.vmem [shape: f32[256,1], index: 25, kind: input, shape index: {}]
  %s26 = inlined_call_operand.<no memory space> [shape: f32[1,1], index: 26, kind: input, shape index: {}]
  %s27 = inlined_call_operand.vmem [shape: f32[2,1,1], index: 27, kind: output, shape index: {}]
  %s28 = sld [smem:[#allocation0]]
  $region145: #{patchgan_forward.1} parent=0
    _
  %s30 = ssub.s32 1, %s28
  %s31 = scalar_select 0, %s30, %s28
  %v32 = vstv %s26
  %33 = vst [vmem:[#allocation2] sm:$0x1] %v32
  $region1: #{patchgan_forward.1} parent=0
    #allocation3 [shape = 'u8[512]{0}', space=smem, size = 0x200, scoped, tag = 'input window, operand 24, single buffered']
    #allocation4 [shape = 's32[2]{0}', space=sflag, size = 0x8, scoped, tag = 'scoped memory for patchgan_forward.1']
    %34 = vsyncpa [#allocation4], 0
    loop: start=0, step=1, limit=4
    $region2: #{patchgan_forward.1} parent=1 // loop_pre_header
      _
    $region3: #{patchgan_forward.1} parent=1 // loop_header
      %s36 = sphi 0, %s40
      %p37 = scmp.ge.s32.totalorder %s36, 4
      %s46 = sphi 0, %s48
      %s49 = sphi 0, %s46
      %s50 = sphi 0, %s49
      %s66 = sphi 0, %s50
      %s70 = sphi 0, %s70
      %s72 = sphi 0, %s70
      %s73 = sphi 0, %s72
      %s87 = sphi 0, %s73
      %s91 = sphi 0, %s91
      %s93 = sphi 0, %s91
      %s94 = sphi 0, %s93
      %s108 = sphi 0, %s94
      %s112 = sphi 0, %s112
      %s114 = sphi 0, %s112
      %s115 = sphi 0, %s114
      %s129 = sphi 0, %s115
      %s133 = sphi 0, %s133
      %s135 = sphi 0, %s133
      %s136 = sphi 0, %s135
      %s150 = sphi 0, %s136
      %s154 = sphi 0, %s154
      %s156 = sphi 0, %s154
      %s157 = sphi 0, %s156
      %s171 = sphi 0, %s157
      %s175 = sphi 0, %s175
      %s177 = sphi 0, %s175
      %s178 = sphi 0, %s177
      %s192 = sphi 0, %s178
      %s196 = sphi 0, %s196
      %s198 = sphi 0, %s196
      %s199 = sphi 0, %s198
      %s213 = sphi 0, %s199
      %s217 = sphi 0, %s217
      %s219 = sphi 0, %s217
      %s220 = sphi 0, %s219
      %s234 = sphi 0, %s220
      %s238 = sphi 0, %s238
      %s240 = sphi 0, %s238
      %s241 = sphi 0, %s240
      %s255 = sphi 0, %s241
      %s259 = sphi 0, %s259
      %s261 = sphi 0, %s259
      %s262 = sphi 0, %s261
      %s276 = sphi 0, %s262
      %s280 = sphi 0, %s280
      %s282 = sphi 0, %s280
      %s283 = sphi 0, %s282
      %s297 = sphi 0, %s283
      %s301 = sphi 0, %s301
      %s303 = sphi 0, %s301
      %s304 = sphi 0, %s303
      %s318 = sphi 0, %s304
      %s322 = sphi 0, %s322
      %s324 = sphi 0, %s322
      %s325 = sphi 0, %s324
      %s339 = sphi 0, %s325
      %s343 = sphi 0, %s343
      %s345 = sphi 0, %s343
      %s346 = sphi 0, %s345
      %s360 = sphi 0, %s346
      %s364 = sphi 0, %s364
      %s366 = sphi 0, %s364
      %s367 = sphi 0, %s366
      %s381 = sphi 0, %s367
      %s385 = sphi 0, %s385
      %s387 = sphi 0, %s385
      %s388 = sphi 0, %s387
      %s402 = sphi 0, %s388
      %s406 = sphi 0, %s406
      %s408 = sphi 0, %s406
      %s409 = sphi 0, %s408
      %s423 = sphi 0, %s409
      %s427 = sphi 0, %s427
      %s429 = sphi 0, %s427
      %s430 = sphi 0, %s429
      %s444 = sphi 0, %s430
      %s448 = sphi 0, %s448
      %s450 = sphi 0, %s448
      %s451 = sphi 0, %s450
      %s465 = sphi 0, %s451
      %s469 = sphi 0, %s469
      %s471 = sphi 0, %s469
      %s472 = sphi 0, %s471
      %s486 = sphi 0, %s472
      %s490 = sphi 0, %s490
      %s492 = sphi 0, %s490
      %s493 = sphi 0, %s492
      %s507 = sphi 0, %s493
      %s511 = sphi 0, %s511
      %s513 = sphi 0, %s511
      %s514 = sphi 0, %s513
      %s528 = sphi 0, %s514
      %s532 = sphi 0, %s532
      %s534 = sphi 0, %s532
      %s535 = sphi 0, %s534
      %s549 = sphi 0, %s535
      %s553 = sphi 0, %s553
      %s555 = sphi 0, %s553
      %s556 = sphi 0, %s555
      %s570 = sphi 0, %s556
      %s574 = sphi 0, %s574
      %s576 = sphi 0, %s574
      %s577 = sphi 0, %s576
      %s591 = sphi 0, %s577
      %s595 = sphi 0, %s595
      %s597 = sphi 0, %s595
      %s598 = sphi 0, %s597
      %s612 = sphi 0, %s598
      %s618 = sphi 0, %s620
      %s621 = sphi 0, %s618
      %s622 = sphi 0, %s621
      %s638 = sphi 0, %s622
    $region4: #{patchgan_forward.1} parent=1 // loop_header_branch
      %39 = sbr.rel (%p37) target = $region8
    $region5: #{patchgan_forward.1} parent=1 // loop_body
      %s41 = ssub.s32 %s36, 1
      %s42 = ssub.s32 %s36, 2
      %s43 = sadd.s32 %s36, 1
      %s44 = ssub.s32 %s36, %s43
      %p45 = scmp.eq.s32.totalorder %s44, 0
      %s47 = sadd.s32 %s46, 1
      %s48 = scalar_select %p45, %s46, %s47
      %p51 = pneg %p45
      %p52 = scmp.eq.s32.totalorder %s36, 1
      %p53 = por %p51, %p52
      %p54 = scmp.ne.s32.totalorder %s46, %s49
      %p55 = scmp.eq.s32.totalorder %s36, 0
      %p56 = por %p54, %p55
      %p57 = scmp.ne.s32.totalorder %s46, %s49
      %p58 = scmp.eq.s32.totalorder %s41, 1
      %p59 = por %p57, %p58
      %p60 = scmp.ne.s32.totalorder %s49, %s50
      %p61 = scmp.eq.s32.totalorder %s41, 0
      %p62 = por %p60, %p61
      %p63 = scmp.ne.s32.totalorder %s49, %s50
      %p64 = scmp.eq.s32.totalorder %s42, 1
      %p65 = por %p63, %p64
      %p67 = scmp.ne.s32.totalorder %s50, %s66
      %p68 = scmp.eq.s32.totalorder %s42, 0
      %p69 = por %p67, %p68
      %s71 = sadd.s32 %s70, 1
      %p74 = scmp.eq.s32.totalorder %s36, 1
      %p75 = scmp.ne.s32.totalorder %s70, %s72
      %p76 = scmp.eq.s32.totalorder %s36, 0
      %p77 = por %p75, %p76
      %p78 = scmp.ne.s32.totalorder %s70, %s72
      %p79 = scmp.eq.s32.totalorder %s41, 1
      %p80 = por %p78, %p79
      %p81 = scmp.ne.s32.totalorder %s72, %s73
      %p82 = scmp.eq.s32.totalorder %s41, 0
      %p83 = por %p81, %p82
      %p84 = scmp.ne.s32.totalorder %s72, %s73
      %p85 = scmp.eq.s32.totalorder %s42, 1
      %p86 = por %p84, %p85
      %p88 = scmp.ne.s32.totalorder %s73, %s87
      %p89 = scmp.eq.s32.totalorder %s42, 0
      %p90 = por %p88, %p89
      %s92 = sadd.s32 %s91, 1
      %p95 = scmp.eq.s32.totalorder %s36, 1
      %p96 = scmp.ne.s32.totalorder %s91, %s93
      %p97 = scmp.eq.s32.totalorder %s36, 0
      %p98 = por %p96, %p97
      %p99 = scmp.ne.s32.totalorder %s91, %s93
      %p100 = scmp.eq.s32.totalorder %s41, 1
      %p101 = por %p99, %p100
      %p102 = scmp.ne.s32.totalorder %s93, %s94
      %p103 = scmp.eq.s32.totalorder %s41, 0
      %p104 = por %p102, %p103
      %p105 = scmp.ne.s32.totalorder %s93, %s94
      %p106 = scmp.eq.s32.totalorder %s42, 1
      %p107 = por %p105, %p106
      %p109 = scmp.ne.s32.totalorder %s94, %s108
      %p110 = scmp.eq.s32.totalorder %s42, 0
      %p111 = por %p109, %p110
      %s113 = sadd.s32 %s112, 1
      %p116 = scmp.eq.s32.totalorder %s36, 1
      %p117 = scmp.ne.s32.totalorder %s112, %s114
      %p118 = scmp.eq.s32.totalorder %s36, 0
      %p119 = por %p117, %p118
      %p120 = scmp.ne.s32.totalorder %s112, %s114
      %p121 = scmp.eq.s32.totalorder %s41, 1
      %p122 = por %p120, %p121
      %p123 = scmp.ne.s32.totalorder %s114, %s115
      %p124 = scmp.eq.s32.totalorder %s41, 0
      %p125 = por %p123, %p124
      %p126 = scmp.ne.s32.totalorder %s114, %s115
      %p127 = scmp.eq.s32.totalorder %s42, 1
      %p128 = por %p126, %p127
      %p130 = scmp.ne.s32.totalorder %s115, %s129
      %p131 = scmp.eq.s32.totalorder %s42, 0
      %p132 = por %p130, %p131
      %s134 = sadd.s32 %s133, 1
      %p137 = scmp.eq.s32.totalorder %s36, 1
      %p138 = scmp.ne.s32.totalorder %s133, %s135
      %p139 = scmp.eq.s32.totalorder %s36, 0
      %p140 = por %p138, %p139
      %p141 = scmp.ne.s32.totalorder %s133, %s135
      %p142 = scmp.eq.s32.totalorder %s41, 1
      %p143 = por %p141, %p142
      %p144 = scmp.ne.s32.totalorder %s135, %s136
      %p145 = scmp.eq.s32.totalorder %s41, 0
      %p146 = por %p144, %p145
      %p147 = scmp.ne.s32.totalorder %s135, %s136
      %p148 = scmp.eq.s32.totalorder %s42, 1
      %p149 = por %p147, %p148
      %p151 = scmp.ne.s32.totalorder %s136, %s150
      %p152 = scmp.eq.s32.totalorder %s42, 0
      %p153 = por %p151, %p152
      %s155 = sadd.s32 %s154, 1
      %p158 = scmp.eq.s32.totalorder %s36, 1
      %p159 = scmp.ne.s32.totalorder %s154, %s156
      %p160 = scmp.eq.s32.totalorder %s36, 0
      %p161 = por %p159, %p160
      %p162 = scmp.ne.s32.totalorder %s154, %s156
      %p163 = scmp.eq.s32.totalorder %s41, 1
      %p164 = por %p162, %p163
      %p165 = scmp.ne.s32.totalorder %s156, %s157
      %p166 = scmp.eq.s32.totalorder %s41, 0
      %p167 = por %p165, %p166
      %p168 = scmp.ne.s32.totalorder %s156, %s157
      %p169 = scmp.eq.s32.totalorder %s42, 1
      %p170 = por %p168, %p169
      %p172 = scmp.ne.s32.totalorder %s157, %s171
      %p173 = scmp.eq.s32.totalorder %s42, 0
      %p174 = por %p172, %p173
      %s176 = sadd.s32 %s175, 1
      %p179 = scmp.eq.s32.totalorder %s36, 1
      %p180 = scmp.ne.s32.totalorder %s175, %s177
      %p181 = scmp.eq.s32.totalorder %s36, 0
      %p182 = por %p180, %p181
      %p183 = scmp.ne.s32.totalorder %s175, %s177
      %p184 = scmp.eq.s32.totalorder %s41, 1
      %p185 = por %p183, %p184
      %p186 = scmp.ne.s32.totalorder %s177, %s178
      %p187 = scmp.eq.s32.totalorder %s41, 0
      %p188 = por %p186, %p187
      %p189 = scmp.ne.s32.totalorder %s177, %s178
      %p190 = scmp.eq.s32.totalorder %s42, 1
      %p191 = por %p189, %p190
      %p193 = scmp.ne.s32.totalorder %s178, %s192
      %p194 = scmp.eq.s32.totalorder %s42, 0
      %p195 = por %p193, %p194
      %s197 = sadd.s32 %s196, 1
      %p200 = scmp.eq.s32.totalorder %s36, 1
      %p201 = scmp.ne.s32.totalorder %s196, %s198
      %p202 = scmp.eq.s32.totalorder %s36, 0
      %p203 = por %p201, %p202
      %p204 = scmp.ne.s32.totalorder %s196, %s198
      %p205 = scmp.eq.s32.totalorder %s41, 1
      %p206 = por %p204, %p205
      %p207 = scmp.ne.s32.totalorder %s198, %s199
      %p208 = scmp.eq.s32.totalorder %s41, 0
      %p209 = por %p207, %p208
      %p210 = scmp.ne.s32.totalorder %s198, %s199
      %p211 = scmp.eq.s32.totalorder %s42, 1
      %p212 = por %p210, %p211
      %p214 = scmp.ne.s32.totalorder %s199, %s213
      %p215 = scmp.eq.s32.totalorder %s42, 0
      %p216 = por %p214, %p215
      %s218 = sadd.s32 %s217, 1
      %p221 = scmp.eq.s32.totalorder %s36, 1
      %p222 = scmp.ne.s32.totalorder %s217, %s219
      %p223 = scmp.eq.s32.totalorder %s36, 0
      %p224 = por %p222, %p223
      %p225 = scmp.ne.s32.totalorder %s217, %s219
      %p226 = scmp.eq.s32.totalorder %s41, 1
      %p227 = por %p225, %p226
      %p228 = scmp.ne.s32.totalorder %s219, %s220
      %p229 = scmp.eq.s32.totalorder %s41, 0
      %p230 = por %p228, %p229
      %p231 = scmp.ne.s32.totalorder %s219, %s220
      %p232 = scmp.eq.s32.totalorder %s42, 1
      %p233 = por %p231, %p232
      %p235 = scmp.ne.s32.totalorder %s220, %s234
      %p236 = scmp.eq.s32.totalorder %s42, 0
      %p237 = por %p235, %p236
      %s239 = sadd.s32 %s238, 1
      %p242 = scmp.eq.s32.totalorder %s36, 1
      %p243 = scmp.ne.s32.totalorder %s238, %s240
      %p244 = scmp.eq.s32.totalorder %s36, 0
      %p245 = por %p243, %p244
      %p246 = scmp.ne.s32.totalorder %s238, %s240
      %p247 = scmp.eq.s32.totalorder %s41, 1
      %p248 = por %p246, %p247
      %p249 = scmp.ne.s32.totalorder %s240, %s241
      %p250 = scmp.eq.s32.totalorder %s41, 0
      %p251 = por %p249, %p250
      %p252 = scmp.ne.s32.totalorder %s240, %s241
      %p253 = scmp.eq.s32.totalorder %s42, 1
      %p254 = por %p252, %p253
      %p256 = scmp.ne.s32.totalorder %s241, %s255
      %p257 = scmp.eq.s32.totalorder %s42, 0
      %p258 = por %p256, %p257
      %s260 = sadd.s32 %s259, 1
      %p263 = scmp.eq.s32.totalorder %s36, 1
      %p264 = scmp.ne.s32.totalorder %s259, %s261
      %p265 = scmp.eq.s32.totalorder %s36, 0
      %p266 = por %p264, %p265
      %p267 = scmp.ne.s32.totalorder %s259, %s261
      %p268 = scmp.eq.s32.totalorder %s41, 1
      %p269 = por %p267, %p268
      %p270 = scmp.ne.s32.totalorder %s261, %s262
      %p271 = scmp.eq.s32.totalorder %s41, 0
      %p272 = por %p270, %p271
      %p273 = scmp.ne.s32.totalorder %s261, %s262
      %p274 = scmp.eq.s32.totalorder %s42, 1
      %p275 = por %p273, %p274
      %p277 = scmp.ne.s32.totalorder %s262, %s276
      %p278 = scmp.eq.s32.totalorder %s42, 0
      %p279 = por %p277, %p278
      %s281 = sadd.s32 %s280, 1
      %p284 = scmp.eq.s32.totalorder %s36, 1
      %p285 = scmp.ne.s32.totalorder %s280, %s282
      %p286 = scmp.eq.s32.totalorder %s36, 0
      %p287 = por %p285, %p286
      %p288 = scmp.ne.s32.totalorder %s280, %s282
      %p289 = scmp.eq.s32.totalorder %s41, 1
      %p290 = por %p288, %p289
      %p291 = scmp.ne.s32.totalorder %s282, %s283
      %p292 = scmp.eq.s32.totalorder %s41, 0
      %p293 = por %p291, %p292
      %p294 = scmp.ne.s32.totalorder %s282, %s283
      %p295 = scmp.eq.s32.totalorder %s42, 1
      %p296 = por %p294, %p295
      %p298 = scmp.ne.s32.totalorder %s283, %s297
      %p299 = scmp.eq.s32.totalorder %s42, 0
      %p300 = por %p298, %p299
      %s302 = sadd.s32 %s301, 1
      %p305 = scmp.eq.s32.totalorder %s36, 1
      %p306 = scmp.ne.s32.totalorder %s301, %s303
      %p307 = scmp.eq.s32.totalorder %s36, 0
      %p308 = por %p306, %p307
      %p309 = scmp.ne.s32.totalorder %s301, %s303
      %p310 = scmp.eq.s32.totalorder %s41, 1
      %p311 = por %p309, %p310
      %p312 = scmp.ne.s32.totalorder %s303, %s304
      %p313 = scmp.eq.s32.totalorder %s41, 0
      %p314 = por %p312, %p313
      %p315 = scmp.ne.s32.totalorder %s303, %s304
      %p316 = scmp.eq.s32.totalorder %s42, 1
      %p317 = por %p315, %p316
      %p319 = scmp.ne.s32.totalorder %s304, %s318
      %p320 = scmp.eq.s32.totalorder %s42, 0
      %p321 = por %p319, %p320
      %s323 = sadd.s32 %s322, 1
      %p326 = scmp.eq.s32.totalorder %s36, 1
      %p327 = scmp.ne.s32.totalorder %s322, %s324
      %p328 = scmp.eq.s32.totalorder %s36, 0
      %p329 = por %p327, %p328
      %p330 = scmp.ne.s32.totalorder %s322, %s324
      %p331 = scmp.eq.s32.totalorder %s41, 1
      %p332 = por %p330, %p331
      %p333 = scmp.ne.s32.totalorder %s324, %s325
      %p334 = scmp.eq.s32.totalorder %s41, 0
      %p335 = por %p333, %p334
      %p336 = scmp.ne.s32.totalorder %s324, %s325
      %p337 = scmp.eq.s32.totalorder %s42, 1
      %p338 = por %p336, %p337
      %p340 = scmp.ne.s32.totalorder %s325, %s339
      %p341 = scmp.eq.s32.totalorder %s42, 0
      %p342 = por %p340, %p341
      %s344 = sadd.s32 %s343, 1
      %p347 = scmp.eq.s32.totalorder %s36, 1
      %p348 = scmp.ne.s32.totalorder %s343, %s345
      %p349 = scmp.eq.s32.totalorder %s36, 0
      %p350 = por %p348, %p349
      %p351 = scmp.ne.s32.totalorder %s343, %s345
      %p352 = scmp.eq.s32.totalorder %s41, 1
      %p353 = por %p351, %p352
      %p354 = scmp.ne.s32.totalorder %s345, %s346
      %p355 = scmp.eq.s32.totalorder %s41, 0
      %p356 = por %p354, %p355
      %p357 = scmp.ne.s32.totalorder %s345, %s346
      %p358 = scmp.eq.s32.totalorder %s42, 1
      %p359 = por %p357, %p358
      %p361 = scmp.ne.s32.totalorder %s346, %s360
      %p362 = scmp.eq.s32.totalorder %s42, 0
      %p363 = por %p361, %p362
      %s365 = sadd.s32 %s364, 1
      %p368 = scmp.eq.s32.totalorder %s36, 1
      %p369 = scmp.ne.s32.totalorder %s364, %s366
      %p370 = scmp.eq.s32.totalorder %s36, 0
      %p371 = por %p369, %p370
      %p372 = scmp.ne.s32.totalorder %s364, %s366
      %p373 = scmp.eq.s32.totalorder %s41, 1
      %p374 = por %p372, %p373
      %p375 = scmp.ne.s32.totalorder %s366, %s367
      %p376 = scmp.eq.s32.totalorder %s41, 0
      %p377 = por %p375, %p376
      %p378 = scmp.ne.s32.totalorder %s366, %s367
      %p379 = scmp.eq.s32.totalorder %s42, 1
      %p380 = por %p378, %p379
      %p382 = scmp.ne.s32.totalorder %s367, %s381
      %p383 = scmp.eq.s32.totalorder %s42, 0
      %p384 = por %p382, %p383
      %s386 = sadd.s32 %s385, 1
      %p389 = scmp.eq.s32.totalorder %s36, 1
      %p390 = scmp.ne.s32.totalorder %s385, %s387
      %p391 = scmp.eq.s32.totalorder %s36, 0
      %p392 = por %p390, %p391
      %p393 = scmp.ne.s32.totalorder %s385, %s387
      %p394 = scmp.eq.s32.totalorder %s41, 1
      %p395 = por %p393, %p394
      %p396 = scmp.ne.s32.totalorder %s387, %s388
      %p397 = scmp.eq.s32.totalorder %s41, 0
      %p398 = por %p396, %p397
      %p399 = scmp.ne.s32.totalorder %s387, %s388
      %p400 = scmp.eq.s32.totalorder %s42, 1
      %p401 = por %p399, %p400
      %p403 = scmp.ne.s32.totalorder %s388, %s402
      %p404 = scmp.eq.s32.totalorder %s42, 0
      %p405 = por %p403, %p404
      %s407 = sadd.s32 %s406, 1
      %p410 = scmp.eq.s32.totalorder %s36, 1
      %p411 = scmp.ne.s32.totalorder %s406, %s408
      %p412 = scmp.eq.s32.totalorder %s36, 0
      %p413 = por %p411, %p412
      %p414 = scmp.ne.s32.totalorder %s406, %s408
      %p415 = scmp.eq.s32.totalorder %s41, 1
      %p416 = por %p414, %p415
      %p417 = scmp.ne.s32.totalorder %s408, %s409
      %p418 = scmp.eq.s32.totalorder %s41, 0
      %p419 = por %p417, %p418
      %p420 = scmp.ne.s32.totalorder %s408, %s409
      %p421 = scmp.eq.s32.totalorder %s42, 1
      %p422 = por %p420, %p421
      %p424 = scmp.ne.s32.totalorder %s409, %s423
      %p425 = scmp.eq.s32.totalorder %s42, 0
      %p426 = por %p424, %p425
      %s428 = sadd.s32 %s427, 1
      %p431 = scmp.eq.s32.totalorder %s36, 1
      %p432 = scmp.ne.s32.totalorder %s427, %s429
      %p433 = scmp.eq.s32.totalorder %s36, 0
      %p434 = por %p432, %p433
      %p435 = scmp.ne.s32.totalorder %s427, %s429
      %p436 = scmp.eq.s32.totalorder %s41, 1
      %p437 = por %p435, %p436
      %p438 = scmp.ne.s32.totalorder %s429, %s430
      %p439 = scmp.eq.s32.totalorder %s41, 0
      %p440 = por %p438, %p439
      %p441 = scmp.ne.s32.totalorder %s429, %s430
      %p442 = scmp.eq.s32.totalorder %s42, 1
      %p443 = por %p441, %p442
      %p445 = scmp.ne.s32.totalorder %s430, %s444
      %p446 = scmp.eq.s32.totalorder %s42, 0
      %p447 = por %p445, %p446
      %s449 = sadd.s32 %s448, 1
      %p452 = scmp.eq.s32.totalorder %s36, 1
      %p453 = scmp.ne.s32.totalorder %s448, %s450
      %p454 = scmp.eq.s32.totalorder %s36, 0
      %p455 = por %p453, %p454
      %p456 = scmp.ne.s32.totalorder %s448, %s450
      %p457 = scmp.eq.s32.totalorder %s41, 1
      %p458 = por %p456, %p457
      %p459 = scmp.ne.s32.totalorder %s450, %s451
      %p460 = scmp.eq.s32.totalorder %s41, 0
      %p461 = por %p459, %p460
      %p462 = scmp.ne.s32.totalorder %s450, %s451
      %p463 = scmp.eq.s32.totalorder %s42, 1
      %p464 = por %p462, %p463
      %p466 = scmp.ne.s32.totalorder %s451, %s465
      %p467 = scmp.eq.s32.totalorder %s42, 0
      %p468 = por %p466, %p467
      %s470 = sadd.s32 %s469, 1
      %p473 = scmp.eq.s32.totalorder %s36, 1
      %p474 = scmp.ne.s32.totalorder %s469, %s471
      %p475 = scmp.eq.s32.totalorder %s36, 0
      %p476 = por %p474, %p475
      %p477 = scmp.ne.s32.totalorder %s469, %s471
      %p478 = scmp.eq.s32.totalorder %s41, 1
      %p479 = por %p477, %p478
      %p480 = scmp.ne.s32.totalorder %s471, %s472
      %p481 = scmp.eq.s32.totalorder %s41, 0
      %p482 = por %p480, %p481
      %p483 = scmp.ne.s32.totalorder %s471, %s472
      %p484 = scmp.eq.s32.totalorder %s42, 1
      %p485 = por %p483, %p484
      %p487 = scmp.ne.s32.totalorder %s472, %s486
      %p488 = scmp.eq.s32.totalorder %s42, 0
      %p489 = por %p487, %p488
      %s491 = sadd.s32 %s490, 1
      %p494 = scmp.eq.s32.totalorder %s36, 1
      %p495 = scmp.ne.s32.totalorder %s490, %s492
      %p496 = scmp.eq.s32.totalorder %s36, 0
      %p497 = por %p495, %p496
      %p498 = scmp.ne.s32.totalorder %s490, %s492
      %p499 = scmp.eq.s32.totalorder %s41, 1
      %p500 = por %p498, %p499
      %p501 = scmp.ne.s32.totalorder %s492, %s493
      %p502 = scmp.eq.s32.totalorder %s41, 0
      %p503 = por %p501, %p502
      %p504 = scmp.ne.s32.totalorder %s492, %s493
      %p505 = scmp.eq.s32.totalorder %s42, 1
      %p506 = por %p504, %p505
      %p508 = scmp.ne.s32.totalorder %s493, %s507
      %p509 = scmp.eq.s32.totalorder %s42, 0
      %p510 = por %p508, %p509
      %s512 = sadd.s32 %s511, 1
      %p515 = scmp.eq.s32.totalorder %s36, 1
      %p516 = scmp.ne.s32.totalorder %s511, %s513
      %p517 = scmp.eq.s32.totalorder %s36, 0
      %p518 = por %p516, %p517
      %p519 = scmp.ne.s32.totalorder %s511, %s513
      %p520 = scmp.eq.s32.totalorder %s41, 1
      %p521 = por %p519, %p520
      %p522 = scmp.ne.s32.totalorder %s513, %s514
      %p523 = scmp.eq.s32.totalorder %s41, 0
      %p524 = por %p522, %p523
      %p525 = scmp.ne.s32.totalorder %s513, %s514
      %p526 = scmp.eq.s32.totalorder %s42, 1
      %p527 = por %p525, %p526
      %p529 = scmp.ne.s32.totalorder %s514, %s528
      %p530 = scmp.eq.s32.totalorder %s42, 0
      %p531 = por %p529, %p530
      %s533 = sadd.s32 %s532, 1
      %p536 = scmp.eq.s32.totalorder %s36, 1
      %p537 = scmp.ne.s32.totalorder %s532, %s534
      %p538 = scmp.eq.s32.totalorder %s36, 0
      %p539 = por %p537, %p538
      %p540 = scmp.ne.s32.totalorder %s532, %s534
      %p541 = scmp.eq.s32.totalorder %s41, 1
      %p542 = por %p540, %p541
      %p543 = scmp.ne.s32.totalorder %s534, %s535
      %p544 = scmp.eq.s32.totalorder %s41, 0
      %p545 = por %p543, %p544
      %p546 = scmp.ne.s32.totalorder %s534, %s535
      %p547 = scmp.eq.s32.totalorder %s42, 1
      %p548 = por %p546, %p547
      %p550 = scmp.ne.s32.totalorder %s535, %s549
      %p551 = scmp.eq.s32.totalorder %s42, 0
      %p552 = por %p550, %p551
      %s554 = sadd.s32 %s553, 1
      %p557 = scmp.eq.s32.totalorder %s36, 1
      %p558 = scmp.ne.s32.totalorder %s553, %s555
      %p559 = scmp.eq.s32.totalorder %s36, 0
      %p560 = por %p558, %p559
      %p561 = scmp.ne.s32.totalorder %s553, %s555
      %p562 = scmp.eq.s32.totalorder %s41, 1
      %p563 = por %p561, %p562
      %p564 = scmp.ne.s32.totalorder %s555, %s556
      %p565 = scmp.eq.s32.totalorder %s41, 0
      %p566 = por %p564, %p565
      %p567 = scmp.ne.s32.totalorder %s555, %s556
      %p568 = scmp.eq.s32.totalorder %s42, 1
      %p569 = por %p567, %p568
      %p571 = scmp.ne.s32.totalorder %s556, %s570
      %p572 = scmp.eq.s32.totalorder %s42, 0
      %p573 = por %p571, %p572
      %s575 = sadd.s32 %s574, 1
      %p578 = scmp.eq.s32.totalorder %s36, 1
      %p579 = scmp.ne.s32.totalorder %s574, %s576
      %p580 = scmp.eq.s32.totalorder %s36, 0
      %p581 = por %p579, %p580
      %p582 = scmp.ne.s32.totalorder %s574, %s576
      %p583 = scmp.eq.s32.totalorder %s41, 1
      %p584 = por %p582, %p583
      %p585 = scmp.ne.s32.totalorder %s576, %s577
      %p586 = scmp.eq.s32.totalorder %s41, 0
      %p587 = por %p585, %p586
      %p588 = scmp.ne.s32.totalorder %s576, %s577
      %p589 = scmp.eq.s32.totalorder %s42, 1
      %p590 = por %p588, %p589
      %p592 = scmp.ne.s32.totalorder %s577, %s591
      %p593 = scmp.eq.s32.totalorder %s42, 0
      %p594 = por %p592, %p593
      %s596 = sadd.s32 %s595, 1
      %p599 = scmp.eq.s32.totalorder %s36, 1
      %p600 = scmp.ne.s32.totalorder %s595, %s597
      %p601 = scmp.eq.s32.totalorder %s36, 0
      %p602 = por %p600, %p601
      %p603 = scmp.ne.s32.totalorder %s595, %s597
      %p604 = scmp.eq.s32.totalorder %s41, 1
      %p605 = por %p603, %p604
      %p606 = scmp.ne.s32.totalorder %s597, %s598
      %p607 = scmp.eq.s32.totalorder %s41, 0
      %p608 = por %p606, %p607
      %p609 = scmp.ne.s32.totalorder %s597, %s598
      %p610 = scmp.eq.s32.totalorder %s42, 1
      %p611 = por %p609, %p610
      %p613 = scmp.ne.s32.totalorder %s598, %s612
      %p614 = scmp.eq.s32.totalorder %s42, 0
      %p615 = por %p613, %p614
      %s616 = ssub.s32 %s36, %s43
      %p617 = scmp.eq.s32.totalorder %s616, 0
      %s619 = sadd.s32 %s618, 1
      %s620 = scalar_select %p617, %s618, %s619
      %p623 = pneg %p617
      %p624 = scmp.eq.s32.totalorder %s36, 1
      %p625 = por %p623, %p624
      %p626 = scmp.ne.s32.totalorder %s618, %s621
      %p627 = scmp.eq.s32.totalorder %s36, 0
      %p628 = por %p626, %p627
      %p629 = scmp.ne.s32.totalorder %s618, %s621
      %p630 = scmp.eq.s32.totalorder %s41, 1
      %p631 = por %p629, %p630
      %p632 = scmp.ne.s32.totalorder %s621, %s622
      %p633 = scmp.eq.s32.totalorder %s41, 0
      %p634 = por %p632, %p633
      %p635 = scmp.ne.s32.totalorder %s621, %s622
      %p636 = scmp.eq.s32.totalorder %s42, 1
      %p637 = por %p635, %p636
      %p639 = scmp.ne.s32.totalorder %s622, %s638
      %p640 = scmp.eq.s32.totalorder %s42, 0
      %p641 = por %p639, %p640
      %p642 = scmp.le.s32.totalorder 1, %s36
      %p643 = scmp.lt.s32.totalorder %s36, 3
      %p644 = pnand %p642, %p643
      %p645 = pneg %p644
      // Predicated region
      $region9: #{patchgan_forward.1} parent=5 // pred_check
        _
      $region10: #{patchgan_forward.1} parent=5 // pred_check_branch
        %647 = sbr.rel (%p644) target = $region12
      $region11: #{patchgan_forward.1} parent=5 // pred_region
        %s648 = ssub.s32 %s36, 1
        // Predicated region
        $region13: #{patchgan_forward.1} parent=11 // pred_check
          %p649 = pneg %p83
        $region14: #{patchgan_forward.1} parent=11 // pred_check_branch
          %651 = sbr.rel (%p649) target = $region16
        $region15: #{patchgan_forward.1} parent=11 // pred_region
          _
        $region16: #{patchgan_forward.1} parent=11 // pred_fallthru
          _
        // Predicated region
        $region17: #{patchgan_forward.1} parent=11 // pred_check
          %p652 = pneg %p104
        $region18: #{patchgan_forward.1} parent=11 // pred_check_branch
          %654 = sbr.rel (%p652) target = $region20
        $region19: #{patchgan_forward.1} parent=11 // pred_region
          _
        $region20: #{patchgan_forward.1} parent=11 // pred_fallthru
          _
        // Predicated region
        $region21: #{patchgan_forward.1} parent=11 // pred_check
          %p655 = pneg %p125
        $region22: #{patchgan_forward.1} parent=11 // pred_check_branch
          %657 = sbr.rel (%p655) target = $region24
        $region23: #{patchgan_forward.1} parent=11 // pred_region
          _
        $region24: #{patchgan_forward.1} parent=11 // pred_fallthru
          _
        // Predicated region
        $region25: #{patchgan_forward.1} parent=11 // pred_check
          %p658 = pneg %p146
        $region26: #{patchgan_forward.1} parent=11 // pred_check_branch
          %660 = sbr.rel (%p658) target = $region28
        $region27: #{patchgan_forward.1} parent=11 // pred_region
          _
        $region28: #{patchgan_forward.1} parent=11 // pred_fallthru
          _
        // Predicated region
        $region29: #{patchgan_forward.1} parent=11 // pred_check
          %p661 = pneg %p167
        $region30: #{patchgan_forward.1} parent=11 // pred_check_branch
          %663 = sbr.rel (%p661) target = $region32
        $region31: #{patchgan_forward.1} parent=11 // pred_region
          _
        $region32: #{patchgan_forward.1} parent=11 // pred_fallthru
          _
        // Predicated region
        $region33: #{patchgan_forward.1} parent=11 // pred_check
          %p664 = pneg %p188
        $region34: #{patchgan_forward.1} parent=11 // pred_check_branch
          %666 = sbr.rel (%p664) target = $region36
        $region35: #{patchgan_forward.1} parent=11 // pred_region
          _
        $region36: #{patchgan_forward.1} parent=11 // pred_fallthru
          _
        // Predicated region
        $region37: #{patchgan_forward.1} parent=11 // pred_check
          %p667 = pneg %p209
        $region38: #{patchgan_forward.1} parent=11 // pred_check_branch
          %669 = sbr.rel (%p667) target = $region40
        $region39: #{patchgan_forward.1} parent=11 // pred_region
          _
        $region40: #{patchgan_forward.1} parent=11 // pred_fallthru
          _
        // Predicated region
        $region41: #{patchgan_forward.1} parent=11 // pred_check
          %p670 = pneg %p230
        $region42: #{patchgan_forward.1} parent=11 // pred_check_branch
          %672 = sbr.rel (%p670) target = $region44
        $region43: #{patchgan_forward.1} parent=11 // pred_region
          _
        $region44: #{patchgan_forward.1} parent=11 // pred_fallthru
          _
        // Predicated region
        $region45: #{patchgan_forward.1} parent=11 // pred_check
          %p673 = pneg %p251
        $region46: #{patchgan_forward.1} parent=11 // pred_check_branch
          %675 = sbr.rel (%p673) target = $region48
        $region47: #{patchgan_forward.1} parent=11 // pred_region
          _
        $region48: #{patchgan_forward.1} parent=11 // pred_fallthru
          _
        // Predicated region
        $region49: #{patchgan_forward.1} parent=11 // pred_check
          %p676 = pneg %p272
        $region50: #{patchgan_forward.1} parent=11 // pred_check_branch
          %678 = sbr.rel (%p676) target = $region52
        $region51: #{patchgan_forward.1} parent=11 // pred_region
          _
        $region52: #{patchgan_forward.1} parent=11 // pred_fallthru
          _
        // Predicated region
        $region53: #{patchgan_forward.1} parent=11 // pred_check
          %p679 = pneg %p293
        $region54: #{patchgan_forward.1} parent=11 // pred_check_branch
          %681 = sbr.rel (%p679) target = $region56
        $region55: #{patchgan_forward.1} parent=11 // pred_region
          _
        $region56: #{patchgan_forward.1} parent=11 // pred_fallthru
          _
        // Predicated region
        $region57: #{patchgan_forward.1} parent=11 // pred_check
          %p682 = pneg %p314
        $region58: #{patchgan_forward.1} parent=11 // pred_check_branch
          %684 = sbr.rel (%p682) target = $region60
        $region59: #{patchgan_forward.1} parent=11 // pred_region
          _
        $region60: #{patchgan_forward.1} parent=11 // pred_fallthru
          _
        // Predicated region
        $region61: #{patchgan_forward.1} parent=11 // pred_check
          %p685 = pneg %p335
        $region62: #{patchgan_forward.1} parent=11 // pred_check_branch
          %687 = sbr.rel (%p685) target = $region64
        $region63: #{patchgan_forward.1} parent=11 // pred_region
          _
        $region64: #{patchgan_forward.1} parent=11 // pred_fallthru
          _
        // Predicated region
        $region65: #{patchgan_forward.1} parent=11 // pred_check
          %p688 = pneg %p356
        $region66: #{patchgan_forward.1} parent=11 // pred_check_branch
          %690 = sbr.rel (%p688) target = $region68
        $region67: #{patchgan_forward.1} parent=11 // pred_region
          _
        $region68: #{patchgan_forward.1} parent=11 // pred_fallthru
          _
        // Predicated region
        $region69: #{patchgan_forward.1} parent=11 // pred_check
          %p691 = pneg %p377
        $region70: #{patchgan_forward.1} parent=11 // pred_check_branch
          %693 = sbr.rel (%p691) target = $region72
        $region71: #{patchgan_forward.1} parent=11 // pred_region
          _
        $region72: #{patchgan_forward.1} parent=11 // pred_fallthru
          _
        // Predicated region
        $region73: #{patchgan_forward.1} parent=11 // pred_check
          %p694 = pneg %p398
        $region74: #{patchgan_forward.1} parent=11 // pred_check_branch
          %696 = sbr.rel (%p694) target = $region76
        $region75: #{patchgan_forward.1} parent=11 // pred_region
          _
        $region76: #{patchgan_forward.1} parent=11 // pred_fallthru
          _
        // Predicated region
        $region77: #{patchgan_forward.1} parent=11 // pred_check
          %p697 = pneg %p419
        $region78: #{patchgan_forward.1} parent=11 // pred_check_branch
          %699 = sbr.rel (%p697) target = $region80
        $region79: #{patchgan_forward.1} parent=11 // pred_region
          _
        $region80: #{patchgan_forward.1} parent=11 // pred_fallthru
          _
        // Predicated region
        $region81: #{patchgan_forward.1} parent=11 // pred_check
          %p700 = pneg %p440
        $region82: #{patchgan_forward.1} parent=11 // pred_check_branch
          %702 = sbr.rel (%p700) target = $region84
        $region83: #{patchgan_forward.1} parent=11 // pred_region
          _
        $region84: #{patchgan_forward.1} parent=11 // pred_fallthru
          _
        // Predicated region
        $region85: #{patchgan_forward.1} parent=11 // pred_check
          %p703 = pneg %p461
        $region86: #{patchgan_forward.1} parent=11 // pred_check_branch
          %705 = sbr.rel (%p703) target = $region88
        $region87: #{patchgan_forward.1} parent=11 // pred_region
          _
        $region88: #{patchgan_forward.1} parent=11 // pred_fallthru
          _
        // Predicated region
        $region89: #{patchgan_forward.1} parent=11 // pred_check
          %p706 = pneg %p482
        $region90: #{patchgan_forward.1} parent=11 // pred_check_branch
          %708 = sbr.rel (%p706) target = $region92
        $region91: #{patchgan_forward.1} parent=11 // pred_region
          _
        $region92: #{patchgan_forward.1} parent=11 // pred_fallthru
          _
        // Predicated region
        $region93: #{patchgan_forward.1} parent=11 // pred_check
          %p709 = pneg %p503
        $region94: #{patchgan_forward.1} parent=11 // pred_check_branch
          %711 = sbr.rel (%p709) target = $region96
        $region95: #{patchgan_forward.1} parent=11 // pred_region
          _
        $region96: #{patchgan_forward.1} parent=11 // pred_fallthru
          _
        // Predicated region
        $region97: #{patchgan_forward.1} parent=11 // pred_check
          %p712 = pneg %p524
        $region98: #{patchgan_forward.1} parent=11 // pred_check_branch
          %714 = sbr.rel (%p712) target = $region100
        $region99: #{patchgan_forward.1} parent=11 // pred_region
          _
        $region100: #{patchgan_forward.1} parent=11 // pred_fallthru
          _
        // Predicated region
        $region101: #{patchgan_forward.1} parent=11 // pred_check
          %p715 = pneg %p545
        $region102: #{patchgan_forward.1} parent=11 // pred_check_branch
          %717 = sbr.rel (%p715) target = $region104
        $region103: #{patchgan_forward.1} parent=11 // pred_region
          _
        $region104: #{patchgan_forward.1} parent=11 // pred_fallthru
          _
        // Predicated region
        $region105: #{patchgan_forward.1} parent=11 // pred_check
          %p718 = pneg %p566
        $region106: #{patchgan_forward.1} parent=11 // pred_check_branch
          %720 = sbr.rel (%p718) target = $region108
        $region107: #{patchgan_forward.1} parent=11 // pred_region
          %722 = vsyncadd [#allocation4], 0
          %s724 = sshll.u32 %s24, 4
          %s725 = int_to_ptr.vmem [resolvable:$true] %s724
          %727 = dma.vmem_to_smem %s725, 16, [#allocation3], [#allocation4]
        $region108: #{patchgan_forward.1} parent=11 // pred_fallthru
          _
        // Predicated region
        $region109: #{patchgan_forward.1} parent=11 // pred_check
          %p728 = pneg %p587
        $region110: #{patchgan_forward.1} parent=11 // pred_check_branch
          %730 = sbr.rel (%p728) target = $region112
        $region111: #{patchgan_forward.1} parent=11 // pred_region
          _
        $region112: #{patchgan_forward.1} parent=11 // pred_fallthru
          _
        // Predicated region
        $region113: #{patchgan_forward.1} parent=11 // pred_check
          %p731 = pneg %p608
        $region114: #{patchgan_forward.1} parent=11 // pred_check_branch
          %733 = sbr.rel (%p731) target = $region116
        $region115: #{patchgan_forward.1} parent=11 // pred_region
          _
        $region116: #{patchgan_forward.1} parent=11 // pred_fallthru
          _
      $region12: #{patchgan_forward.1} parent=5 // pred_fallthru
        _
      %p734 = scmp.lt.s32.totalorder %s36, 2
      // Predicated region
      $region117: #{patchgan_forward.1} parent=5 // pred_check
        %p735 = pneg %p734
      $region118: #{patchgan_forward.1} parent=5 // pred_check_branch
        %737 = sbr.rel (%p735) target = $region120
      $region119: #{patchgan_forward.1} parent=5 // pred_region
        // Predicated region
        $region121: #{patchgan_forward.1} parent=119 // pred_check
          %p738 = pneg %p56
        $region122: #{patchgan_forward.1} parent=119 // pred_check_branch
          %740 = sbr.rel (%p738) target = $region124
        $region123: #{patchgan_forward.1} parent=119 // pred_region
          %p741 = scmp.lt.s32.totalorder %s36, 1
          %s742 = scalar_select %p741, %s36, 1
          %s743 = smul.addr %s742, 8
          %s744 = smul.addr %s743, 8
          %s745 = scalar_lea.vmem %s0, %s744
        $region124: #{patchgan_forward.1} parent=119 // pred_fallthru
          _
      $region120: #{patchgan_forward.1} parent=5 // pred_fallthru
        _
      %p746 = scmp.le.s32.totalorder 1, %s36
      %p747 = scmp.lt.s32.totalorder %s36, 3
      %p748 = pnand %p746, %p747
      %p749 = pneg %p748
      // Predicated region
      $region125: #{patchgan_forward.1} parent=5 // pred_check
        _
      $region126: #{patchgan_forward.1} parent=5 // pred_check_branch
        %751 = sbr.rel (%p748) target = $region128
      $region127: #{patchgan_forward.1} parent=5 // pred_region
        %s752 = ssub.s32 %s36, 1
        // Predicated region
        $region129: #{patchgan_forward.1} parent=127 // pred_check
          %p753 = pneg %p566
        $region130: #{patchgan_forward.1} parent=127 // pred_check_branch
          %755 = sbr.rel (%p753) target = $region132
        $region131: #{patchgan_forward.1} parent=127 // pred_region
          %757 = dma.done [#allocation4], 16
        $region132: #{patchgan_forward.1} parent=127 // pred_fallthru
          _
        %758 = sfence
        %p759 = scmp.lt.s32.totalorder %s41, 1
        %s760 = scalar_select %p759, %s41, 1
        %s761 = smul.addr %s760, 8
        %s762 = smul.addr %s761, 8
        %s763 = scalar_lea.vmem %s0, %s762
        %p764 = pneg %p62
        %p765 = pneg %p59
        %p766 = pneg %p83
        %p767 = pneg %p80
        %p768 = pneg %p104
        %p769 = pneg %p101
        %p770 = pneg %p125
        %p771 = pneg %p122
        %p772 = pneg %p146
        %p773 = pneg %p143
        %p774 = pneg %p167
        %p775 = pneg %p164
        %p776 = pneg %p188
        %p777 = pneg %p185
        %p778 = pneg %p209
        %p779 = pneg %p206
        %p780 = pneg %p230
        %p781 = pneg %p227
        %p782 = pneg %p251
        %p783 = pneg %p248
        %p784 = pneg %p272
        %p785 = pneg %p269
        %p786 = pneg %p293
        %p787 = pneg %p290
        %p788 = pneg %p314
        %p789 = pneg %p311
        %p790 = pneg %p335
        %p791 = pneg %p332
        %p792 = pneg %p356
        %p793 = pneg %p353
        %p794 = pneg %p377
        %p795 = pneg %p374
        %p796 = pneg %p398
        %p797 = pneg %p395
        %p798 = pneg %p419
        %p799 = pneg %p416
        %p800 = pneg %p440
        %p801 = pneg %p437
        %p802 = pneg %p461
        %p803 = pneg %p458
        %p804 = pneg %p482
        %p805 = pneg %p479
        %p806 = pneg %p503
        %p807 = pneg %p500
        %p808 = pneg %p524
        %p809 = pneg %p521
        %p810 = pneg %p545
        %p811 = pneg %p542
        %p812 = pneg %p566
        %p813 = pneg %p563
        %p814 = pneg %p587
        %p815 = pneg %p584
        %p816 = pneg %p608
        %p817 = pneg %p605
        %p818 = pneg %p634
        %p819 = pneg %p631
        %p820 = scmp.lt.s32.totalorder %s41, 1
        %s821 = scalar_select %p820, %s41, 1
        %s822 = scalar_lea.vmem %s27, %s821
        %p823 = scmp.lt.s32.totalorder %s41, 1
        %s824 = scalar_select %p823, %s41, 1
        %s825 = smul.addr %s824, 8
        %s826 = smul.addr %s825, 8
        %s827 = scalar_lea.vmem %s0, %s826
        %p828 = scmp.lt.s32.totalorder %s41, 1
        %s829 = scalar_select %p828, %s41, 1
        %s830 = scalar_lea.vmem %s27, %s829
        %v831 = vld [vmem:[%s827] sm:$0xff]
        %v832 = vld [vmem:[%s827 + $0x8] sm:$0xff]
        %v833 = vld [vmem:[%s827 + $0x10] sm:$0xff]
        %v834 = vld [vmem:[%s827 + $0x18] sm:$0xff]
        %v835 = vld [vmem:[%s827 + $0x20] sm:$0xff]
        %v836 = vld [vmem:[%s827 + $0x28] sm:$0xff]
        %v837 = vld [vmem:[%s827 + $0x30] sm:$0xff]
        %v838 = vld [vmem:[%s827 + $0x38] sm:$0xff]
        %v839 = vld [vmem:[%s1] sm:$0xff]
        %v840 = vld [vmem:[%s1 + $0x8] sm:$0xff]
        %v841 = vld [vmem:[%s1 + $0x10] sm:$0xff]
        %v842 = vld [vmem:[%s1 + $0x18] sm:$0xff]
        %v843 = vld [vmem:[%s1 + $0x20] sm:$0xff]
        %v844 = vld [vmem:[%s1 + $0x28] sm:$0xff]
        %v845 = vld [vmem:[%s1 + $0x30] sm:$0xff]
        %v846 = vld [vmem:[%s1 + $0x38] sm:$0xff]
        %v847 = vld [vmem:[%s2] sm:$0x1]
        %v849 = vperm.slane %v847, 0
        %vm851 = vcmask 523264
        %v853 = vsel %vm851, %v831, 0
        %v856 = vsel %vm851, %v832, 0
        %v859 = vsel %vm851, %v833, 0
        %v862 = vsel %vm851, %v834, 0
        %v865 = vsel %vm851, %v835, 0
        %v868 = vsel %vm851, %v836, 0
        %v871 = vsel %vm851, %v837, 0
        %v874 = vsel %vm851, %v838, 0
        %876 = vmatpush.msra.mxu0 0.0
        %877 = vmatpush.msra.mxu0 0.0
        %878 = vmatpush.msra.mxu0 0.0
        %879 = vmatpush.msra.mxu0 0.0
        %880 = vmatpush.msra.mxu0 0.0
        %881 = vmatpush.msra.mxu0 0.0
        %882 = vmatpush.msra.mxu0 0.0
        %883 = vmatpush.msra.mxu0 0.0
        %884 = vmatpush.msra.mxu0 %v846
        %885 = vmatpush.msra.mxu0 %v845
        %886 = vmatpush.msra.mxu0 %v844
        %887 = vmatpush.msra.mxu0 %v843
        %888 = vmatpush.msra.mxu0 %v842
        %889 = vmatpush.msra.mxu0 %v841
        %890 = vmatpush.msra.mxu0 %v840
        %891 = vmatpush.msra.mxu0 %v839
        %892 = vmatmul.f32.gmra.mxu0 %v853
        %v893 = vpop.f32.mrf.mxu0
        %v894 = vadd.f32 %v849, %v893
        %895 = vmatmul.f32.gmra.mxu0 %v856
        %v896 = vpop.f32.mrf.mxu0
        %v897 = vadd.f32 %v849, %v896
        %898 = vmatmul.f32.gmra.mxu0 %v859
        %v899 = vpop.f32.mrf.mxu0
        %v900 = vadd.f32 %v849, %v899
        %901 = vmatmul.f32.gmra.mxu0 %v862
        %v902 = vpop.f32.mrf.mxu0
        %v903 = vadd.f32 %v849, %v902
        %904 = vmatmul.f32.gmra.mxu0 %v865
        %v905 = vpop.f32.mrf.mxu0
        %v906 = vadd.f32 %v849, %v905
        %907 = vmatmul.f32.gmra.mxu0 %v868
        %v908 = vpop.f32.mrf.mxu0
        %v909 = vadd.f32 %v849, %v908
        %910 = vmatmul.f32.gmra.mxu0 %v871
        %v911 = vpop.f32.mrf.mxu0
        %v912 = vadd.f32 %v849, %v911
        %913 = vmatmul.f32.gmra.mxu0 %v874
        %v914 = vpop.f32.mrf.mxu0
        %v915 = vadd.f32 %v849, %v914
        %916 = vdwg.mxu0
        %s917 = sld [smem:[#allocation3]]
        %vm918 = vcmask 261120
        %v919 = vsel %vm918, %v894, 0.0
        %v920 = vsel %vm918, %v897, 0.0
        %v921 = vadd.f32 %v919, %v920
        %v922 = vsel %vm918, %v900, 0.0
        %v923 = vadd.f32 %v921, %v922
        %v924 = vsel %vm918, %v903, 0.0
        %v925 = vadd.f32 %v923, %v924
        %v926 = vsel %vm918, %v906, 0.0
        %v927 = vadd.f32 %v925, %v926
        %v928 = vsel %vm918, %v909, 0.0
        %v929 = vadd.f32 %v927, %v928
        %v930 = vsel %vm918, %v912, 0.0
        %v931 = vadd.f32 %v929, %v930
        %v932 = vsel %vm918, %v915, 0.0
        %v933 = vadd.f32 %v931, %v932
        %v934 = vrot.slane %v933, 4
        %v935 = vadd.f32 %v933, %v934
        %v936 = vrot.slane %v935, 2
        %v937 = vadd.f32 %v935, %v936
        %v938 = vrot.slane %v937, 1
        %v939 = vadd.f32 %v937, %v938
        %v940 = vld [vmem:[%s5] sm:$0xff]
        %v941 = vld [vmem:[%s5 + $0x8] sm:$0xff]
        %v942 = vld [vmem:[%s5 + $0x10] sm:$0xff]
        %v943 = vld [vmem:[%s5 + $0x18] sm:$0xff]
        %v945 = vsel %vm918, %v939, 0
        %947 = vmatpush.msra.mxu0 0.0
        %948 = vmatpush.msra.mxu0 0.0
        %949 = vmatpush.msra.mxu0 0.0
        %950 = vmatpush.msra.mxu0 0.0
        %951 = vmatpush.msra.mxu0 0.0
        %952 = vmatpush.msra.mxu0 0.0
        %953 = vmatpush.msra.mxu0 0.0
        %954 = vmatpush.msra.mxu0 0.0
        %955 = vmatpush.msra.mxu0 0.0
        %956 = vmatpush.msra.mxu0 0.0
        %957 = vmatpush.msra.mxu0 0.0
        %958 = vmatpush.msra.mxu0 0.0
        %959 = vmatpush.msra.mxu0 %v943
        %960 = vmatpush.msra.mxu0 %v942
        %961 = vmatpush.msra.mxu0 %v941
        %962 = vmatpush.msra.mxu0 %v940
        %963 = vmatmul.f32.gmra.mxu0 %v945
        %v964 = vpop.f32.mrf.mxu0
        %v965 = vadd.f32 0.0, %v964
        %966 = vdwg.mxu0
        %v967 = vperm.slane %v965, 0
        %v968 = vsub.f32 %v894, %v967
        %v969 = vsub.f32 %v897, %v967
        %v970 = vsub.f32 %v900, %v967
        %v971 = vsub.f32 %v903, %v967
        %v972 = vsub.f32 %v906, %v967
        %v973 = vsub.f32 %v909, %v967
        %v974 = vsub.f32 %v912, %v967
        %v975 = vsub.f32 %v915, %v967
        %v976 = vmul.f32 %v968, %v968
        %v977 = vmul.f32 %v969, %v969
        %v978 = vmul.f32 %v970, %v970
        %v979 = vmul.f32 %v971, %v971
        %v980 = vmul.f32 %v972, %v972
        %v981 = vmul.f32 %v973, %v973
        %v982 = vmul.f32 %v974, %v974
        %v983 = vmul.f32 %v975, %v975
        %v984 = vsel %vm918, %v976, 0.0
        %v985 = vsel %vm918, %v977, 0.0
        %v986 = vadd.f32 %v984, %v985
        %v987 = vsel %vm918, %v978, 0.0
        %v988 = vadd.f32 %v986, %v987
        %v989 = vsel %vm918, %v979, 0.0
        %v990 = vadd.f32 %v988, %v989
        %v991 = vsel %vm918, %v980, 0.0
        %v992 = vadd.f32 %v990, %v991
        %v993 = vsel %vm918, %v981, 0.0
        %v994 = vadd.f32 %v992, %v993
        %v995 = vsel %vm918, %v982, 0.0
        %v996 = vadd.f32 %v994, %v995
        %v997 = vsel %vm918, %v983, 0.0
        %v998 = vadd.f32 %v996, %v997
        %v999 = vrot.slane %v998, 4
        %v1000 = vadd.f32 %v998, %v999
        %v1001 = vrot.slane %v1000, 2
        %v1002 = vadd.f32 %v1000, %v1001
        %v1003 = vrot.slane %v1002, 1
        %v1004 = vadd.f32 %v1002, %v1003
        %v1006 = vsel %vm918, %v1004, 0
        %1008 = vmatpush.msra.mxu0 0.0
        %1009 = vmatpush.msra.mxu0 0.0
        %1010 = vmatpush.msra.mxu0 0.0
        %1011 = vmatpush.msra.mxu0 0.0
        %1012 = vmatpush.msra.mxu0 0.0
        %1013 = vmatpush.msra.mxu0 0.0
        %1014 = vmatpush.msra.mxu0 0.0
        %1015 = vmatpush.msra.mxu0 0.0
        %1016 = vmatpush.msra.mxu0 0.0
        %1017 = vmatpush.msra.mxu0 0.0
        %1018 = vmatpush.msra.mxu0 0.0
        %1019 = vmatpush.msra.mxu0 0.0
        %1020 = vmatpush.msra.mxu0 %v943
        %1021 = vmatpush.msra.mxu0 %v942
        %1022 = vmatpush.msra.mxu0 %v941
        %1023 = vmatpush.msra.mxu0 %v940
        %1024 = vmatmul.f32.gmra.mxu0 %v1006
        %v1025 = vpop.f32.mrf.mxu0
        %v1026 = vadd.f32 1e-05, %v1025
        %1027 = vdwg.mxu0
        %v1028 = vrsqrt.pop %v1026
        %v1029 = vmul.f32 %v1028, %v1026
        %v1030 = vmul.f32 %v1029, %v1028
        %v1031 = vmul.f32 0.5, %v1030
        %v1032 = vsub.f32 1.5, %v1031
        %v1033 = vmul.f32 %v1028, %v1032
        %vm1034 = vweird.f32 %v1026
        %vm1035 = vweird.f32 %v1028
        %vm1036 = vmor %vm1034, %vm1035
        %v1037 = vsel %vm1036, %v1028, %v1033
        %v1038 = vperm.slane %v1037, 0
        %v1039 = vmul.f32 %v968, %v1038
        %v1040 = vmul.f32 %v969, %v1038
        %v1041 = vmul.f32 %v970, %v1038
        %v1042 = vmul.f32 %v971, %v1038
        %v1043 = vmul.f32 %v972, %v1038
        %v1044 = vmul.f32 %v973, %v1038
        %v1045 = vmul.f32 %v974, %v1038
        %v1046 = vmul.f32 %v975, %v1038
        %v1047 = vld [vmem:[%s3] sm:$0x1]
        %v1049 = vperm.slane %v1047, 0
        %v1051 = vmul.f32 %v1039, %v1049
        %v1052 = vmul.f32 %v1040, %v1049
        %v1053 = vmul.f32 %v1041, %v1049
        %v1054 = vmul.f32 %v1042, %v1049
        %v1055 = vmul.f32 %v1043, %v1049
        %v1056 = vmul.f32 %v1044, %v1049
        %v1057 = vmul.f32 %v1045, %v1049
        %v1058 = vmul.f32 %v1046, %v1049
        %v1059 = vld [vmem:[%s4] sm:$0x1]
        %v1061 = vperm.slane %v1059, 0
        %v1063 = vadd.f32 %v1051, %v1061
        %v1064 = vadd.f32 %v1052, %v1061
        %v1065 = vadd.f32 %v1053, %v1061
        %v1066 = vadd.f32 %v1054, %v1061
        %v1067 = vadd.f32 %v1055, %v1061
        %v1068 = vadd.f32 %v1056, %v1061
        %v1069 = vadd.f32 %v1057, %v1061
        %v1070 = vadd.f32 %v1058, %v1061
        %vm1071 = vcmp.ge.f32.partialorder %v1063, 0.0
        %vm1072 = vcmp.ge.f32.partialorder %v1064, 0.0
        %vm1073 = vcmp.ge.f32.partialorder %v1065, 0.0
        %vm1074 = vcmp.ge.f32.partialorder %v1066, 0.0
        %vm1075 = vcmp.ge.f32.partialorder %v1067, 0.0
        %vm1076 = vcmp.ge.f32.partialorder %v1068, 0.0
        %vm1077 = vcmp.ge.f32.partialorder %v1069, 0.0
        %vm1078 = vcmp.ge.f32.partialorder %v1070, 0.0
        %v1079 = vstv %s917
        %v1080 = vmul.f32 %v1079, %v1063
        %v1081 = vmul.f32 %v1079, %v1064
        %v1082 = vmul.f32 %v1079, %v1065
        %v1083 = vmul.f32 %v1079, %v1066
        %v1084 = vmul.f32 %v1079, %v1067
        %v1085 = vmul.f32 %v1079, %v1068
        %v1086 = vmul.f32 %v1079, %v1069
        %v1087 = vmul.f32 %v1079, %v1070
        %v1088 = vsel %vm1071, %v1063, %v1080
        %v1089 = vsel %vm1072, %v1064, %v1081
        %v1090 = vsel %vm1073, %v1065, %v1082
        %v1091 = vsel %vm1074, %v1066, %v1083
        %v1092 = vsel %vm1075, %v1067, %v1084
        %v1093 = vsel %vm1076, %v1068, %v1085
        %v1094 = vsel %vm1077, %v1069, %v1086
        %v1095 = vsel %vm1078, %v1070, %v1087
        %v1096 = vld [vmem:[%s6] sm:$0xff]
        %v1097 = vld [vmem:[%s6 + $0x8] sm:$0xff]
        %v1098 = vld [vmem:[%s6 + $0x10] sm:$0xff]
        %v1099 = vld [vmem:[%s6 + $0x18] sm:$0xff]
        %v1100 = vld [vmem:[%s6 + $0x20] sm:$0xff]
        %v1101 = vld [vmem:[%s6 + $0x28] sm:$0xff]
        %v1102 = vld [vmem:[%s6 + $0x30] sm:$0xff]
        %v1103 = vld [vmem:[%s6 + $0x38] sm:$0xff]
        %v1104 = vld [vmem:[%s6 + $0x40] sm:$0xff]
        %v1105 = vld [vmem:[%s6 + $0x48] sm:$0xff]
        %v1106 = vld [vmem:[%s6 + $0x50] sm:$0xff]
        %v1107 = vld [vmem:[%s6 + $0x58] sm:$0xff]
        %v1108 = vld [vmem:[%s6 + $0x60] sm:$0xff]
        %v1109 = vld [vmem:[%s6 + $0x68] sm:$0xff]
        %v1110 = vld [vmem:[%s6 + $0x70] sm:$0xff]
        %v1111 = vld [vmem:[%s6 + $0x78] sm:$0xff]
        %v1112 = vld [vmem:[%s6 + $0x80] sm:$0xff]
        %v1113 = vld [vmem:[%s6 + $0x88] sm:$0xff]
        %v1114 = vld [vmem:[%s6 + $0x90] sm:$0xff]
        %v1115 = vld [vmem:[%s6 + $0x98] sm:$0xff]
        %v1116 = vld [vmem:[%s6 + $0xa0] sm:$0xff]
        %v1117 = vld [vmem:[%s6 + $0xa8] sm:$0xff]
        %v1118 = vld [vmem:[%s6 + $0xb0] sm:$0xff]
        %v1119 = vld [vmem:[%s6 + $0xb8] sm:$0xff]
        %v1120 = vld [vmem:[%s6 + $0xc0] sm:$0xff]
        %v1121 = vld [vmem:[%s6 + $0xc8] sm:$0xff]
        %v1122 = vld [vmem:[%s6 + $0xd0] sm:$0xff]
        %v1123 = vld [vmem:[%s6 + $0xd8] sm:$0xff]
        %v1124 = vld [vmem:[%s6 + $0xe0] sm:$0xff]
        %v1125 = vld [vmem:[%s6 + $0xe8] sm:$0xff]
        %v1126 = vld [vmem:[%s6 + $0xf0] sm:$0xff]
        %v1127 = vld [vmem:[%s6 + $0xf8] sm:$0xff]
        %v1129 = vsel %vm851, %v1096, 0
        %v1132 = vsel %vm851, %v1097, 0
        %v1135 = vsel %vm851, %v1098, 0
        %v1138 = vsel %vm851, %v1099, 0
        %v1141 = vsel %vm851, %v1100, 0
        %v1144 = vsel %vm851, %v1101, 0
        %v1147 = vsel %vm851, %v1102, 0
        %v1150 = vsel %vm851, %v1103, 0
        %v1153 = vsel %vm851, %v1104, 0
        %v1156 = vsel %vm851, %v1105, 0
        %v1159 = vsel %vm851, %v1106, 0
        %v1162 = vsel %vm851, %v1107, 0
        %v1165 = vsel %vm851, %v1108, 0
        %v1168 = vsel %vm851, %v1109, 0
        %v1171 = vsel %vm851, %v1110, 0
        %v1174 = vsel %vm851, %v1111, 0
        %v1177 = vsel %vm851, %v1112, 0
        %v1180 = vsel %vm851, %v1113, 0
        %v1183 = vsel %vm851, %v1114, 0
        %v1186 = vsel %vm851, %v1115, 0
        %v1189 = vsel %vm851, %v1116, 0
        %v1192 = vsel %vm851, %v1117, 0
        %v1195 = vsel %vm851, %v1118, 0
        %v1198 = vsel %vm851, %v1119, 0
        %v1201 = vsel %vm851, %v1120, 0
        %v1204 = vsel %vm851, %v1121, 0
        %v1207 = vsel %vm851, %v1122, 0
        %v1210 = vsel %vm851, %v1123, 0
        %v1213 = vsel %vm851, %v1124, 0
        %v1216 = vsel %vm851, %v1125, 0
        %v1219 = vsel %vm851, %v1126, 0
        %v1222 = vsel %vm851, %v1127, 0
        %1224 = vmatpush.msra.mxu0 0.0
        %1225 = vmatpush.msra.mxu0 0.0
        %1226 = vmatpush.msra.mxu0 0.0
        %1227 = vmatpush.msra.mxu0 0.0
        %1228 = vmatpush.msra.mxu0 0.0
        %1229 = vmatpush.msra.mxu0 0.0
        %1230 = vmatpush.msra.mxu0 0.0
        %1231 = vmatpush.msra.mxu0 0.0
        %1232 = vmatpush.msra.mxu0 %v1095
        %1233 = vmatpush.msra.mxu0 %v1094
        %1234 = vmatpush.msra.mxu0 %v1093
        %1235 = vmatpush.msra.mxu0 %v1092
        %1236 = vmatpush.msra.mxu0 %v1091
        %1237 = vmatpush.msra.mxu0 %v1090
        %1238 = vmatpush.msra.mxu0 %v1089
        %1239 = vmatpush.msra.mxu0 %v1088
        %1240 = vmatmul.f32.gmra.mxu0 %v1129
        %v1241 = vpop.f32.mrf.mxu0
        %v1242 = vadd.f32 0.0, %v1241
        %1243 = vmatmul.f32.gmra.mxu0 %v1132
        %v1244 = vpop.f32.mrf.mxu0
        %v1245 = vadd.f32 0.0, %v1244
        %1246 = vmatmul.f32.gmra.mxu0 %v1135
        %v1247 = vpop.f32.mrf.mxu0
        %v1248 = vadd.f32 0.0, %v1247
        %1249 = vmatmul.f32.gmra.mxu0 %v1138
        %v1250 = vpop.f32.mrf.mxu0
        %v1251 = vadd.f32 0.0, %v1250
        %1252 = vmatmul.f32.gmra.mxu0 %v1141
        %v1253 = vpop.f32.mrf.mxu0
        %v1254 = vadd.f32 0.0, %v1253
        %1255 = vmatmul.f32.gmra.mxu0 %v1144
        %v1256 = vpop.f32.mrf.mxu0
        %v1257 = vadd.f32 0.0, %v1256
        %1258 = vmatmul.f32.gmra.mxu0 %v1147
        %v1259 = vpop.f32.mrf.mxu0
        %v1260 = vadd.f32 0.0, %v1259
        %1261 = vmatmul.f32.gmra.mxu0 %v1150
        %v1262 = vpop.f32.mrf.mxu0
        %v1263 = vadd.f32 0.0, %v1262
        %1264 = vmatmul.f32.gmra.mxu0 %v1153
        %v1265 = vpop.f32.mrf.mxu0
        %v1266 = vadd.f32 0.0, %v1265
        %1267 = vmatmul.f32.gmra.mxu0 %v1156
        %v1268 = vpop.f32.mrf.mxu0
        %v1269 = vadd.f32 0.0, %v1268
        %1270 = vmatmul.f32.gmra.mxu0 %v1159
        %v1271 = vpop.f32.mrf.mxu0
        %v1272 = vadd.f32 0.0, %v1271
        %1273 = vmatmul.f32.gmra.mxu0 %v1162
        %v1274 = vpop.f32.mrf.mxu0
        %v1275 = vadd.f32 0.0, %v1274
        %1276 = vmatmul.f32.gmra.mxu0 %v1165
        %v1277 = vpop.f32.mrf.mxu0
        %v1278 = vadd.f32 0.0, %v1277
        %1279 = vmatmul.f32.gmra.mxu0 %v1168
        %v1280 = vpop.f32.mrf.mxu0
        %v1281 = vadd.f32 0.0, %v1280
        %1282 = vmatmul.f32.gmra.mxu0 %v1171
        %v1283 = vpop.f32.mrf.mxu0
        %v1284 = vadd.f32 0.0, %v1283
        %1285 = vmatmul.f32.gmra.mxu0 %v1174
        %v1286 = vpop.f32.mrf.mxu0
        %v1287 = vadd.f32 0.0, %v1286
        %1288 = vmatmul.f32.gmra.mxu0 %v1177
        %v1289 = vpop.f32.mrf.mxu0
        %v1290 = vadd.f32 0.0, %v1289
        %1291 = vmatmul.f32.gmra.mxu0 %v1180
        %v1292 = vpop.f32.mrf.mxu0
        %v1293 = vadd.f32 0.0, %v1292
        %1294 = vmatmul.f32.gmra.mxu0 %v1183
        %v1295 = vpop.f32.mrf.mxu0
        %v1296 = vadd.f32 0.0, %v1295
        %1297 = vmatmul.f32.gmra.mxu0 %v1186
        %v1298 = vpop.f32.mrf.mxu0
        %v1299 = vadd.f32 0.0, %v1298
        %1300 = vmatmul.f32.gmra.mxu0 %v1189
        %v1301 = vpop.f32.mrf.mxu0
        %v1302 = vadd.f32 0.0, %v1301
        %1303 = vmatmul.f32.gmra.mxu0 %v1192
        %v1304 = vpop.f32.mrf.mxu0
        %v1305 = vadd.f32 0.0, %v1304
        %1306 = vmatmul.f32.gmra.mxu0 %v1195
        %v1307 = vpop.f32.mrf.mxu0
        %v1308 = vadd.f32 0.0, %v1307
        %1309 = vmatmul.f32.gmra.mxu0 %v1198
        %v1310 = vpop.f32.mrf.mxu0
        %v1311 = vadd.f32 0.0, %v1310
        %1312 = vmatmul.f32.gmra.mxu0 %v1201
        %v1313 = vpop.f32.mrf.mxu0
        %v1314 = vadd.f32 0.0, %v1313
        %1315 = vmatmul.f32.gmra.mxu0 %v1204
        %v1316 = vpop.f32.mrf.mxu0
        %v1317 = vadd.f32 0.0, %v1316
        %1318 = vmatmul.f32.gmra.mxu0 %v1207
        %v1319 = vpop.f32.mrf.mxu0
        %v1320 = vadd.f32 0.0, %v1319
        %1321 = vmatmul.f32.gmra.mxu0 %v1210
        %v1322 = vpop.f32.mrf.mxu0
        %v1323 = vadd.f32 0.0, %v1322
        %1324 = vmatmul.f32.gmra.mxu0 %v1213
        %v1325 = vpop.f32.mrf.mxu0
        %v1326 = vadd.f32 0.0, %v1325
        %1327 = vmatmul.f32.gmra.mxu0 %v1216
        %v1328 = vpop.f32.mrf.mxu0
        %v1329 = vadd.f32 0.0, %v1328
        %1330 = vmatmul.f32.gmra.mxu0 %v1219
        %v1331 = vpop.f32.mrf.mxu0
        %v1332 = vadd.f32 0.0, %v1331
        %1333 = vmatmul.f32.gmra.mxu0 %v1222
        %v1334 = vpop.f32.mrf.mxu0
        %v1335 = vadd.f32 0.0, %v1334
        %1336 = vdwg.mxu0
        %v1337 = vld [vmem:[%s7] sm:$0xff]
        %v1338 = vld [vmem:[%s7 + $0x8] sm:$0xff]
        %v1339 = vld [vmem:[%s7 + $0x10] sm:$0xff]
        %v1340 = vld [vmem:[%s7 + $0x18] sm:$0xff]
        %s1341 = scalar_lea.vmem %s7, 32
        %v1342 = vld [vmem:[%s1341] sm:$0xff]
        %v1343 = vld [vmem:[%s1341 + $0x8] sm:$0xff]
        %v1344 = vld [vmem:[%s1341 + $0x10] sm:$0xff]
        %v1345 = vld [vmem:[%s1341 + $0x18] sm:$0xff]
        %v1347 = vsel %vm918, %v1248, 0
        %v1350 = vsel %vm918, %v1251, 0
        %1352 = vmatpush.msra.mxu0 0.0
        %1353 = vmatpush.msra.mxu0 0.0
        %1354 = vmatpush.msra.mxu0 0.0
        %1355 = vmatpush.msra.mxu0 0.0
        %1356 = vmatpush.msra.mxu0 0.0
        %1357 = vmatpush.msra.mxu0 0.0
        %1358 = vmatpush.msra.mxu0 0.0
        %1359 = vmatpush.msra.mxu0 0.0
        %1360 = vmatpush.msra.mxu0 0.0
        %1361 = vmatpush.msra.mxu0 0.0
        %1362 = vmatpush.msra.mxu0 0.0
        %1363 = vmatpush.msra.mxu0 0.0
        %1364 = vmatpush.msra.mxu0 %v1345
        %1365 = vmatpush.msra.mxu0 %v1344
        %1366 = vmatpush.msra.mxu0 %v1343
        %1367 = vmatpush.msra.mxu0 %v1342
        %1368 = vmatmul.f32.gmra.mxu0 %v1347
        %v1369 = vpop.f32.mrf.mxu0
        %v1370 = vadd.f32 0.0, %v1369
        %1371 = vmatmul.f32.gmra.mxu0 %v1350
        %v1372 = vpop.f32.mrf.mxu0
        %v1373 = vadd.f32 0.0, %v1372
        %1374 = vdwg.mxu0
        %v1376 = vsel %vm918, %v1242, 0
        %v1379 = vsel %vm918, %v1245, 0
        %1381 = vmatpush.msra.mxu0 0.0
        %1382 = vmatpush.msra.mxu0 0.0
        %1383 = vmatpush.msra.mxu0 0.0
        %1384 = vmatpush.msra.mxu0 0.0
        %1385 = vmatpush.msra.mxu0 0.0
        %1386 = vmatpush.msra.mxu0 0.0
        %1387 = vmatpush.msra.mxu0 0.0
        %1388 = vmatpush.msra.mxu0 0.0
        %1389 = vmatpush.msra.mxu0 0.0
        %1390 = vmatpush.msra.mxu0 0.0
        %1391 = vmatpush.msra.mxu0 0.0
        %1392 = vmatpush.msra.mxu0 0.0
        %1393 = vmatpush.msra.mxu0 %v1340
        %1394 = vmatpush.msra.mxu0 %v1339
        %1395 = vmatpush.msra.mxu0 %v1338
        %1396 = vmatpush.msra.mxu0 %v1337
        %1397 = vmatmul.f32.gmra.mxu0 %v1376
        %v1398 = vpop.f32.mrf.mxu0
        %v1399 = vadd.f32 %v1370, %v1398
        %1400 = vmatmul.f32.gmra.mxu0 %v1379
        %v1401 = vpop.f32.mrf.mxu0
        %v1402 = vadd.f32 %v1373, %v1401
        %1403 = vdwg.mxu0
        %s1404 = scalar_lea.vmem %s7, 64
        %v1405 = vld [vmem:[%s1404] sm:$0xff]
        %v1406 = vld [vmem:[%s1404 + $0x8] sm:$0xff]
        %v1407 = vld [vmem:[%s1404 + $0x10] sm:$0xff]
        %v1408 = vld [vmem:[%s1404 + $0x18] sm:$0xff]
        %v1410 = vsel %vm918, %v1254, 0
        %v1413 = vsel %vm918, %v1257, 0
        %1415 = vmatpush.msra.mxu0 0.0
        %1416 = vmatpush.msra.mxu0 0.0
        %1417 = vmatpush.msra.mxu0 0.0
        %1418 = vmatpush.msra.mxu0 0.0
        %1419 = vmatpush.msra.mxu0 0.0
        %1420 = vmatpush.msra.mxu0 0.0
        %1421 = vmatpush.msra.mxu0 0.0
        %1422 = vmatpush.msra.mxu0 0.0
        %1423 = vmatpush.msra.mxu0 0.0
        %1424 = vmatpush.msra.mxu0 0.0
        %1425 = vmatpush.msra.mxu0 0.0
        %1426 = vmatpush.msra.mxu0 0.0
        %1427 = vmatpush.msra.mxu0 %v1408
        %1428 = vmatpush.msra.mxu0 %v1407
        %1429 = vmatpush.msra.mxu0 %v1406
        %1430 = vmatpush.msra.mxu0 %v1405
        %1431 = vmatmul.f32.gmra.mxu0 %v1410
        %v1432 = vpop.f32.mrf.mxu0
        %v1433 = vadd.f32 0.0, %v1432
        %1434 = vmatmul.f32.gmra.mxu0 %v1413
        %v1435 = vpop.f32.mrf.mxu0
        %v1436 = vadd.f32 0.0, %v1435
        %1437 = vdwg.mxu0
        %v1438 = vadd.f32 %v1399, %v1433
        %v1439 = vadd.f32 %v1402, %v1436
        %s1440 = scalar_lea.vmem %s7, 96
        %v1441 = vld [vmem:[%s1440] sm:$0xff]
        %v1442 = vld [vmem:[%s1440 + $0x8] sm:$0xff]
        %v1443 = vld [vmem:[%s1440 + $0x10] sm:$0xff]
        %v1444 = vld [vmem:[%s1440 + $0x18] sm:$0xff]
        %v1446 = vsel %vm918, %v1260, 0
        %v1449 = vsel %vm918, %v1263, 0
        %1451 = vmatpush.msra.mxu0 0.0
        %1452 = vmatpush.msra.mxu0 0.0
        %1453 = vmatpush.msra.mxu0 0.0
        %1454 = vmatpush.msra.mxu0 0.0
        %1455 = vmatpush.msra.mxu0 0.0
        %1456 = vmatpush.msra.mxu0 0.0
        %1457 = vmatpush.msra.mxu0 0.0
        %1458 = vmatpush.msra.mxu0 0.0
        %1459 = vmatpush.msra.mxu0 0.0
        %1460 = vmatpush.msra.mxu0 0.0
        %1461 = vmatpush.msra.mxu0 0.0
        %1462 = vmatpush.msra.mxu0 0.0
        %1463 = vmatpush.msra.mxu0 %v1444
        %1464 = vmatpush.msra.mxu0 %v1443
        %1465 = vmatpush.msra.mxu0 %v1442
        %1466 = vmatpush.msra.mxu0 %v1441
        %1467 = vmatmul.f32.gmra.mxu0 %v1446
        %v1468 = vpop.f32.mrf.mxu0
        %v1469 = vadd.f32 0.0, %v1468
        %1470 = vmatmul.f32.gmra.mxu0 %v1449
        %v1471 = vpop.f32.mrf.mxu0
        %v1472 = vadd.f32 0.0, %v1471
        %1473 = vdwg.mxu0
        %v1474 = vadd.f32 %v1438, %v1469
        %v1475 = vadd.f32 %v1439, %v1472
        %s1476 = scalar_lea.vmem %s7, 128
        %v1477 = vld [vmem:[%s1476] sm:$0xff]
        %v1478 = vld [vmem:[%s1476 + $0x8] sm:$0xff]
        %v1479 = vld [vmem:[%s1476 + $0x10] sm:$0xff]
        %v1480 = vld [vmem:[%s1476 + $0x18] sm:$0xff]
        %v1482 = vsel %vm918, %v1266, 0
        %v1485 = vsel %vm918, %v1269, 0
        %1487 = vmatpush.msra.mxu0 0.0
        %1488 = vmatpush.msra.mxu0 0.0
        %1489 = vmatpush.msra.mxu0 0.0
        %1490 = vmatpush.msra.mxu0 0.0
        %1491 = vmatpush.msra.mxu0 0.0
        %1492 = vmatpush.msra.mxu0 0.0
        %1493 = vmatpush.msra.mxu0 0.0
        %1494 = vmatpush.msra.mxu0 0.0
        %1495 = vmatpush.msra.mxu0 0.0
        %1496 = vmatpush.msra.mxu0 0.0
        %1497 = vmatpush.msra.mxu0 0.0
        %1498 = vmatpush.msra.mxu0 0.0
        %1499 = vmatpush.msra.mxu0 %v1480
        %1500 = vmatpush.msra.mxu0 %v1479
        %1501 = vmatpush.msra.mxu0 %v1478
        %1502 = vmatpush.msra.mxu0 %v1477
        %1503 = vmatmul.f32.gmra.mxu0 %v1482
        %v1504 = vpop.f32.mrf.mxu0
        %v1505 = vadd.f32 0.0, %v1504
        %1506 = vmatmul.f32.gmra.mxu0 %v1485
        %v1507 = vpop.f32.mrf.mxu0
        %v1508 = vadd.f32 0.0, %v1507
        %1509 = vdwg.mxu0
        %v1510 = vadd.f32 %v1474, %v1505
        %v1511 = vadd.f32 %v1475, %v1508
        %s1512 = scalar_lea.vmem %s7, 160
        %v1513 = vld [vmem:[%s1512] sm:$0xff]
        %v1514 = vld [vmem:[%s1512 + $0x8] sm:$0xff]
        %v1515 = vld [vmem:[%s1512 + $0x10] sm:$0xff]
        %v1516 = vld [vmem:[%s1512 + $0x18] sm:$0xff]
        %v1518 = vsel %vm918, %v1272, 0
        %v1521 = vsel %vm918, %v1275, 0
        %1523 = vmatpush.msra.mxu0 0.0
        %1524 = vmatpush.msra.mxu0 0.0
        %1525 = vmatpush.msra.mxu0 0.0
        %1526 = vmatpush.msra.mxu0 0.0
        %1527 = vmatpush.msra.mxu0 0.0
        %1528 = vmatpush.msra.mxu0 0.0
        %1529 = vmatpush.msra.mxu0 0.0
        %1530 = vmatpush.msra.mxu0 0.0
        %1531 = vmatpush.msra.mxu0 0.0
        %1532 = vmatpush.msra.mxu0 0.0
        %1533 = vmatpush.msra.mxu0 0.0
        %1534 = vmatpush.msra.mxu0 0.0
        %1535 = vmatpush.msra.mxu0 %v1516
        %1536 = vmatpush.msra.mxu0 %v1515
        %1537 = vmatpush.msra.mxu0 %v1514
        %1538 = vmatpush.msra.mxu0 %v1513
        %1539 = vmatmul.f32.gmra.mxu0 %v1518
        %v1540 = vpop.f32.mrf.mxu0
        %v1541 = vadd.f32 0.0, %v1540
        %1542 = vmatmul.f32.gmra.mxu0 %v1521
        %v1543 = vpop.f32.mrf.mxu0
        %v1544 = vadd.f32 0.0, %v1543
        %1545 = vdwg.mxu0
        %v1546 = vadd.f32 %v1510, %v1541
        %v1547 = vadd.f32 %v1511, %v1544
        %s1548 = scalar_lea.vmem %s7, 192
        %v1549 = vld [vmem:[%s1548] sm:$0xff]
        %v1550 = vld [vmem:[%s1548 + $0x8] sm:$0xff]
        %v1551 = vld [vmem:[%s1548 + $0x10] sm:$0xff]
        %v1552 = vld [vmem:[%s1548 + $0x18] sm:$0xff]
        %v1554 = vsel %vm918, %v1278, 0
        %v1557 = vsel %vm918, %v1281, 0
        %1559 = vmatpush.msra.mxu0 0.0
        %1560 = vmatpush.msra.mxu0 0.0
        %1561 = vmatpush.msra.mxu0 0.0
        %1562 = vmatpush.msra.mxu0 0.0
        %1563 = vmatpush.msra.mxu0 0.0
        %1564 = vmatpush.msra.mxu0 0.0
        %1565 = vmatpush.msra.mxu0 0.0
        %1566 = vmatpush.msra.mxu0 0.0
        %1567 = vmatpush.msra.mxu0 0.0
        %1568 = vmatpush.msra.mxu0 0.0
        %1569 = vmatpush.msra.mxu0 0.0
        %1570 = vmatpush.msra.mxu0 0.0
        %1571 = vmatpush.msra.mxu0 %v1552
        %1572 = vmatpush.msra.mxu0 %v1551
        %1573 = vmatpush.msra.mxu0 %v1550
        %1574 = vmatpush.msra.mxu0 %v1549
        %1575 = vmatmul.f32.gmra.mxu0 %v1554
        %v1576 = vpop.f32.mrf.mxu0
        %v1577 = vadd.f32 0.0, %v1576
        %1578 = vmatmul.f32.gmra.mxu0 %v1557
        %v1579 = vpop.f32.mrf.mxu0
        %v1580 = vadd.f32 0.0, %v1579
        %1581 = vdwg.mxu0
        %v1582 = vadd.f32 %v1546, %v1577
        %v1583 = vadd.f32 %v1547, %v1580
        %s1584 = scalar_lea.vmem %s7, 224
        %v1585 = vld [vmem:[%s1584] sm:$0xff]
        %v1586 = vld [vmem:[%s1584 + $0x8] sm:$0xff]
        %v1587 = vld [vmem:[%s1584 + $0x10] sm:$0xff]
        %v1588 = vld [vmem:[%s1584 + $0x18] sm:$0xff]
        %v1590 = vsel %vm918, %v1284, 0
        %v1593 = vsel %vm918, %v1287, 0
        %1595 = vmatpush.msra.mxu0 0.0
        %1596 = vmatpush.msra.mxu0 0.0
        %1597 = vmatpush.msra.mxu0 0.0
        %1598 = vmatpush.msra.mxu0 0.0
        %1599 = vmatpush.msra.mxu0 0.0
        %1600 = vmatpush.msra.mxu0 0.0
        %1601 = vmatpush.msra.mxu0 0.0
        %1602 = vmatpush.msra.mxu0 0.0
        %1603 = vmatpush.msra.mxu0 0.0
        %1604 = vmatpush.msra.mxu0 0.0
        %1605 = vmatpush.msra.mxu0 0.0
        %1606 = vmatpush.msra.mxu0 0.0
        %1607 = vmatpush.msra.mxu0 %v1588
        %1608 = vmatpush.msra.mxu0 %v1587
        %1609 = vmatpush.msra.mxu0 %v1586
        %1610 = vmatpush.msra.mxu0 %v1585
        %1611 = vmatmul.f32.gmra.mxu0 %v1590
        %v1612 = vpop.f32.mrf.mxu0
        %v1613 = vadd.f32 0.0, %v1612
        %1614 = vmatmul.f32.gmra.mxu0 %v1593
        %v1615 = vpop.f32.mrf.mxu0
        %v1616 = vadd.f32 0.0, %v1615
        %1617 = vdwg.mxu0
        %v1618 = vadd.f32 %v1582, %v1613
        %v1619 = vadd.f32 %v1583, %v1616
        %s1620 = scalar_lea.vmem %s7, 256
        %v1621 = vld [vmem:[%s1620] sm:$0xff]
        %v1622 = vld [vmem:[%s1620 + $0x8] sm:$0xff]
        %v1623 = vld [vmem:[%s1620 + $0x10] sm:$0xff]
        %v1624 = vld [vmem:[%s1620 + $0x18] sm:$0xff]
        %v1626 = vsel %vm918, %v1290, 0
        %v1629 = vsel %vm918, %v1293, 0
        %1631 = vmatpush.msra.mxu0 0.0
        %1632 = vmatpush.msra.mxu0 0.0
        %1633 = vmatpush.msra.mxu0 0.0
        %1634 = vmatpush.msra.mxu0 0.0
        %1635 = vmatpush.msra.mxu0 0.0
        %1636 = vmatpush.msra.mxu0 0.0
        %1637 = vmatpush.msra.mxu0 0.0
        %1638 = vmatpush.msra.mxu0 0.0
        %1639 = vmatpush.msra.mxu0 0.0
        %1640 = vmatpush.msra.mxu0 0.0
        %1641 = vmatpush.msra.mxu0 0.0
        %1642 = vmatpush.msra.mxu0 0.0
        %1643 = vmatpush.msra.mxu0 %v1624
        %1644 = vmatpush.msra.mxu0 %v1623
        %1645 = vmatpush.msra.mxu0 %v1622
        %1646 = vmatpush.msra.mxu0 %v1621
        %1647 = vmatmul.f32.gmra.mxu0 %v1626
        %v1648 = vpop.f32.mrf.mxu0
        %v1649 = vadd.f32 0.0, %v1648
        %1650 = vmatmul.f32.gmra.mxu0 %v1629
        %v1651 = vpop.f32.mrf.mxu0
        %v1652 = vadd.f32 0.0, %v1651
        %1653 = vdwg.mxu0
        %v1654 = vadd.f32 %v1618, %v1649
        %v1655 = vadd.f32 %v1619, %v1652
        %s1656 = scalar_lea.vmem %s7, 288
        %v1657 = vld [vmem:[%s1656] sm:$0xff]
        %v1658 = vld [vmem:[%s1656 + $0x8] sm:$0xff]
        %v1659 = vld [vmem:[%s1656 + $0x10] sm:$0xff]
        %v1660 = vld [vmem:[%s1656 + $0x18] sm:$0xff]
        %v1662 = vsel %vm918, %v1296, 0
        %v1665 = vsel %vm918, %v1299, 0
        %1667 = vmatpush.msra.mxu0 0.0
        %1668 = vmatpush.msra.mxu0 0.0
        %1669 = vmatpush.msra.mxu0 0.0
        %1670 = vmatpush.msra.mxu0 0.0
        %1671 = vmatpush.msra.mxu0 0.0
        %1672 = vmatpush.msra.mxu0 0.0
        %1673 = vmatpush.msra.mxu0 0.0
        %1674 = vmatpush.msra.mxu0 0.0
        %1675 = vmatpush.msra.mxu0 0.0
        %1676 = vmatpush.msra.mxu0 0.0
        %1677 = vmatpush.msra.mxu0 0.0
        %1678 = vmatpush.msra.mxu0 0.0
        %1679 = vmatpush.msra.mxu0 %v1660
        %1680 = vmatpush.msra.mxu0 %v1659
        %1681 = vmatpush.msra.mxu0 %v1658
        %1682 = vmatpush.msra.mxu0 %v1657
        %1683 = vmatmul.f32.gmra.mxu0 %v1662
        %v1684 = vpop.f32.mrf.mxu0
        %v1685 = vadd.f32 0.0, %v1684
        %1686 = vmatmul.f32.gmra.mxu0 %v1665
        %v1687 = vpop.f32.mrf.mxu0
        %v1688 = vadd.f32 0.0, %v1687
        %1689 = vdwg.mxu0
        %v1690 = vadd.f32 %v1654, %v1685
        %v1691 = vadd.f32 %v1655, %v1688
        %s1692 = scalar_lea.vmem %s7, 320
        %v1693 = vld [vmem:[%s1692] sm:$0xff]
        %v1694 = vld [vmem:[%s1692 + $0x8] sm:$0xff]
        %v1695 = vld [vmem:[%s1692 + $0x10] sm:$0xff]
        %v1696 = vld [vmem:[%s1692 + $0x18] sm:$0xff]
        %v1698 = vsel %vm918, %v1302, 0
        %v1701 = vsel %vm918, %v1305, 0
        %1703 = vmatpush.msra.mxu0 0.0
        %1704 = vmatpush.msra.mxu0 0.0
        %1705 = vmatpush.msra.mxu0 0.0
        %1706 = vmatpush.msra.mxu0 0.0
        %1707 = vmatpush.msra.mxu0 0.0
        %1708 = vmatpush.msra.mxu0 0.0
        %1709 = vmatpush.msra.mxu0 0.0
        %1710 = vmatpush.msra.mxu0 0.0
        %1711 = vmatpush.msra.mxu0 0.0
        %1712 = vmatpush.msra.mxu0 0.0
        %1713 = vmatpush.msra.mxu0 0.0
        %1714 = vmatpush.msra.mxu0 0.0
        %1715 = vmatpush.msra.mxu0 %v1696
        %1716 = vmatpush.msra.mxu0 %v1695
        %1717 = vmatpush.msra.mxu0 %v1694
        %1718 = vmatpush.msra.mxu0 %v1693
        %1719 = vmatmul.f32.gmra.mxu0 %v1698
        %v1720 = vpop.f32.mrf.mxu0
        %v1721 = vadd.f32 0.0, %v1720
        %1722 = vmatmul.f32.gmra.mxu0 %v1701
        %v1723 = vpop.f32.mrf.mxu0
        %v1724 = vadd.f32 0.0, %v1723
        %1725 = vdwg.mxu0
        %v1726 = vadd.f32 %v1690, %v1721
        %v1727 = vadd.f32 %v1691, %v1724
        %s1728 = scalar_lea.vmem %s7, 352
        %v1729 = vld [vmem:[%s1728] sm:$0xff]
        %v1730 = vld [vmem:[%s1728 + $0x8] sm:$0xff]
        %v1731 = vld [vmem:[%s1728 + $0x10] sm:$0xff]
        %v1732 = vld [vmem:[%s1728 + $0x18] sm:$0xff]
        %v1734 = vsel %vm918, %v1308, 0
        %v1737 = vsel %vm918, %v1311, 0
        %1739 = vmatpush.msra.mxu0 0.0
        %1740 = vmatpush.msra.mxu0 0.0
        %1741 = vmatpush.msra.mxu0 0.0
        %1742 = vmatpush.msra.mxu0 0.0
        %1743 = vmatpush.msra.mxu0 0.0
        %1744 = vmatpush.msra.mxu0 0.0
        %1745 = vmatpush.msra.mxu0 0.0
        %1746 = vmatpush.msra.mxu0 0.0
        %1747 = vmatpush.msra.mxu0 0.0
        %1748 = vmatpush.msra.mxu0 0.0
        %1749 = vmatpush.msra.mxu0 0.0
        %1750 = vmatpush.msra.mxu0 0.0
        %1751 = vmatpush.msra.mxu0 %v1732
        %1752 = vmatpush.msra.mxu0 %v1731
        %1753 = vmatpush.msra.mxu0 %v1730
        %1754 = vmatpush.msra.mxu0 %v1729
        %1755 = vmatmul.f32.gmra.mxu0 %v1734
        %v1756 = vpop.f32.mrf.mxu0
        %v1757 = vadd.f32 0.0, %v1756
        %1758 = vmatmul.f32.gmra.mxu0 %v1737
        %v1759 = vpop.f32.mrf.mxu0
        %v1760 = vadd.f32 0.0, %v1759
        %1761 = vdwg.mxu0
        %v1762 = vadd.f32 %v1726, %v1757
        %v1763 = vadd.f32 %v1727, %v1760
        %s1764 = scalar_lea.vmem %s7, 384
        %v1765 = vld [vmem:[%s1764] sm:$0xff]
        %v1766 = vld [vmem:[%s1764 + $0x8] sm:$0xff]
        %v1767 = vld [vmem:[%s1764 + $0x10] sm:$0xff]
        %v1768 = vld [vmem:[%s1764 + $0x18] sm:$0xff]
        %v1770 = vsel %vm918, %v1314, 0
        %v1773 = vsel %vm918, %v1317, 0
        %1775 = vmatpush.msra.mxu0 0.0
        %1776 = vmatpush.msra.mxu0 0.0
        %1777 = vmatpush.msra.mxu0 0.0
        %1778 = vmatpush.msra.mxu0 0.0
        %1779 = vmatpush.msra.mxu0 0.0
        %1780 = vmatpush.msra.mxu0 0.0
        %1781 = vmatpush.msra.mxu0 0.0
        %1782 = vmatpush.msra.mxu0 0.0
        %1783 = vmatpush.msra.mxu0 0.0
        %1784 = vmatpush.msra.mxu0 0.0
        %1785 = vmatpush.msra.mxu0 0.0
        %1786 = vmatpush.msra.mxu0 0.0
        %1787 = vmatpush.msra.mxu0 %v1768
        %1788 = vmatpush.msra.mxu0 %v1767
        %1789 = vmatpush.msra.mxu0 %v1766
        %1790 = vmatpush.msra.mxu0 %v1765
        %1791 = vmatmul.f32.gmra.mxu0 %v1770
        %v1792 = vpop.f32.mrf.mxu0
        %v1793 = vadd.f32 0.0, %v1792
        %1794 = vmatmul.f32.gmra.mxu0 %v1773
        %v1795 = vpop.f32.mrf.mxu0
        %v1796 = vadd.f32 0.0, %v1795
        %1797 = vdwg.mxu0
        %v1798 = vadd.f32 %v1762, %v1793
        %v1799 = vadd.f32 %v1763, %v1796
        %s1800 = scalar_lea.vmem %s7, 416
        %v1801 = vld [vmem:[%s1800] sm:$0xff]
        %v1802 = vld [vmem:[%s1800 + $0x8] sm:$0xff]
        %v1803 = vld [vmem:[%s1800 + $0x10] sm:$0xff]
        %v1804 = vld [vmem:[%s1800 + $0x18] sm:$0xff]
        %v1806 = vsel %vm918, %v1320, 0
        %v1809 = vsel %vm918, %v1323, 0
        %1811 = vmatpush.msra.mxu0 0.0
        %1812 = vmatpush.msra.mxu0 0.0
        %1813 = vmatpush.msra.mxu0 0.0
        %1814 = vmatpush.msra.mxu0 0.0
        %1815 = vmatpush.msra.mxu0 0.0
        %1816 = vmatpush.msra.mxu0 0.0
        %1817 = vmatpush.msra.mxu0 0.0
        %1818 = vmatpush.msra.mxu0 0.0
        %1819 = vmatpush.msra.mxu0 0.0
        %1820 = vmatpush.msra.mxu0 0.0
        %1821 = vmatpush.msra.mxu0 0.0
        %1822 = vmatpush.msra.mxu0 0.0
        %1823 = vmatpush.msra.mxu0 %v1804
        %1824 = vmatpush.msra.mxu0 %v1803
        %1825 = vmatpush.msra.mxu0 %v1802
        %1826 = vmatpush.msra.mxu0 %v1801
        %1827 = vmatmul.f32.gmra.mxu0 %v1806
        %v1828 = vpop.f32.mrf.mxu0
        %v1829 = vadd.f32 0.0, %v1828
        %1830 = vmatmul.f32.gmra.mxu0 %v1809
        %v1831 = vpop.f32.mrf.mxu0
        %v1832 = vadd.f32 0.0, %v1831
        %1833 = vdwg.mxu0
        %v1834 = vadd.f32 %v1798, %v1829
        %v1835 = vadd.f32 %v1799, %v1832
        %s1836 = scalar_lea.vmem %s7, 448
        %v1837 = vld [vmem:[%s1836] sm:$0xff]
        %v1838 = vld [vmem:[%s1836 + $0x8] sm:$0xff]
        %v1839 = vld [vmem:[%s1836 + $0x10] sm:$0xff]
        %v1840 = vld [vmem:[%s1836 + $0x18] sm:$0xff]
        %v1842 = vsel %vm918, %v1326, 0
        %v1845 = vsel %vm918, %v1329, 0
        %1847 = vmatpush.msra.mxu0 0.0
        %1848 = vmatpush.msra.mxu0 0.0
        %1849 = vmatpush.msra.mxu0 0.0
        %1850 = vmatpush.msra.mxu0 0.0
        %1851 = vmatpush.msra.mxu0 0.0
        %1852 = vmatpush.msra.mxu0 0.0
        %1853 = vmatpush.msra.mxu0 0.0
        %1854 = vmatpush.msra.mxu0 0.0
        %1855 = vmatpush.msra.mxu0 0.0
        %1856 = vmatpush.msra.mxu0 0.0
        %1857 = vmatpush.msra.mxu0 0.0
        %1858 = vmatpush.msra.mxu0 0.0
        %1859 = vmatpush.msra.mxu0 %v1840
        %1860 = vmatpush.msra.mxu0 %v1839
        %1861 = vmatpush.msra.mxu0 %v1838
        %1862 = vmatpush.msra.mxu0 %v1837
        %1863 = vmatmul.f32.gmra.mxu0 %v1842
        %v1864 = vpop.f32.mrf.mxu0
        %v1865 = vadd.f32 0.0, %v1864
        %1866 = vmatmul.f32.gmra.mxu0 %v1845
        %v1867 = vpop.f32.mrf.mxu0
        %v1868 = vadd.f32 0.0, %v1867
        %1869 = vdwg.mxu0
        %v1870 = vadd.f32 %v1834, %v1865
        %v1871 = vadd.f32 %v1835, %v1868
        %s1872 = scalar_lea.vmem %s7, 480
        %v1873 = vld [vmem:[%s1872] sm:$0xff]
        %v1874 = vld [vmem:[%s1872 + $0x8] sm:$0xff]
        %v1875 = vld [vmem:[%s1872 + $0x10] sm:$0xff]
        %v1876 = vld [vmem:[%s1872 + $0x18] sm:$0xff]
        %v1878 = vsel %vm918, %v1332, 0
        %v1881 = vsel %vm918, %v1335, 0
        %1883 = vmatpush.msra.mxu0 0.0
        %1884 = vmatpush.msra.mxu0 0.0
        %1885 = vmatpush.msra.mxu0 0.0
        %1886 = vmatpush.msra.mxu0 0.0
        %1887 = vmatpush.msra.mxu0 0.0
        %1888 = vmatpush.msra.mxu0 0.0
        %1889 = vmatpush.msra.mxu0 0.0
        %1890 = vmatpush.msra.mxu0 0.0
        %1891 = vmatpush.msra.mxu0 0.0
        %1892 = vmatpush.msra.mxu0 0.0
        %1893 = vmatpush.msra.mxu0 0.0
        %1894 = vmatpush.msra.mxu0 0.0
        %1895 = vmatpush.msra.mxu0 %v1876
        %1896 = vmatpush.msra.mxu0 %v1875
        %1897 = vmatpush.msra.mxu0 %v1874
        %1898 = vmatpush.msra.mxu0 %v1873
        %1899 = vmatmul.f32.gmra.mxu0 %v1878
        %v1900 = vpop.f32.mrf.mxu0
        %v1901 = vadd.f32 0.0, %v1900
        %1902 = vmatmul.f32.gmra.mxu0 %v1881
        %v1903 = vpop.f32.mrf.mxu0
        %v1904 = vadd.f32 0.0, %v1903
        %1905 = vdwg.mxu0
        %v1906 = vadd.f32 %v1870, %v1901
        %v1907 = vadd.f32 %v1871, %v1904
        %v1908 = vld [vmem:[%s8] sm:$0x1]
        %v1910 = vperm.slane %v1908, 0
        %v1912 = vadd.f32 %v1906, %v1910
        %v1913 = vadd.f32 %v1907, %v1910
        %s1914 = sld [smem:[#allocation3 + $0x1]]
        %v1915 = vsel %vm851, %v1912, 0.0
        %v1916 = vsel %vm851, %v1913, 0.0
        %v1917 = vadd.f32 %v1915, %v1916
        %v1918 = vrot.slane %v1917, 4
        %v1919 = vadd.f32 %v1917, %v1918
        %v1920 = vrot.slane %v1919, 2
        %v1921 = vadd.f32 %v1919, %v1920
        %v1922 = vrot.slane %v1921, 1
        %v1923 = vadd.f32 %v1921, %v1922
        %v1924 = vld [vmem:[%s11] sm:$0xff]
        %v1925 = vld [vmem:[%s11 + $0x8] sm:$0xff]
        %v1926 = vld [vmem:[%s11 + $0x10] sm:$0xff]
        %v1927 = vld [vmem:[%s11 + $0x18] sm:$0xff]
        %v1928 = vld [vmem:[%s11 + $0x20] sm:$0xff]
        %v1929 = vld [vmem:[%s11 + $0x28] sm:$0xff]
        %v1930 = vld [vmem:[%s11 + $0x30] sm:$0xff]
        %v1931 = vld [vmem:[%s11 + $0x38] sm:$0xff]
        %v1933 = vsel %vm851, %v1923, 0
        %1935 = vmatpush.msra.mxu0 0.0
        %1936 = vmatpush.msra.mxu0 0.0
        %1937 = vmatpush.msra.mxu0 0.0
        %1938 = vmatpush.msra.mxu0 0.0
        %1939 = vmatpush.msra.mxu0 0.0
        %1940 = vmatpush.msra.mxu0 0.0
        %1941 = vmatpush.msra.mxu0 0.0
        %1942 = vmatpush.msra.mxu0 0.0
        %1943 = vmatpush.msra.mxu0 %v1931
        %1944 = vmatpush.msra.mxu0 %v1930
        %1945 = vmatpush.msra.mxu0 %v1929
        %1946 = vmatpush.msra.mxu0 %v1928
        %1947 = vmatpush.msra.mxu0 %v1927
        %1948 = vmatpush.msra.mxu0 %v1926
        %1949 = vmatpush.msra.mxu0 %v1925
        %1950 = vmatpush.msra.mxu0 %v1924
        %1951 = vmatmul.f32.gmra.mxu0 %v1933
        %v1952 = vpop.f32.mrf.mxu0
        %v1953 = vadd.f32 0.0, %v1952
        %1954 = vdwg.mxu0
        %v1955 = vperm.slane %v1953, 0
        %v1956 = vsub.f32 %v1912, %v1955
        %v1957 = vsub.f32 %v1913, %v1955
        %v1958 = vmul.f32 %v1956, %v1956
        %v1959 = vmul.f32 %v1957, %v1957
        %v1960 = vsel %vm851, %v1958, 0.0
        %v1961 = vsel %vm851, %v1959, 0.0
        %v1962 = vadd.f32 %v1960, %v1961
        %v1963 = vrot.slane %v1962, 4
        %v1964 = vadd.f32 %v1962, %v1963
        %v1965 = vrot.slane %v1964, 2
        %v1966 = vadd.f32 %v1964, %v1965
        %v1967 = vrot.slane %v1966, 1
        %v1968 = vadd.f32 %v1966, %v1967
        %v1970 = vsel %vm851, %v1968, 0
        %1972 = vmatpush.msra.mxu0 0.0
        %1973 = vmatpush.msra.mxu0 0.0
        %1974 = vmatpush.msra.mxu0 0.0
        %1975 = vmatpush.msra.mxu0 0.0
        %1976 = vmatpush.msra.mxu0 0.0
        %1977 = vmatpush.msra.mxu0 0.0
        %1978 = vmatpush.msra.mxu0 0.0
        %1979 = vmatpush.msra.mxu0 0.0
        %1980 = vmatpush.msra.mxu0 %v1931
        %1981 = vmatpush.msra.mxu0 %v1930
        %1982 = vmatpush.msra.mxu0 %v1929
        %1983 = vmatpush.msra.mxu0 %v1928
        %1984 = vmatpush.msra.mxu0 %v1927
        %1985 = vmatpush.msra.mxu0 %v1926
        %1986 = vmatpush.msra.mxu0 %v1925
        %1987 = vmatpush.msra.mxu0 %v1924
        %1988 = vmatmul.f32.gmra.mxu0 %v1970
        %v1989 = vpop.f32.mrf.mxu0
        %v1990 = vadd.f32 1e-05, %v1989
        %1991 = vdwg.mxu0
        %v1992 = vrsqrt.pop %v1990
        %v1993 = vmul.f32 %v1992, %v1990
        %v1994 = vmul.f32 %v1993, %v1992
        %v1995 = vmul.f32 0.5, %v1994
        %v1996 = vsub.f32 1.5, %v1995
        %v1997 = vmul.f32 %v1992, %v1996
        %vm1998 = vweird.f32 %v1990
        %vm1999 = vweird.f32 %v1992
        %vm2000 = vmor %vm1998, %vm1999
        %v2001 = vsel %vm2000, %v1992, %v1997
        %v2002 = vperm.slane %v2001, 0
        %v2003 = vmul.f32 %v1956, %v2002
        %v2004 = vmul.f32 %v1957, %v2002
        %v2005 = vld [vmem:[%s9] sm:$0x1]
        %v2007 = vperm.slane %v2005, 0
        %v2009 = vmul.f32 %v2003, %v2007
        %v2010 = vmul.f32 %v2004, %v2007
        %v2011 = vld [vmem:[%s10] sm:$0x1]
        %v2013 = vperm.slane %v2011, 0
        %v2015 = vadd.f32 %v2009, %v2013
        %v2016 = vadd.f32 %v2010, %v2013
        %vm2017 = vcmp.ge.f32.partialorder %v2015, 0.0
        %vm2018 = vcmp.ge.f32.partialorder %v2016, 0.0
        %v2019 = vstv %s1914
        %v2020 = vmul.f32 %v2019, %v2015
        %v2021 = vmul.f32 %v2019, %v2016
        %v2022 = vsel %vm2017, %v2015, %v2020
        %v2023 = vsel %vm2018, %v2016, %v2021
        %v2024 = vld [vmem:[%s12] sm:$0xff]
        %v2025 = vld [vmem:[%s12 + $0x8] sm:$0xff]
        %v2026 = vld [vmem:[%s12 + $0x10] sm:$0xff]
        %v2027 = vld [vmem:[%s12 + $0x18] sm:$0xff]
        %v2028 = vld [vmem:[%s12 + $0x20] sm:$0xff]
        %v2029 = vld [vmem:[%s12 + $0x28] sm:$0xff]
        %v2030 = vld [vmem:[%s12 + $0x30] sm:$0xff]
        %v2031 = vld [vmem:[%s12 + $0x38] sm:$0xff]
        %vm2032 = vcmask 130048
        %v2034 = vsel %vm2032, %v2024, 0
        %v2037 = vsel %vm2032, %v2025, 0
        %v2040 = vsel %vm2032, %v2026, 0
        %v2043 = vsel %vm2032, %v2027, 0
        %v2046 = vsel %vm2032, %v2028, 0
        %v2049 = vsel %vm2032, %v2029, 0
        %v2052 = vsel %vm2032, %v2030, 0
        %v2055 = vsel %vm2032, %v2031, 0
        %2057 = vmatpush.msra.mxu0 0.0
        %2058 = vmatpush.msra.mxu0 0.0
        %2059 = vmatpush.msra.mxu0 0.0
        %2060 = vmatpush.msra.mxu0 0.0
        %2061 = vmatpush.msra.mxu0 0.0
        %2062 = vmatpush.msra.mxu0 0.0
        %2063 = vmatpush.msra.mxu0 0.0
        %2064 = vmatpush.msra.mxu0 0.0
        %2065 = vmatpush.msra.mxu0 0.0
        %2066 = vmatpush.msra.mxu0 0.0
        %2067 = vmatpush.msra.mxu0 0.0
        %2068 = vmatpush.msra.mxu0 0.0
        %2069 = vmatpush.msra.mxu0 0.0
        %2070 = vmatpush.msra.mxu0 0.0
        %2071 = vmatpush.msra.mxu0 %v2023
        %2072 = vmatpush.msra.mxu0 %v2022
        %2073 = vmatmul.f32.gmra.mxu0 %v2034
        %v2074 = vpop.f32.mrf.mxu0
        %v2075 = vadd.f32 0.0, %v2074
        %2076 = vmatmul.f32.gmra.mxu0 %v2037
        %v2077 = vpop.f32.mrf.mxu0
        %v2078 = vadd.f32 0.0, %v2077
        %2079 = vmatmul.f32.gmra.mxu0 %v2040
        %v2080 = vpop.f32.mrf.mxu0
        %v2081 = vadd.f32 0.0, %v2080
        %2082 = vmatmul.f32.gmra.mxu0 %v2043
        %v2083 = vpop.f32.mrf.mxu0
        %v2084 = vadd.f32 0.0, %v2083
        %2085 = vmatmul.f32.gmra.mxu0 %v2046
        %v2086 = vpop.f32.mrf.mxu0
        %v2087 = vadd.f32 0.0, %v2086
        %2088 = vmatmul.f32.gmra.mxu0 %v2049
        %v2089 = vpop.f32.mrf.mxu0
        %v2090 = vadd.f32 0.0, %v2089
        %2091 = vmatmul.f32.gmra.mxu0 %v2052
        %v2092 = vpop.f32.mrf.mxu0
        %v2093 = vadd.f32 0.0, %v2092
        %2094 = vmatmul.f32.gmra.mxu0 %v2055
        %v2095 = vpop.f32.mrf.mxu0
        %v2096 = vadd.f32 0.0, %v2095
        %2097 = vdwg.mxu0
        %v2098 = vld [vmem:[%s13] sm:$0xff]
        %v2099 = vld [vmem:[%s13 + $0x8] sm:$0xff]
        %v2100 = vld [vmem:[%s13 + $0x10] sm:$0xff]
        %v2101 = vld [vmem:[%s13 + $0x18] sm:$0xff]
        %v2102 = vld [vmem:[%s13 + $0x20] sm:$0xff]
        %v2103 = vld [vmem:[%s13 + $0x28] sm:$0xff]
        %v2104 = vld [vmem:[%s13 + $0x30] sm:$0xff]
        %v2105 = vld [vmem:[%s13 + $0x38] sm:$0xff]
        %s2106 = scalar_lea.vmem %s13, 64
        %v2107 = vld [vmem:[%s2106] sm:$0xff]
        %v2108 = vld [vmem:[%s2106 + $0x8] sm:$0xff]
        %v2109 = vld [vmem:[%s2106 + $0x10] sm:$0xff]
        %v2110 = vld [vmem:[%s2106 + $0x18] sm:$0xff]
        %v2111 = vld [vmem:[%s2106 + $0x20] sm:$0xff]
        %v2112 = vld [vmem:[%s2106 + $0x28] sm:$0xff]
        %v2113 = vld [vmem:[%s2106 + $0x30] sm:$0xff]
        %v2114 = vld [vmem:[%s2106 + $0x38] sm:$0xff]
        %v2116 = vrot.slane %v2075, 4
        %v2117 = vsel %vm851, %v2116, 0
        %2119 = vmatpush.msra.mxu0 0.0
        %2120 = vmatpush.msra.mxu0 0.0
        %2121 = vmatpush.msra.mxu0 0.0
        %2122 = vmatpush.msra.mxu0 0.0
        %2123 = vmatpush.msra.mxu0 0.0
        %2124 = vmatpush.msra.mxu0 0.0
        %2125 = vmatpush.msra.mxu0 0.0
        %2126 = vmatpush.msra.mxu0 0.0
        %2127 = vmatpush.msra.mxu0 %v2114
        %2128 = vmatpush.msra.mxu0 %v2113
        %2129 = vmatpush.msra.mxu0 %v2112
        %2130 = vmatpush.msra.mxu0 %v2111
        %2131 = vmatpush.msra.mxu0 %v2110
        %2132 = vmatpush.msra.mxu0 %v2109
        %2133 = vmatpush.msra.mxu0 %v2108
        %2134 = vmatpush.msra.mxu0 %v2107
        %2135 = vmatmul.f32.gmra.mxu0 %v2117
        %v2136 = vpop.f32.mrf.mxu0
        %v2137 = vadd.f32 0.0, %v2136
        %2138 = vdwg.mxu0
        %v2139 = vsel %vm851, %v2075, 0
        %2141 = vmatpush.msra.mxu0 0.0
        %2142 = vmatpush.msra.mxu0 0.0
        %2143 = vmatpush.msra.mxu0 0.0
        %2144 = vmatpush.msra.mxu0 0.0
        %2145 = vmatpush.msra.mxu0 0.0
        %2146 = vmatpush.msra.mxu0 0.0
        %2147 = vmatpush.msra.mxu0 0.0
        %2148 = vmatpush.msra.mxu0 0.0
        %2149 = vmatpush.msra.mxu0 %v2105
        %2150 = vmatpush.msra.mxu0 %v2104
        %2151 = vmatpush.msra.mxu0 %v2103
        %2152 = vmatpush.msra.mxu0 %v2102
        %2153 = vmatpush.msra.mxu0 %v2101
        %2154 = vmatpush.msra.mxu0 %v2100
        %2155 = vmatpush.msra.mxu0 %v2099
        %2156 = vmatpush.msra.mxu0 %v2098
        %2157 = vmatmul.f32.gmra.mxu0 %v2139
        %v2158 = vpop.f32.mrf.mxu0
        %v2159 = vadd.f32 %v2137, %v2158
        %2160 = vdwg.mxu0
        %s2161 = scalar_lea.vmem %s13, 128
        %v2162 = vld [vmem:[%s2161] sm:$0xff]
        %v2163 = vld [vmem:[%s2161 + $0x8] sm:$0xff]
        %v2164 = vld [vmem:[%s2161 + $0x10] sm:$0xff]
        %v2165 = vld [vmem:[%s2161 + $0x18] sm:$0xff]
        %v2166 = vld [vmem:[%s2161 + $0x20] sm:$0xff]
        %v2167 = vld [vmem:[%s2161 + $0x28] sm:$0xff]
        %v2168 = vld [vmem:[%s2161 + $0x30] sm:$0xff]
        %v2169 = vld [vmem:[%s2161 + $0x38] sm:$0xff]
        %v2171 = vsel %vm851, %v2078, 0
        %2173 = vmatpush.msra.mxu0 0.0
        %2174 = vmatpush.msra.mxu0 0.0
        %2175 = vmatpush.msra.mxu0 0.0
        %2176 = vmatpush.msra.mxu0 0.0
        %2177 = vmatpush.msra.mxu0 0.0
        %2178 = vmatpush.msra.mxu0 0.0
        %2179 = vmatpush.msra.mxu0 0.0
        %2180 = vmatpush.msra.mxu0 0.0
        %2181 = vmatpush.msra.mxu0 %v2169
        %2182 = vmatpush.msra.mxu0 %v2168
        %2183 = vmatpush.msra.mxu0 %v2167
        %2184 = vmatpush.msra.mxu0 %v2166
        %2185 = vmatpush.msra.mxu0 %v2165
        %2186 = vmatpush.msra.mxu0 %v2164
        %2187 = vmatpush.msra.mxu0 %v2163
        %2188 = vmatpush.msra.mxu0 %v2162
        %2189 = vmatmul.f32.gmra.mxu0 %v2171
        %v2190 = vpop.f32.mrf.mxu0
        %v2191 = vadd.f32 0.0, %v2190
        %2192 = vdwg.mxu0
        %v2193 = vadd.f32 %v2159, %v2191
        %s2194 = scalar_lea.vmem %s13, 192
        %v2195 = vld [vmem:[%s2194] sm:$0xff]
        %v2196 = vld [vmem:[%s2194 + $0x8] sm:$0xff]
        %v2197 = vld [vmem:[%s2194 + $0x10] sm:$0xff]
        %v2198 = vld [vmem:[%s2194 + $0x18] sm:$0xff]
        %v2199 = vld [vmem:[%s2194 + $0x20] sm:$0xff]
        %v2200 = vld [vmem:[%s2194 + $0x28] sm:$0xff]
        %v2201 = vld [vmem:[%s2194 + $0x30] sm:$0xff]
        %v2202 = vld [vmem:[%s2194 + $0x38] sm:$0xff]
        %v2203 = vrot.slane %v2078, 4
        %v2204 = vsel %vm851, %v2203, 0
        %2206 = vmatpush.msra.mxu0 0.0
        %2207 = vmatpush.msra.mxu0 0.0
        %2208 = vmatpush.msra.mxu0 0.0
        %2209 = vmatpush.msra.mxu0 0.0
        %2210 = vmatpush.msra.mxu0 0.0
        %2211 = vmatpush.msra.mxu0 0.0
        %2212 = vmatpush.msra.mxu0 0.0
        %2213 = vmatpush.msra.mxu0 0.0
        %2214 = vmatpush.msra.mxu0 %v2202
        %2215 = vmatpush.msra.mxu0 %v2201
        %2216 = vmatpush.msra.mxu0 %v2200
        %2217 = vmatpush.msra.mxu0 %v2199
        %2218 = vmatpush.msra.mxu0 %v2198
        %2219 = vmatpush.msra.mxu0 %v2197
        %2220 = vmatpush.msra.mxu0 %v2196
        %2221 = vmatpush.msra.mxu0 %v2195
        %2222 = vmatmul.f32.gmra.mxu0 %v2204
        %v2223 = vpop.f32.mrf.mxu0
        %v2224 = vadd.f32 0.0, %v2223
        %2225 = vdwg.mxu0
        %v2226 = vadd.f32 %v2193, %v2224
        %s2227 = scalar_lea.vmem %s13, 256
        %v2228 = vld [vmem:[%s2227] sm:$0xff]
        %v2229 = vld [vmem:[%s2227 + $0x8] sm:$0xff]
        %v2230 = vld [vmem:[%s2227 + $0x10] sm:$0xff]
        %v2231 = vld [vmem:[%s2227 + $0x18] sm:$0xff]
        %v2232 = vld [vmem:[%s2227 + $0x20] sm:$0xff]
        %v2233 = vld [vmem:[%s2227 + $0x28] sm:$0xff]
        %v2234 = vld [vmem:[%s2227 + $0x30] sm:$0xff]
        %v2235 = vld [vmem:[%s2227 + $0x38] sm:$0xff]
        %v2237 = vsel %vm851, %v2081, 0
        %2239 = vmatpush.msra.mxu0 0.0
        %2240 = vmatpush.msra.mxu0 0.0
        %2241 = vmatpush.msra.mxu0 0.0
        %2242 = vmatpush.msra.mxu0 0.0
        %2243 = vmatpush.msra.mxu0 0.0
        %2244 = vmatpush.msra.mxu0 0.0
        %2245 = vmatpush.msra.mxu0 0.0
        %2246 = vmatpush.msra.mxu0 0.0
        %2247 = vmatpush.msra.mxu0 %v2235
        %2248 = vmatpush.msra.mxu0 %v2234
        %2249 = vmatpush.msra.mxu0 %v2233
        %2250 = vmatpush.msra.mxu0 %v2232
        %2251 = vmatpush.msra.mxu0 %v2231
        %2252 = vmatpush.msra.mxu0 %v2230
        %2253 = vmatpush.msra.mxu0 %v2229
        %2254 = vmatpush.msra.mxu0 %v2228
        %2255 = vmatmul.f32.gmra.mxu0 %v2237
        %v2256 = vpop.f32.mrf.mxu0
        %v2257 = vadd.f32 0.0, %v2256
        %2258 = vdwg.mxu0
        %v2259 = vadd.f32 %v2226, %v2257
        %s2260 = scalar_lea.vmem %s13, 320
        %v2261 = vld [vmem:[%s2260] sm:$0xff]
        %v2262 = vld [vmem:[%s2260 + $0x8] sm:$0xff]
        %v2263 = vld [vmem:[%s2260 + $0x10] sm:$0xff]
        %v2264 = vld [vmem:[%s2260 + $0x18] sm:$0xff]
        %v2265 = vld [vmem:[%s2260 + $0x20] sm:$0xff]
        %v2266 = vld [vmem:[%s2260 + $0x28] sm:$0xff]
        %v2267 = vld [vmem:[%s2260 + $0x30] sm:$0xff]
        %v2268 = vld [vmem:[%s2260 + $0x38] sm:$0xff]
        %v2269 = vrot.slane %v2081, 4
        %v2270 = vsel %vm851, %v2269, 0
        %2272 = vmatpush.msra.mxu0 0.0
        %2273 = vmatpush.msra.mxu0 0.0
        %2274 = vmatpush.msra.mxu0 0.0
        %2275 = vmatpush.msra.mxu0 0.0
        %2276 = vmatpush.msra.mxu0 0.0
        %2277 = vmatpush.msra.mxu0 0.0
        %2278 = vmatpush.msra.mxu0 0.0
        %2279 = vmatpush.msra.mxu0 0.0
        %2280 = vmatpush.msra.mxu0 %v2268
        %2281 = vmatpush.msra.mxu0 %v2267
        %2282 = vmatpush.msra.mxu0 %v2266
        %2283 = vmatpush.msra.mxu0 %v2265
        %2284 = vmatpush.msra.mxu0 %v2264
        %2285 = vmatpush.msra.mxu0 %v2263
        %2286 = vmatpush.msra.mxu0 %v2262
        %2287 = vmatpush.msra.mxu0 %v2261
        %2288 = vmatmul.f32.gmra.mxu0 %v2270
        %v2289 = vpop.f32.mrf.mxu0
        %v2290 = vadd.f32 0.0, %v2289
        %2291 = vdwg.mxu0
        %v2292 = vadd.f32 %v2259, %v2290
        %s2293 = scalar_lea.vmem %s13, 384
        %v2294 = vld [vmem:[%s2293] sm:$0xff]
        %v2295 = vld [vmem:[%s2293 + $0x8] sm:$0xff]
        %v2296 = vld [vmem:[%s2293 + $0x10] sm:$0xff]
        %v2297 = vld [vmem:[%s2293 + $0x18] sm:$0xff]
        %v2298 = vld [vmem:[%s2293 + $0x20] sm:$0xff]
        %v2299 = vld [vmem:[%s2293 + $0x28] sm:$0xff]
        %v2300 = vld [vmem:[%s2293 + $0x30] sm:$0xff]
        %v2301 = vld [vmem:[%s2293 + $0x38] sm:$0xff]
        %v2303 = vsel %vm851, %v2084, 0
        %2305 = vmatpush.msra.mxu0 0.0
        %2306 = vmatpush.msra.mxu0 0.0
        %2307 = vmatpush.msra.mxu0 0.0
        %2308 = vmatpush.msra.mxu0 0.0
        %2309 = vmatpush.msra.mxu0 0.0
        %2310 = vmatpush.msra.mxu0 0.0
        %2311 = vmatpush.msra.mxu0 0.0
        %2312 = vmatpush.msra.mxu0 0.0
        %2313 = vmatpush.msra.mxu0 %v2301
        %2314 = vmatpush.msra.mxu0 %v2300
        %2315 = vmatpush.msra.mxu0 %v2299
        %2316 = vmatpush.msra.mxu0 %v2298
        %2317 = vmatpush.msra.mxu0 %v2297
        %2318 = vmatpush.msra.mxu0 %v2296
        %2319 = vmatpush.msra.mxu0 %v2295
        %2320 = vmatpush.msra.mxu0 %v2294
        %2321 = vmatmul.f32.gmra.mxu0 %v2303
        %v2322 = vpop.f32.mrf.mxu0
        %v2323 = vadd.f32 0.0, %v2322
        %2324 = vdwg.mxu0
        %v2325 = vadd.f32 %v2292, %v2323
        %s2326 = scalar_lea.vmem %s13, 448
        %v2327 = vld [vmem:[%s2326] sm:$0xff]
        %v2328 = vld [vmem:[%s2326 + $0x8] sm:$0xff]
        %v2329 = vld [vmem:[%s2326 + $0x10] sm:$0xff]
        %v2330 = vld [vmem:[%s2326 + $0x18] sm:$0xff]
        %v2331 = vld [vmem:[%s2326 + $0x20] sm:$0xff]
        %v2332 = vld [vmem:[%s2326 + $0x28] sm:$0xff]
        %v2333 = vld [vmem:[%s2326 + $0x30] sm:$0xff]
        %v2334 = vld [vmem:[%s2326 + $0x38] sm:$0xff]
        %v2335 = vrot.slane %v2084, 4
        %v2336 = vsel %vm851, %v2335, 0
        %2338 = vmatpush.msra.mxu0 0.0
        %2339 = vmatpush.msra.mxu0 0.0
        %2340 = vmatpush.msra.mxu0 0.0
        %2341 = vmatpush.msra.mxu0 0.0
        %2342 = vmatpush.msra.mxu0 0.0
        %2343 = vmatpush.msra.mxu0 0.0
        %2344 = vmatpush.msra.mxu0 0.0
        %2345 = vmatpush.msra.mxu0 0.0
        %2346 = vmatpush.msra.mxu0 %v2334
        %2347 = vmatpush.msra.mxu0 %v2333
        %2348 = vmatpush.msra.mxu0 %v2332
        %2349 = vmatpush.msra.mxu0 %v2331
        %2350 = vmatpush.msra.mxu0 %v2330
        %2351 = vmatpush.msra.mxu0 %v2329
        %2352 = vmatpush.msra.mxu0 %v2328
        %2353 = vmatpush.msra.mxu0 %v2327
        %2354 = vmatmul.f32.gmra.mxu0 %v2336
        %v2355 = vpop.f32.mrf.mxu0
        %v2356 = vadd.f32 0.0, %v2355
        %2357 = vdwg.mxu0
        %v2358 = vadd.f32 %v2325, %v2356
        %s2359 = scalar_lea.vmem %s13, 512
        %v2360 = vld [vmem:[%s2359] sm:$0xff]
        %v2361 = vld [vmem:[%s2359 + $0x8] sm:$0xff]
        %v2362 = vld [vmem:[%s2359 + $0x10] sm:$0xff]
        %v2363 = vld [vmem:[%s2359 + $0x18] sm:$0xff]
        %v2364 = vld [vmem:[%s2359 + $0x20] sm:$0xff]
        %v2365 = vld [vmem:[%s2359 + $0x28] sm:$0xff]
        %v2366 = vld [vmem:[%s2359 + $0x30] sm:$0xff]
        %v2367 = vld [vmem:[%s2359 + $0x38] sm:$0xff]
        %v2369 = vsel %vm851, %v2087, 0
        %2371 = vmatpush.msra.mxu0 0.0
        %2372 = vmatpush.msra.mxu0 0.0
        %2373 = vmatpush.msra.mxu0 0.0
        %2374 = vmatpush.msra.mxu0 0.0
        %2375 = vmatpush.msra.mxu0 0.0
        %2376 = vmatpush.msra.mxu0 0.0
        %2377 = vmatpush.msra.mxu0 0.0
        %2378 = vmatpush.msra.mxu0 0.0
        %2379 = vmatpush.msra.mxu0 %v2367
        %2380 = vmatpush.msra.mxu0 %v2366
        %2381 = vmatpush.msra.mxu0 %v2365
        %2382 = vmatpush.msra.mxu0 %v2364
        %2383 = vmatpush.msra.mxu0 %v2363
        %2384 = vmatpush.msra.mxu0 %v2362
        %2385 = vmatpush.msra.mxu0 %v2361
        %2386 = vmatpush.msra.mxu0 %v2360
        %2387 = vmatmul.f32.gmra.mxu0 %v2369
        %v2388 = vpop.f32.mrf.mxu0
        %v2389 = vadd.f32 0.0, %v2388
        %2390 = vdwg.mxu0
        %v2391 = vadd.f32 %v2358, %v2389
        %s2392 = scalar_lea.vmem %s13, 576
        %v2393 = vld [vmem:[%s2392] sm:$0xff]
        %v2394 = vld [vmem:[%s2392 + $0x8] sm:$0xff]
        %v2395 = vld [vmem:[%s2392 + $0x10] sm:$0xff]
        %v2396 = vld [vmem:[%s2392 + $0x18] sm:$0xff]
        %v2397 = vld [vmem:[%s2392 + $0x20] sm:$0xff]
        %v2398 = vld [vmem:[%s2392 + $0x28] sm:$0xff]
        %v2399 = vld [vmem:[%s2392 + $0x30] sm:$0xff]
        %v2400 = vld [vmem:[%s2392 + $0x38] sm:$0xff]
        %v2401 = vrot.slane %v2087, 4
        %v2402 = vsel %vm851, %v2401, 0
        %2404 = vmatpush.msra.mxu0 0.0
        %2405 = vmatpush.msra.mxu0 0.0
        %2406 = vmatpush.msra.mxu0 0.0
        %2407 = vmatpush.msra.mxu0 0.0
        %2408 = vmatpush.msra.mxu0 0.0
        %2409 = vmatpush.msra.mxu0 0.0
        %2410 = vmatpush.msra.mxu0 0.0
        %2411 = vmatpush.msra.mxu0 0.0
        %2412 = vmatpush.msra.mxu0 %v2400
        %2413 = vmatpush.msra.mxu0 %v2399
        %2414 = vmatpush.msra.mxu0 %v2398
        %2415 = vmatpush.msra.mxu0 %v2397
        %2416 = vmatpush.msra.mxu0 %v2396
        %2417 = vmatpush.msra.mxu0 %v2395
        %2418 = vmatpush.msra.mxu0 %v2394
        %2419 = vmatpush.msra.mxu0 %v2393
        %2420 = vmatmul.f32.gmra.mxu0 %v2402
        %v2421 = vpop.f32.mrf.mxu0
        %v2422 = vadd.f32 0.0, %v2421
        %2423 = vdwg.mxu0
        %v2424 = vadd.f32 %v2391, %v2422
        %s2425 = scalar_lea.vmem %s13, 640
        %v2426 = vld [vmem:[%s2425] sm:$0xff]
        %v2427 = vld [vmem:[%s2425 + $0x8] sm:$0xff]
        %v2428 = vld [vmem:[%s2425 + $0x10] sm:$0xff]
        %v2429 = vld [vmem:[%s2425 + $0x18] sm:$0xff]
        %v2430 = vld [vmem:[%s2425 + $0x20] sm:$0xff]
        %v2431 = vld [vmem:[%s2425 + $0x28] sm:$0xff]
        %v2432 = vld [vmem:[%s2425 + $0x30] sm:$0xff]
        %v2433 = vld [vmem:[%s2425 + $0x38] sm:$0xff]
        %v2435 = vsel %vm851, %v2090, 0
        %2437 = vmatpush.msra.mxu0 0.0
        %2438 = vmatpush.msra.mxu0 0.0
        %2439 = vmatpush.msra.mxu0 0.0
        %2440 = vmatpush.msra.mxu0 0.0
        %2441 = vmatpush.msra.mxu0 0.0
        %2442 = vmatpush.msra.mxu0 0.0
        %2443 = vmatpush.msra.mxu0 0.0
        %2444 = vmatpush.msra.mxu0 0.0
        %2445 = vmatpush.msra.mxu0 %v2433
        %2446 = vmatpush.msra.mxu0 %v2432
        %2447 = vmatpush.msra.mxu0 %v2431
        %2448 = vmatpush.msra.mxu0 %v2430
        %2449 = vmatpush.msra.mxu0 %v2429
        %2450 = vmatpush.msra.mxu0 %v2428
        %2451 = vmatpush.msra.mxu0 %v2427
        %2452 = vmatpush.msra.mxu0 %v2426
        %2453 = vmatmul.f32.gmra.mxu0 %v2435
        %v2454 = vpop.f32.mrf.mxu0
        %v2455 = vadd.f32 0.0, %v2454
        %2456 = vdwg.mxu0
        %v2457 = vadd.f32 %v2424, %v2455
        %s2458 = scalar_lea.vmem %s13, 704
        %v2459 = vld [vmem:[%s2458] sm:$0xff]
        %v2460 = vld [vmem:[%s2458 + $0x8] sm:$0xff]
        %v2461 = vld [vmem:[%s2458 + $0x10] sm:$0xff]
        %v2462 = vld [vmem:[%s2458 + $0x18] sm:$0xff]
        %v2463 = vld [vmem:[%s2458 + $0x20] sm:$0xff]
        %v2464 = vld [vmem:[%s2458 + $0x28] sm:$0xff]
        %v2465 = vld [vmem:[%s2458 + $0x30] sm:$0xff]
        %v2466 = vld [vmem:[%s2458 + $0x38] sm:$0xff]
        %v2467 = vrot.slane %v2090, 4
        %v2468 = vsel %vm851, %v2467, 0
        %2470 = vmatpush.msra.mxu0 0.0
        %2471 = vmatpush.msra.mxu0 0.0
        %2472 = vmatpush.msra.mxu0 0.0
        %2473 = vmatpush.msra.mxu0 0.0
        %2474 = vmatpush.msra.mxu0 0.0
        %2475 = vmatpush.msra.mxu0 0.0
        %2476 = vmatpush.msra.mxu0 0.0
        %2477 = vmatpush.msra.mxu0 0.0
        %2478 = vmatpush.msra.mxu0 %v2466
        %2479 = vmatpush.msra.mxu0 %v2465
        %2480 = vmatpush.msra.mxu0 %v2464
        %2481 = vmatpush.msra.mxu0 %v2463
        %2482 = vmatpush.msra.mxu0 %v2462
        %2483 = vmatpush.msra.mxu0 %v2461
        %2484 = vmatpush.msra.mxu0 %v2460
        %2485 = vmatpush.msra.mxu0 %v2459
        %2486 = vmatmul.f32.gmra.mxu0 %v2468
        %v2487 = vpop.f32.mrf.mxu0
        %v2488 = vadd.f32 0.0, %v2487
        %2489 = vdwg.mxu0
        %v2490 = vadd.f32 %v2457, %v2488
        %s2491 = scalar_lea.vmem %s13, 768
        %v2492 = vld [vmem:[%s2491] sm:$0xff]
        %v2493 = vld [vmem:[%s2491 + $0x8] sm:$0xff]
        %v2494 = vld [vmem:[%s2491 + $0x10] sm:$0xff]
        %v2495 = vld [vmem:[%s2491 + $0x18] sm:$0xff]
        %v2496 = vld [vmem:[%s2491 + $0x20] sm:$0xff]
        %v2497 = vld [vmem:[%s2491 + $0x28] sm:$0xff]
        %v2498 = vld [vmem:[%s2491 + $0x30] sm:$0xff]
        %v2499 = vld [vmem:[%s2491 + $0x38] sm:$0xff]
        %v2501 = vsel %vm851, %v2093, 0
        %2503 = vmatpush.msra.mxu0 0.0
        %2504 = vmatpush.msra.mxu0 0.0
        %2505 = vmatpush.msra.mxu0 0.0
        %2506 = vmatpush.msra.mxu0 0.0
        %2507 = vmatpush.msra.mxu0 0.0
        %2508 = vmatpush.msra.mxu0 0.0
        %2509 = vmatpush.msra.mxu0 0.0
        %2510 = vmatpush.msra.mxu0 0.0
        %2511 = vmatpush.msra.mxu0 %v2499
        %2512 = vmatpush.msra.mxu0 %v2498
        %2513 = vmatpush.msra.mxu0 %v2497
        %2514 = vmatpush.msra.mxu0 %v2496
        %2515 = vmatpush.msra.mxu0 %v2495
        %2516 = vmatpush.msra.mxu0 %v2494
        %2517 = vmatpush.msra.mxu0 %v2493
        %2518 = vmatpush.msra.mxu0 %v2492
        %2519 = vmatmul.f32.gmra.mxu0 %v2501
        %v2520 = vpop.f32.mrf.mxu0
        %v2521 = vadd.f32 0.0, %v2520
        %2522 = vdwg.mxu0
        %v2523 = vadd.f32 %v2490, %v2521
        %s2524 = scalar_lea.vmem %s13, 832
        %v2525 = vld [vmem:[%s2524] sm:$0xff]
        %v2526 = vld [vmem:[%s2524 + $0x8] sm:$0xff]
        %v2527 = vld [vmem:[%s2524 + $0x10] sm:$0xff]
        %v2528 = vld [vmem:[%s2524 + $0x18] sm:$0xff]
        %v2529 = vld [vmem:[%s2524 + $0x20] sm:$0xff]
        %v2530 = vld [vmem:[%s2524 + $0x28] sm:$0xff]
        %v2531 = vld [vmem:[%s2524 + $0x30] sm:$0xff]
        %v2532 = vld [vmem:[%s2524 + $0x38] sm:$0xff]
        %v2533 = vrot.slane %v2093, 4
        %v2534 = vsel %vm851, %v2533, 0
        %2536 = vmatpush.msra.mxu0 0.0
        %2537 = vmatpush.msra.mxu0 0.0
        %2538 = vmatpush.msra.mxu0 0.0
        %2539 = vmatpush.msra.mxu0 0.0
        %2540 = vmatpush.msra.mxu0 0.0
        %2541 = vmatpush.msra.mxu0 0.0
        %2542 = vmatpush.msra.mxu0 0.0
        %2543 = vmatpush.msra.mxu0 0.0
        %2544 = vmatpush.msra.mxu0 %v2532
        %2545 = vmatpush.msra.mxu0 %v2531
        %2546 = vmatpush.msra.mxu0 %v2530
        %2547 = vmatpush.msra.mxu0 %v2529
        %2548 = vmatpush.msra.mxu0 %v2528
        %2549 = vmatpush.msra.mxu0 %v2527
        %2550 = vmatpush.msra.mxu0 %v2526
        %2551 = vmatpush.msra.mxu0 %v2525
        %2552 = vmatmul.f32.gmra.mxu0 %v2534
        %v2553 = vpop.f32.mrf.mxu0
        %v2554 = vadd.f32 0.0, %v2553
        %2555 = vdwg.mxu0
        %v2556 = vadd.f32 %v2523, %v2554
        %s2557 = scalar_lea.vmem %s13, 896
        %v2558 = vld [vmem:[%s2557] sm:$0xff]
        %v2559 = vld [vmem:[%s2557 + $0x8] sm:$0xff]
        %v2560 = vld [vmem:[%s2557 + $0x10] sm:$0xff]
        %v2561 = vld [vmem:[%s2557 + $0x18] sm:$0xff]
        %v2562 = vld [vmem:[%s2557 + $0x20] sm:$0xff]
        %v2563 = vld [vmem:[%s2557 + $0x28] sm:$0xff]
        %v2564 = vld [vmem:[%s2557 + $0x30] sm:$0xff]
        %v2565 = vld [vmem:[%s2557 + $0x38] sm:$0xff]
        %v2567 = vsel %vm851, %v2096, 0
        %2569 = vmatpush.msra.mxu0 0.0
        %2570 = vmatpush.msra.mxu0 0.0
        %2571 = vmatpush.msra.mxu0 0.0
        %2572 = vmatpush.msra.mxu0 0.0
        %2573 = vmatpush.msra.mxu0 0.0
        %2574 = vmatpush.msra.mxu0 0.0
        %2575 = vmatpush.msra.mxu0 0.0
        %2576 = vmatpush.msra.mxu0 0.0
        %2577 = vmatpush.msra.mxu0 %v2565
        %2578 = vmatpush.msra.mxu0 %v2564
        %2579 = vmatpush.msra.mxu0 %v2563
        %2580 = vmatpush.msra.mxu0 %v2562
        %2581 = vmatpush.msra.mxu0 %v2561
        %2582 = vmatpush.msra.mxu0 %v2560
        %2583 = vmatpush.msra.mxu0 %v2559
        %2584 = vmatpush.msra.mxu0 %v2558
        %2585 = vmatmul.f32.gmra.mxu0 %v2567
        %v2586 = vpop.f32.mrf.mxu0
        %v2587 = vadd.f32 0.0, %v2586
        %2588 = vdwg.mxu0
        %v2589 = vadd.f32 %v2556, %v2587
        %s2590 = scalar_lea.vmem %s13, 960
        %v2591 = vld [vmem:[%s2590] sm:$0xff]
        %v2592 = vld [vmem:[%s2590 + $0x8] sm:$0xff]
        %v2593 = vld [vmem:[%s2590 + $0x10] sm:$0xff]
        %v2594 = vld [vmem:[%s2590 + $0x18] sm:$0xff]
        %v2595 = vld [vmem:[%s2590 + $0x20] sm:$0xff]
        %v2596 = vld [vmem:[%s2590 + $0x28] sm:$0xff]
        %v2597 = vld [vmem:[%s2590 + $0x30] sm:$0xff]
        %v2598 = vld [vmem:[%s2590 + $0x38] sm:$0xff]
        %v2599 = vrot.slane %v2096, 4
        %v2600 = vsel %vm851, %v2599, 0
        %2602 = vmatpush.msra.mxu0 0.0
        %2603 = vmatpush.msra.mxu0 0.0
        %2604 = vmatpush.msra.mxu0 0.0
        %2605 = vmatpush.msra.mxu0 0.0
        %2606 = vmatpush.msra.mxu0 0.0
        %2607 = vmatpush.msra.mxu0 0.0
        %2608 = vmatpush.msra.mxu0 0.0
        %2609 = vmatpush.msra.mxu0 0.0
        %2610 = vmatpush.msra.mxu0 %v2598
        %2611 = vmatpush.msra.mxu0 %v2597
        %2612 = vmatpush.msra.mxu0 %v2596
        %2613 = vmatpush.msra.mxu0 %v2595
        %2614 = vmatpush.msra.mxu0 %v2594
        %2615 = vmatpush.msra.mxu0 %v2593
        %2616 = vmatpush.msra.mxu0 %v2592
        %2617 = vmatpush.msra.mxu0 %v2591
        %2618 = vmatmul.f32.gmra.mxu0 %v2600
        %v2619 = vpop.f32.mrf.mxu0
        %v2620 = vadd.f32 0.0, %v2619
        %2621 = vdwg.mxu0
        %v2622 = vadd.f32 %v2589, %v2620
        %v2623 = vld [vmem:[%s14] sm:$0x1]
        %v2625 = vperm.slane %v2623, 0
        %v2627 = vadd.f32 %v2622, %v2625
        %s2628 = sld [smem:[#allocation3 + $0x2]]
        %vm2629 = vcmask 1043456
        %v2630 = vsel %vm2629, %v2627, 0.0
        %v2631 = vrot.slane %v2630, 4
        %v2632 = vadd.f32 %v2630, %v2631
        %v2633 = vrot.slane %v2632, 2
        %v2634 = vadd.f32 %v2632, %v2633
        %v2635 = vrot.slane %v2634, 1
        %v2636 = vadd.f32 %v2634, %v2635
        %v2637 = vld [vmem:[%s17] sm:$0xff]
        %v2638 = vld [vmem:[%s17 + $0x8] sm:$0xff]
        %v2639 = vld [vmem:[%s17 + $0x10] sm:$0xff]
        %v2640 = vld [vmem:[%s17 + $0x18] sm:$0xff]
        %v2641 = vld [vmem:[%s17 + $0x20] sm:$0xff]
        %v2642 = vld [vmem:[%s17 + $0x28] sm:$0xff]
        %v2643 = vld [vmem:[%s17 + $0x30] sm:$0xff]
        %v2644 = vld [vmem:[%s17 + $0x38] sm:$0xff]
        %v2645 = vld [vmem:[%s17 + $0x40] sm:$0xff]
        %v2646 = vld [vmem:[%s17 + $0x48] sm:$0xff]
        %v2647 = vld [vmem:[%s17 + $0x50] sm:$0xff]
        %v2648 = vld [vmem:[%s17 + $0x58] sm:$0xff]
        %v2649 = vld [vmem:[%s17 + $0x60] sm:$0xff]
        %v2650 = vld [vmem:[%s17 + $0x68] sm:$0xff]
        %v2651 = vld [vmem:[%s17 + $0x70] sm:$0xff]
        %v2652 = vld [vmem:[%s17 + $0x78] sm:$0xff]
        %2653 = vmatpush.msra.mxu0 %v2652
        %2654 = vmatpush.msra.mxu0 %v2651
        %2655 = vmatpush.msra.mxu0 %v2650
        %2656 = vmatpush.msra.mxu0 %v2649
        %2657 = vmatpush.msra.mxu0 %v2648
        %2658 = vmatpush.msra.mxu0 %v2647
        %2659 = vmatpush.msra.mxu0 %v2646
        %2660 = vmatpush.msra.mxu0 %v2645
        %2661 = vmatpush.msra.mxu0 %v2644
        %2662 = vmatpush.msra.mxu0 %v2643
        %2663 = vmatpush.msra.mxu0 %v2642
        %2664 = vmatpush.msra.mxu0 %v2641
        %2665 = vmatpush.msra.mxu0 %v2640
        %2666 = vmatpush.msra.mxu0 %v2639
        %2667 = vmatpush.msra.mxu0 %v2638
        %2668 = vmatpush.msra.mxu0 %v2637
        %2669 = vmatmul.f32.gmra.mxu0 %v2636
        %v2670 = vpop.f32.mrf.mxu0
        %v2671 = vadd.f32 0.0, %v2670
        %2672 = vdwg.mxu0
        %v2673 = vperm.slane %v2671, 0
        %v2674 = vsub.f32 %v2627, %v2673
        %v2675 = vmul.f32 %v2674, %v2674
        %v2676 = vsel %vm2629, %v2675, 0.0
        %v2677 = vrot.slane %v2676, 4
        %v2678 = vadd.f32 %v2676, %v2677
        %v2679 = vrot.slane %v2678, 2
        %v2680 = vadd.f32 %v2678, %v2679
        %v2681 = vrot.slane %v2680, 1
        %v2682 = vadd.f32 %v2680, %v2681
        %2683 = vmatpush.msra.mxu0 %v2652
        %2684 = vmatpush.msra.mxu0 %v2651
        %2685 = vmatpush.msra.mxu0 %v2650
        %2686 = vmatpush.msra.mxu0 %v2649
        %2687 = vmatpush.msra.mxu0 %v2648
        %2688 = vmatpush.msra.mxu0 %v2647
        %2689 = vmatpush.msra.mxu0 %v2646
        %2690 = vmatpush.msra.mxu0 %v2645
        %2691 = vmatpush.msra.mxu0 %v2644
        %2692 = vmatpush.msra.mxu0 %v2643
        %2693 = vmatpush.msra.mxu0 %v2642
        %2694 = vmatpush.msra.mxu0 %v2641
        %2695 = vmatpush.msra.mxu0 %v2640
        %2696 = vmatpush.msra.mxu0 %v2639
        %2697 = vmatpush.msra.mxu0 %v2638
        %2698 = vmatpush.msra.mxu0 %v2637
        %2699 = vmatmul.f32.gmra.mxu0 %v2682
        %v2700 = vpop.f32.mrf.mxu0
        %v2701 = vadd.f32 1e-05, %v2700
        %2702 = vdwg.mxu0
        %v2703 = vrsqrt.pop %v2701
        %v2704 = vmul.f32 %v2703, %v2701
        %v2705 = vmul.f32 %v2704, %v2703
        %v2706 = vmul.f32 0.5, %v2705
        %v2707 = vsub.f32 1.5, %v2706
        %v2708 = vmul.f32 %v2703, %v2707
        %vm2709 = vweird.f32 %v2701
        %vm2710 = vweird.f32 %v2703
        %vm2711 = vmor %vm2709, %vm2710
        %v2712 = vsel %vm2711, %v2703, %v2708
        %v2713 = vperm.slane %v2712, 0
        %v2714 = vmul.f32 %v2674, %v2713
        %v2715 = vld [vmem:[%s15] sm:$0x1]
        %v2717 = vperm.slane %v2715, 0
        %v2719 = vmul.f32 %v2714, %v2717
        %v2720 = vld [vmem:[%s16] sm:$0x1]
        %v2722 = vperm.slane %v2720, 0
        %v2724 = vadd.f32 %v2719, %v2722
        %vm2725 = vcmp.ge.f32.partialorder %v2724, 0.0
        %v2726 = vstv %s2628
        %v2727 = vmul.f32 %v2726, %v2724
        %v2728 = vsel %vm2725, %v2724, %v2727
        %v2729 = vld [vmem:[%s18] sm:$0xff]
        %v2730 = vld [vmem:[%s18 + $0x8] sm:$0xff]
        %vm2731 = vcmask 31744
        %v2733 = vsel %vm2731, %v2729, 0
        %v2736 = vsel %vm2731, %v2730, 0
        %v2739 = vsel %vm2629, %v2728, 0
        %2741 = vmatpush.msra.mxu0 0.0
        %2742 = vmatpush.msra.mxu0 0.0
        %2743 = vmatpush.msra.mxu0 0.0
        %2744 = vmatpush.msra.mxu0 0.0
        %2745 = vmatpush.msra.mxu0 0.0
        %2746 = vmatpush.msra.mxu0 0.0
        %2747 = vmatpush.msra.mxu0 0.0
        %2748 = vmatpush.msra.mxu0 0.0
        %2749 = vmatpush.msra.mxu0 0.0
        %2750 = vmatpush.msra.mxu0 0.0
        %2751 = vmatpush.msra.mxu0 0.0
        %2752 = vmatpush.msra.mxu0 0.0
        %2753 = vmatpush.msra.mxu0 0.0
        %2754 = vmatpush.msra.mxu0 0.0
        %2755 = vmatpush.msra.mxu0 0.0
        %2756 = vmatpush.msra.mxu0 %v2739
        %2757 = vmatmul.f32.gmra.mxu0 %v2733
        %v2758 = vpop.f32.mrf.mxu0
        %v2759 = vadd.f32 0.0, %v2758
        %2760 = vmatmul.f32.gmra.mxu0 %v2736
        %v2761 = vpop.f32.mrf.mxu0
        %v2762 = vadd.f32 0.0, %v2761
        %2763 = vdwg.mxu0
        %v2764 = vld [vmem:[%s19] sm:$0xff]
        %v2765 = vld [vmem:[%s19 + $0x8] sm:$0xff]
        %v2766 = vld [vmem:[%s19 + $0x10] sm:$0xff]
        %v2767 = vld [vmem:[%s19 + $0x18] sm:$0xff]
        %v2768 = vld [vmem:[%s19 + $0x20] sm:$0xff]
        %v2769 = vld [vmem:[%s19 + $0x28] sm:$0xff]
        %v2770 = vld [vmem:[%s19 + $0x30] sm:$0xff]
        %v2771 = vld [vmem:[%s19 + $0x38] sm:$0xff]
        %v2772 = vld [vmem:[%s19 + $0x40] sm:$0xff]
        %v2773 = vld [vmem:[%s19 + $0x48] sm:$0xff]
        %v2774 = vld [vmem:[%s19 + $0x50] sm:$0xff]
        %v2775 = vld [vmem:[%s19 + $0x58] sm:$0xff]
        %v2776 = vld [vmem:[%s19 + $0x60] sm:$0xff]
        %v2777 = vld [vmem:[%s19 + $0x68] sm:$0xff]
        %v2778 = vld [vmem:[%s19 + $0x70] sm:$0xff]
        %v2779 = vld [vmem:[%s19 + $0x78] sm:$0xff]
        %v2780 = vld [vmem:[%s19 + $0x80] sm:$0xff]
        %v2781 = vld [vmem:[%s19 + $0x88] sm:$0xff]
        %v2782 = vld [vmem:[%s19 + $0x90] sm:$0xff]
        %v2783 = vld [vmem:[%s19 + $0x98] sm:$0xff]
        %v2784 = vld [vmem:[%s19 + $0xa0] sm:$0xff]
        %v2785 = vld [vmem:[%s19 + $0xa8] sm:$0xff]
        %v2786 = vld [vmem:[%s19 + $0xb0] sm:$0xff]
        %v2787 = vld [vmem:[%s19 + $0xb8] sm:$0xff]
        %v2788 = vld [vmem:[%s19 + $0xc0] sm:$0xff]
        %v2789 = vld [vmem:[%s19 + $0xc8] sm:$0xff]
        %v2790 = vld [vmem:[%s19 + $0xd0] sm:$0xff]
        %v2791 = vld [vmem:[%s19 + $0xd8] sm:$0xff]
        %v2792 = vld [vmem:[%s19 + $0xe0] sm:$0xff]
        %v2793 = vld [vmem:[%s19 + $0xe8] sm:$0xff]
        %v2794 = vld [vmem:[%s19 + $0xf0] sm:$0xff]
        %v2795 = vld [vmem:[%s19 + $0xf8] sm:$0xff]
        %s2796 = scalar_lea.vmem %s19, 256
        %v2797 = vld [vmem:[%s2796] sm:$0xff]
        %v2798 = vld [vmem:[%s2796 + $0x8] sm:$0xff]
        %v2799 = vld [vmem:[%s2796 + $0x10] sm:$0xff]
        %v2800 = vld [vmem:[%s2796 + $0x18] sm:$0xff]
        %v2801 = vld [vmem:[%s2796 + $0x20] sm:$0xff]
        %v2802 = vld [vmem:[%s2796 + $0x28] sm:$0xff]
        %v2803 = vld [vmem:[%s2796 + $0x30] sm:$0xff]
        %v2804 = vld [vmem:[%s2796 + $0x38] sm:$0xff]
        %v2805 = vld [vmem:[%s2796 + $0x40] sm:$0xff]
        %v2806 = vld [vmem:[%s2796 + $0x48] sm:$0xff]
        %v2807 = vld [vmem:[%s2796 + $0x50] sm:$0xff]
        %v2808 = vld [vmem:[%s2796 + $0x58] sm:$0xff]
        %v2809 = vld [vmem:[%s2796 + $0x60] sm:$0xff]
        %v2810 = vld [vmem:[%s2796 + $0x68] sm:$0xff]
        %v2811 = vld [vmem:[%s2796 + $0x70] sm:$0xff]
        %v2812 = vld [vmem:[%s2796 + $0x78] sm:$0xff]
        %v2813 = vld [vmem:[%s2796 + $0x80] sm:$0xff]
        %v2814 = vld [vmem:[%s2796 + $0x88] sm:$0xff]
        %v2815 = vld [vmem:[%s2796 + $0x90] sm:$0xff]
        %v2816 = vld [vmem:[%s2796 + $0x98] sm:$0xff]
        %v2817 = vld [vmem:[%s2796 + $0xa0] sm:$0xff]
        %v2818 = vld [vmem:[%s2796 + $0xa8] sm:$0xff]
        %v2819 = vld [vmem:[%s2796 + $0xb0] sm:$0xff]
        %v2820 = vld [vmem:[%s2796 + $0xb8] sm:$0xff]
        %v2821 = vld [vmem:[%s2796 + $0xc0] sm:$0xff]
        %v2822 = vld [vmem:[%s2796 + $0xc8] sm:$0xff]
        %v2823 = vld [vmem:[%s2796 + $0xd0] sm:$0xff]
        %v2824 = vld [vmem:[%s2796 + $0xd8] sm:$0xff]
        %v2825 = vld [vmem:[%s2796 + $0xe0] sm:$0xff]
        %v2826 = vld [vmem:[%s2796 + $0xe8] sm:$0xff]
        %v2827 = vld [vmem:[%s2796 + $0xf0] sm:$0xff]
        %v2828 = vld [vmem:[%s2796 + $0xf8] sm:$0xff]
        %v2830 = vrot.slane %v2759, 1
        %2832 = vmatpush.msra.mxu0 %v2827
        %2833 = vmatpush.msra.mxu0 %v2825
        %2834 = vmatpush.msra.mxu0 %v2823
        %2835 = vmatpush.msra.mxu0 %v2821
        %2836 = vmatpush.msra.mxu0 %v2819
        %2837 = vmatpush.msra.mxu0 %v2817
        %2838 = vmatpush.msra.mxu0 %v2815
        %2839 = vmatpush.msra.mxu0 %v2813
        %2840 = vmatpush.msra.mxu0 %v2811
        %2841 = vmatpush.msra.mxu0 %v2809
        %2842 = vmatpush.msra.mxu0 %v2807
        %2843 = vmatpush.msra.mxu0 %v2805
        %2844 = vmatpush.msra.mxu0 %v2803
        %2845 = vmatpush.msra.mxu0 %v2801
        %2846 = vmatpush.msra.mxu0 %v2799
        %2847 = vmatpush.msra.mxu0 %v2797
        %2848 = vmatmul.f32.gmra.mxu0 %v2830
        %v2849 = vpop.f32.mrf.mxu0
        %v2850 = vadd.f32 0.0, %v2849
        %2851 = vdwg.mxu0
        %2852 = vmatpush.msra.mxu0 %v2828
        %2853 = vmatpush.msra.mxu0 %v2826
        %2854 = vmatpush.msra.mxu0 %v2824
        %2855 = vmatpush.msra.mxu0 %v2822
        %2856 = vmatpush.msra.mxu0 %v2820
        %2857 = vmatpush.msra.mxu0 %v2818
        %2858 = vmatpush.msra.mxu0 %v2816
        %2859 = vmatpush.msra.mxu0 %v2814
        %2860 = vmatpush.msra.mxu0 %v2812
        %2861 = vmatpush.msra.mxu0 %v2810
        %2862 = vmatpush.msra.mxu0 %v2808
        %2863 = vmatpush.msra.mxu0 %v2806
        %2864 = vmatpush.msra.mxu0 %v2804
        %2865 = vmatpush.msra.mxu0 %v2802
        %2866 = vmatpush.msra.mxu0 %v2800
        %2867 = vmatpush.msra.mxu0 %v2798
        %2868 = vmatmul.f32.gmra.mxu0 %v2830
        %v2869 = vpop.f32.mrf.mxu0
        %v2870 = vadd.f32 0.0, %v2869
        %2871 = vdwg.mxu0
        %2872 = vmatpush.msra.mxu0 %v2794
        %2873 = vmatpush.msra.mxu0 %v2792
        %2874 = vmatpush.msra.mxu0 %v2790
        %2875 = vmatpush.msra.mxu0 %v2788
        %2876 = vmatpush.msra.mxu0 %v2786
        %2877 = vmatpush.msra.mxu0 %v2784
        %2878 = vmatpush.msra.mxu0 %v2782
        %2879 = vmatpush.msra.mxu0 %v2780
        %2880 = vmatpush.msra.mxu0 %v2778
        %2881 = vmatpush.msra.mxu0 %v2776
        %2882 = vmatpush.msra.mxu0 %v2774
        %2883 = vmatpush.msra.mxu0 %v2772
        %2884 = vmatpush.msra.mxu0 %v2770
        %2885 = vmatpush.msra.mxu0 %v2768
        %2886 = vmatpush.msra.mxu0 %v2766
        %2887 = vmatpush.msra.mxu0 %v2764
        %2888 = vmatmul.f32.gmra.mxu0 %v2759
        %v2889 = vpop.f32.mrf.mxu0
        %v2890 = vadd.f32 %v2850, %v2889
        %2891 = vdwg.mxu0
        %2892 = vmatpush.msra.mxu0 %v2795
        %2893 = vmatpush.msra.mxu0 %v2793
        %2894 = vmatpush.msra.mxu0 %v2791
        %2895 = vmatpush.msra.mxu0 %v2789
        %2896 = vmatpush.msra.mxu0 %v2787
        %2897 = vmatpush.msra.mxu0 %v2785
        %2898 = vmatpush.msra.mxu0 %v2783
        %2899 = vmatpush.msra.mxu0 %v2781
        %2900 = vmatpush.msra.mxu0 %v2779
        %2901 = vmatpush.msra.mxu0 %v2777
        %2902 = vmatpush.msra.mxu0 %v2775
        %2903 = vmatpush.msra.mxu0 %v2773
        %2904 = vmatpush.msra.mxu0 %v2771
        %2905 = vmatpush.msra.mxu0 %v2769
        %2906 = vmatpush.msra.mxu0 %v2767
        %2907 = vmatpush.msra.mxu0 %v2765
        %2908 = vmatmul.f32.gmra.mxu0 %v2759
        %v2909 = vpop.f32.mrf.mxu0
        %v2910 = vadd.f32 %v2870, %v2909
        %2911 = vdwg.mxu0
        %s2912 = scalar_lea.vmem %s19, 512
        %v2913 = vld [vmem:[%s2912] sm:$0xff]
        %v2914 = vld [vmem:[%s2912 + $0x8] sm:$0xff]
        %v2915 = vld [vmem:[%s2912 + $0x10] sm:$0xff]
        %v2916 = vld [vmem:[%s2912 + $0x18] sm:$0xff]
        %v2917 = vld [vmem:[%s2912 + $0x20] sm:$0xff]
        %v2918 = vld [vmem:[%s2912 + $0x28] sm:$0xff]
        %v2919 = vld [vmem:[%s2912 + $0x30] sm:$0xff]
        %v2920 = vld [vmem:[%s2912 + $0x38] sm:$0xff]
        %v2921 = vld [vmem:[%s2912 + $0x40] sm:$0xff]
        %v2922 = vld [vmem:[%s2912 + $0x48] sm:$0xff]
        %v2923 = vld [vmem:[%s2912 + $0x50] sm:$0xff]
        %v2924 = vld [vmem:[%s2912 + $0x58] sm:$0xff]
        %v2925 = vld [vmem:[%s2912 + $0x60] sm:$0xff]
        %v2926 = vld [vmem:[%s2912 + $0x68] sm:$0xff]
        %v2927 = vld [vmem:[%s2912 + $0x70] sm:$0xff]
        %v2928 = vld [vmem:[%s2912 + $0x78] sm:$0xff]
        %v2929 = vld [vmem:[%s2912 + $0x80] sm:$0xff]
        %v2930 = vld [vmem:[%s2912 + $0x88] sm:$0xff]
        %v2931 = vld [vmem:[%s2912 + $0x90] sm:$0xff]
        %v2932 = vld [vmem:[%s2912 + $0x98] sm:$0xff]
        %v2933 = vld [vmem:[%s2912 + $0xa0] sm:$0xff]
        %v2934 = vld [vmem:[%s2912 + $0xa8] sm:$0xff]
        %v2935 = vld [vmem:[%s2912 + $0xb0] sm:$0xff]
        %v2936 = vld [vmem:[%s2912 + $0xb8] sm:$0xff]
        %v2937 = vld [vmem:[%s2912 + $0xc0] sm:$0xff]
        %v2938 = vld [vmem:[%s2912 + $0xc8] sm:$0xff]
        %v2939 = vld [vmem:[%s2912 + $0xd0] sm:$0xff]
        %v2940 = vld [vmem:[%s2912 + $0xd8] sm:$0xff]
        %v2941 = vld [vmem:[%s2912 + $0xe0] sm:$0xff]
        %v2942 = vld [vmem:[%s2912 + $0xe8] sm:$0xff]
        %v2943 = vld [vmem:[%s2912 + $0xf0] sm:$0xff]
        %v2944 = vld [vmem:[%s2912 + $0xf8] sm:$0xff]
        %v2945 = vrot.slane %v2759, 2
        %2947 = vmatpush.msra.mxu0 %v2943
        %2948 = vmatpush.msra.mxu0 %v2941
        %2949 = vmatpush.msra.mxu0 %v2939
        %2950 = vmatpush.msra.mxu0 %v2937
        %2951 = vmatpush.msra.mxu0 %v2935
        %2952 = vmatpush.msra.mxu0 %v2933
        %2953 = vmatpush.msra.mxu0 %v2931
        %2954 = vmatpush.msra.mxu0 %v2929
        %2955 = vmatpush.msra.mxu0 %v2927
        %2956 = vmatpush.msra.mxu0 %v2925
        %2957 = vmatpush.msra.mxu0 %v2923
        %2958 = vmatpush.msra.mxu0 %v2921
        %2959 = vmatpush.msra.mxu0 %v2919
        %2960 = vmatpush.msra.mxu0 %v2917
        %2961 = vmatpush.msra.mxu0 %v2915
        %2962 = vmatpush.msra.mxu0 %v2913
        %2963 = vmatmul.f32.gmra.mxu0 %v2945
        %v2964 = vpop.f32.mrf.mxu0
        %v2965 = vadd.f32 0.0, %v2964
        %2966 = vdwg.mxu0
        %2967 = vmatpush.msra.mxu0 %v2944
        %2968 = vmatpush.msra.mxu0 %v2942
        %2969 = vmatpush.msra.mxu0 %v2940
        %2970 = vmatpush.msra.mxu0 %v2938
        %2971 = vmatpush.msra.mxu0 %v2936
        %2972 = vmatpush.msra.mxu0 %v2934
        %2973 = vmatpush.msra.mxu0 %v2932
        %2974 = vmatpush.msra.mxu0 %v2930
        %2975 = vmatpush.msra.mxu0 %v2928
        %2976 = vmatpush.msra.mxu0 %v2926
        %2977 = vmatpush.msra.mxu0 %v2924
        %2978 = vmatpush.msra.mxu0 %v2922
        %2979 = vmatpush.msra.mxu0 %v2920
        %2980 = vmatpush.msra.mxu0 %v2918
        %2981 = vmatpush.msra.mxu0 %v2916
        %2982 = vmatpush.msra.mxu0 %v2914
        %2983 = vmatmul.f32.gmra.mxu0 %v2945
        %v2984 = vpop.f32.mrf.mxu0
        %v2985 = vadd.f32 0.0, %v2984
        %2986 = vdwg.mxu0
        %v2987 = vadd.f32 %v2890, %v2965
        %v2988 = vadd.f32 %v2910, %v2985
        %s2989 = scalar_lea.vmem %s19, 768
        %v2990 = vld [vmem:[%s2989] sm:$0xff]
        %v2991 = vld [vmem:[%s2989 + $0x8] sm:$0xff]
        %v2992 = vld [vmem:[%s2989 + $0x10] sm:$0xff]
        %v2993 = vld [vmem:[%s2989 + $0x18] sm:$0xff]
        %v2994 = vld [vmem:[%s2989 + $0x20] sm:$0xff]
        %v2995 = vld [vmem:[%s2989 + $0x28] sm:$0xff]
        %v2996 = vld [vmem:[%s2989 + $0x30] sm:$0xff]
        %v2997 = vld [vmem:[%s2989 + $0x38] sm:$0xff]
        %v2998 = vld [vmem:[%s2989 + $0x40] sm:$0xff]
        %v2999 = vld [vmem:[%s2989 + $0x48] sm:$0xff]
        %v3000 = vld [vmem:[%s2989 + $0x50] sm:$0xff]
        %v3001 = vld [vmem:[%s2989 + $0x58] sm:$0xff]
        %v3002 = vld [vmem:[%s2989 + $0x60] sm:$0xff]
        %v3003 = vld [vmem:[%s2989 + $0x68] sm:$0xff]
        %v3004 = vld [vmem:[%s2989 + $0x70] sm:$0xff]
        %v3005 = vld [vmem:[%s2989 + $0x78] sm:$0xff]
        %v3006 = vld [vmem:[%s2989 + $0x80] sm:$0xff]
        %v3007 = vld [vmem:[%s2989 + $0x88] sm:$0xff]
        %v3008 = vld [vmem:[%s2989 + $0x90] sm:$0xff]
        %v3009 = vld [vmem:[%s2989 + $0x98] sm:$0xff]
        %v3010 = vld [vmem:[%s2989 + $0xa0] sm:$0xff]
        %v3011 = vld [vmem:[%s2989 + $0xa8] sm:$0xff]
        %v3012 = vld [vmem:[%s2989 + $0xb0] sm:$0xff]
        %v3013 = vld [vmem:[%s2989 + $0xb8] sm:$0xff]
        %v3014 = vld [vmem:[%s2989 + $0xc0] sm:$0xff]
        %v3015 = vld [vmem:[%s2989 + $0xc8] sm:$0xff]
        %v3016 = vld [vmem:[%s2989 + $0xd0] sm:$0xff]
        %v3017 = vld [vmem:[%s2989 + $0xd8] sm:$0xff]
        %v3018 = vld [vmem:[%s2989 + $0xe0] sm:$0xff]
        %v3019 = vld [vmem:[%s2989 + $0xe8] sm:$0xff]
        %v3020 = vld [vmem:[%s2989 + $0xf0] sm:$0xff]
        %v3021 = vld [vmem:[%s2989 + $0xf8] sm:$0xff]
        %v3022 = vrot.slane %v2759, 3
        %3024 = vmatpush.msra.mxu0 %v3020
        %3025 = vmatpush.msra.mxu0 %v3018
        %3026 = vmatpush.msra.mxu0 %v3016
        %3027 = vmatpush.msra.mxu0 %v3014
        %3028 = vmatpush.msra.mxu0 %v3012
        %3029 = vmatpush.msra.mxu0 %v3010
        %3030 = vmatpush.msra.mxu0 %v3008
        %3031 = vmatpush.msra.mxu0 %v3006
        %3032 = vmatpush.msra.mxu0 %v3004
        %3033 = vmatpush.msra.mxu0 %v3002
        %3034 = vmatpush.msra.mxu0 %v3000
        %3035 = vmatpush.msra.mxu0 %v2998
        %3036 = vmatpush.msra.mxu0 %v2996
        %3037 = vmatpush.msra.mxu0 %v2994
        %3038 = vmatpush.msra.mxu0 %v2992
        %3039 = vmatpush.msra.mxu0 %v2990
        %3040 = vmatmul.f32.gmra.mxu0 %v3022
        %v3041 = vpop.f32.mrf.mxu0
        %v3042 = vadd.f32 0.0, %v3041
        %3043 = vdwg.mxu0
        %3044 = vmatpush.msra.mxu0 %v3021
        %3045 = vmatpush.msra.mxu0 %v3019
        %3046 = vmatpush.msra.mxu0 %v3017
        %3047 = vmatpush.msra.mxu0 %v3015
        %3048 = vmatpush.msra.mxu0 %v3013
        %3049 = vmatpush.msra.mxu0 %v3011
        %3050 = vmatpush.msra.mxu0 %v3009
        %3051 = vmatpush.msra.mxu0 %v3007
        %3052 = vmatpush.msra.mxu0 %v3005
        %3053 = vmatpush.msra.mxu0 %v3003
        %3054 = vmatpush.msra.mxu0 %v3001
        %3055 = vmatpush.msra.mxu0 %v2999
        %3056 = vmatpush.msra.mxu0 %v2997
        %3057 = vmatpush.msra.mxu0 %v2995
        %3058 = vmatpush.msra.mxu0 %v2993
        %3059 = vmatpush.msra.mxu0 %v2991
        %3060 = vmatmul.f32.gmra.mxu0 %v3022
        %v3061 = vpop.f32.mrf.mxu0
        %v3062 = vadd.f32 0.0, %v3061
        %3063 = vdwg.mxu0
        %v3064 = vadd.f32 %v2987, %v3042
        %v3065 = vadd.f32 %v2988, %v3062
        %s3066 = scalar_lea.vmem %s19, 1024
        %v3067 = vld [vmem:[%s3066] sm:$0xff]
        %v3068 = vld [vmem:[%s3066 + $0x8] sm:$0xff]
        %v3069 = vld [vmem:[%s3066 + $0x10] sm:$0xff]
        %v3070 = vld [vmem:[%s3066 + $0x18] sm:$0xff]
        %v3071 = vld [vmem:[%s3066 + $0x20] sm:$0xff]
        %v3072 = vld [vmem:[%s3066 + $0x28] sm:$0xff]
        %v3073 = vld [vmem:[%s3066 + $0x30] sm:$0xff]
        %v3074 = vld [vmem:[%s3066 + $0x38] sm:$0xff]
        %v3075 = vld [vmem:[%s3066 + $0x40] sm:$0xff]
        %v3076 = vld [vmem:[%s3066 + $0x48] sm:$0xff]
        %v3077 = vld [vmem:[%s3066 + $0x50] sm:$0xff]
        %v3078 = vld [vmem:[%s3066 + $0x58] sm:$0xff]
        %v3079 = vld [vmem:[%s3066 + $0x60] sm:$0xff]
        %v3080 = vld [vmem:[%s3066 + $0x68] sm:$0xff]
        %v3081 = vld [vmem:[%s3066 + $0x70] sm:$0xff]
        %v3082 = vld [vmem:[%s3066 + $0x78] sm:$0xff]
        %v3083 = vld [vmem:[%s3066 + $0x80] sm:$0xff]
        %v3084 = vld [vmem:[%s3066 + $0x88] sm:$0xff]
        %v3085 = vld [vmem:[%s3066 + $0x90] sm:$0xff]
        %v3086 = vld [vmem:[%s3066 + $0x98] sm:$0xff]
        %v3087 = vld [vmem:[%s3066 + $0xa0] sm:$0xff]
        %v3088 = vld [vmem:[%s3066 + $0xa8] sm:$0xff]
        %v3089 = vld [vmem:[%s3066 + $0xb0] sm:$0xff]
        %v3090 = vld [vmem:[%s3066 + $0xb8] sm:$0xff]
        %v3091 = vld [vmem:[%s3066 + $0xc0] sm:$0xff]
        %v3092 = vld [vmem:[%s3066 + $0xc8] sm:$0xff]
        %v3093 = vld [vmem:[%s3066 + $0xd0] sm:$0xff]
        %v3094 = vld [vmem:[%s3066 + $0xd8] sm:$0xff]
        %v3095 = vld [vmem:[%s3066 + $0xe0] sm:$0xff]
        %v3096 = vld [vmem:[%s3066 + $0xe8] sm:$0xff]
        %v3097 = vld [vmem:[%s3066 + $0xf0] sm:$0xff]
        %v3098 = vld [vmem:[%s3066 + $0xf8] sm:$0xff]
        %v3099 = vrot.slane %v2759, 4
        %3101 = vmatpush.msra.mxu0 %v3097
        %3102 = vmatpush.msra.mxu0 %v3095
        %3103 = vmatpush.msra.mxu0 %v3093
        %3104 = vmatpush.msra.mxu0 %v3091
        %3105 = vmatpush.msra.mxu0 %v3089
        %3106 = vmatpush.msra.mxu0 %v3087
        %3107 = vmatpush.msra.mxu0 %v3085
        %3108 = vmatpush.msra.mxu0 %v3083
        %3109 = vmatpush.msra.mxu0 %v3081
        %3110 = vmatpush.msra.mxu0 %v3079
        %3111 = vmatpush.msra.mxu0 %v3077
        %3112 = vmatpush.msra.mxu0 %v3075
        %3113 = vmatpush.msra.mxu0 %v3073
        %3114 = vmatpush.msra.mxu0 %v3071
        %3115 = vmatpush.msra.mxu0 %v3069
        %3116 = vmatpush.msra.mxu0 %v3067
        %3117 = vmatmul.f32.gmra.mxu0 %v3099
        %v3118 = vpop.f32.mrf.mxu0
        %v3119 = vadd.f32 0.0, %v3118
        %3120 = vdwg.mxu0
        %3121 = vmatpush.msra.mxu0 %v3098
        %3122 = vmatpush.msra.mxu0 %v3096
        %3123 = vmatpush.msra.mxu0 %v3094
        %3124 = vmatpush.msra.mxu0 %v3092
        %3125 = vmatpush.msra.mxu0 %v3090
        %3126 = vmatpush.msra.mxu0 %v3088
        %3127 = vmatpush.msra.mxu0 %v3086
        %3128 = vmatpush.msra.mxu0 %v3084
        %3129 = vmatpush.msra.mxu0 %v3082
        %3130 = vmatpush.msra.mxu0 %v3080
        %3131 = vmatpush.msra.mxu0 %v3078
        %3132 = vmatpush.msra.mxu0 %v3076
        %3133 = vmatpush.msra.mxu0 %v3074
        %3134 = vmatpush.msra.mxu0 %v3072
        %3135 = vmatpush.msra.mxu0 %v3070
        %3136 = vmatpush.msra.mxu0 %v3068
        %3137 = vmatmul.f32.gmra.mxu0 %v3099
        %v3138 = vpop.f32.mrf.mxu0
        %v3139 = vadd.f32 0.0, %v3138
        %3140 = vdwg.mxu0
        %v3141 = vadd.f32 %v3064, %v3119
        %v3142 = vadd.f32 %v3065, %v3139
        %s3143 = scalar_lea.vmem %s19, 1280
        %v3144 = vld [vmem:[%s3143] sm:$0xff]
        %v3145 = vld [vmem:[%s3143 + $0x8] sm:$0xff]
        %v3146 = vld [vmem:[%s3143 + $0x10] sm:$0xff]
        %v3147 = vld [vmem:[%s3143 + $0x18] sm:$0xff]
        %v3148 = vld [vmem:[%s3143 + $0x20] sm:$0xff]
        %v3149 = vld [vmem:[%s3143 + $0x28] sm:$0xff]
        %v3150 = vld [vmem:[%s3143 + $0x30] sm:$0xff]
        %v3151 = vld [vmem:[%s3143 + $0x38] sm:$0xff]
        %v3152 = vld [vmem:[%s3143 + $0x40] sm:$0xff]
        %v3153 = vld [vmem:[%s3143 + $0x48] sm:$0xff]
        %v3154 = vld [vmem:[%s3143 + $0x50] sm:$0xff]
        %v3155 = vld [vmem:[%s3143 + $0x58] sm:$0xff]
        %v3156 = vld [vmem:[%s3143 + $0x60] sm:$0xff]
        %v3157 = vld [vmem:[%s3143 + $0x68] sm:$0xff]
        %v3158 = vld [vmem:[%s3143 + $0x70] sm:$0xff]
        %v3159 = vld [vmem:[%s3143 + $0x78] sm:$0xff]
        %v3160 = vld [vmem:[%s3143 + $0x80] sm:$0xff]
        %v3161 = vld [vmem:[%s3143 + $0x88] sm:$0xff]
        %v3162 = vld [vmem:[%s3143 + $0x90] sm:$0xff]
        %v3163 = vld [vmem:[%s3143 + $0x98] sm:$0xff]
        %v3164 = vld [vmem:[%s3143 + $0xa0] sm:$0xff]
        %v3165 = vld [vmem:[%s3143 + $0xa8] sm:$0xff]
        %v3166 = vld [vmem:[%s3143 + $0xb0] sm:$0xff]
        %v3167 = vld [vmem:[%s3143 + $0xb8] sm:$0xff]
        %v3168 = vld [vmem:[%s3143 + $0xc0] sm:$0xff]
        %v3169 = vld [vmem:[%s3143 + $0xc8] sm:$0xff]
        %v3170 = vld [vmem:[%s3143 + $0xd0] sm:$0xff]
        %v3171 = vld [vmem:[%s3143 + $0xd8] sm:$0xff]
        %v3172 = vld [vmem:[%s3143 + $0xe0] sm:$0xff]
        %v3173 = vld [vmem:[%s3143 + $0xe8] sm:$0xff]
        %v3174 = vld [vmem:[%s3143 + $0xf0] sm:$0xff]
        %v3175 = vld [vmem:[%s3143 + $0xf8] sm:$0xff]
        %v3176 = vrot.slane %v2759, 5
        %3178 = vmatpush.msra.mxu0 %v3174
        %3179 = vmatpush.msra.mxu0 %v3172
        %3180 = vmatpush.msra.mxu0 %v3170
        %3181 = vmatpush.msra.mxu0 %v3168
        %3182 = vmatpush.msra.mxu0 %v3166
        %3183 = vmatpush.msra.mxu0 %v3164
        %3184 = vmatpush.msra.mxu0 %v3162
        %3185 = vmatpush.msra.mxu0 %v3160
        %3186 = vmatpush.msra.mxu0 %v3158
        %3187 = vmatpush.msra.mxu0 %v3156
        %3188 = vmatpush.msra.mxu0 %v3154
        %3189 = vmatpush.msra.mxu0 %v3152
        %3190 = vmatpush.msra.mxu0 %v3150
        %3191 = vmatpush.msra.mxu0 %v3148
        %3192 = vmatpush.msra.mxu0 %v3146
        %3193 = vmatpush.msra.mxu0 %v3144
        %3194 = vmatmul.f32.gmra.mxu0 %v3176
        %v3195 = vpop.f32.mrf.mxu0
        %v3196 = vadd.f32 0.0, %v3195
        %3197 = vdwg.mxu0
        %3198 = vmatpush.msra.mxu0 %v3175
        %3199 = vmatpush.msra.mxu0 %v3173
        %3200 = vmatpush.msra.mxu0 %v3171
        %3201 = vmatpush.msra.mxu0 %v3169
        %3202 = vmatpush.msra.mxu0 %v3167
        %3203 = vmatpush.msra.mxu0 %v3165
        %3204 = vmatpush.msra.mxu0 %v3163
        %3205 = vmatpush.msra.mxu0 %v3161
        %3206 = vmatpush.msra.mxu0 %v3159
        %3207 = vmatpush.msra.mxu0 %v3157
        %3208 = vmatpush.msra.mxu0 %v3155
        %3209 = vmatpush.msra.mxu0 %v3153
        %3210 = vmatpush.msra.mxu0 %v3151
        %3211 = vmatpush.msra.mxu0 %v3149
        %3212 = vmatpush.msra.mxu0 %v3147
        %3213 = vmatpush.msra.mxu0 %v3145
        %3214 = vmatmul.f32.gmra.mxu0 %v3176
        %v3215 = vpop.f32.mrf.mxu0
        %v3216 = vadd.f32 0.0, %v3215
        %3217 = vdwg.mxu0
        %v3218 = vadd.f32 %v3141, %v3196
        %v3219 = vadd.f32 %v3142, %v3216
        %s3220 = scalar_lea.vmem %s19, 1536
        %v3221 = vld [vmem:[%s3220] sm:$0xff]
        %v3222 = vld [vmem:[%s3220 + $0x8] sm:$0xff]
        %v3223 = vld [vmem:[%s3220 + $0x10] sm:$0xff]
        %v3224 = vld [vmem:[%s3220 + $0x18] sm:$0xff]
        %v3225 = vld [vmem:[%s3220 + $0x20] sm:$0xff]
        %v3226 = vld [vmem:[%s3220 + $0x28] sm:$0xff]
        %v3227 = vld [vmem:[%s3220 + $0x30] sm:$0xff]
        %v3228 = vld [vmem:[%s3220 + $0x38] sm:$0xff]
        %v3229 = vld [vmem:[%s3220 + $0x40] sm:$0xff]
        %v3230 = vld [vmem:[%s3220 + $0x48] sm:$0xff]
        %v3231 = vld [vmem:[%s3220 + $0x50] sm:$0xff]
        %v3232 = vld [vmem:[%s3220 + $0x58] sm:$0xff]
        %v3233 = vld [vmem:[%s3220 + $0x60] sm:$0xff]
        %v3234 = vld [vmem:[%s3220 + $0x68] sm:$0xff]
        %v3235 = vld [vmem:[%s3220 + $0x70] sm:$0xff]
        %v3236 = vld [vmem:[%s3220 + $0x78] sm:$0xff]
        %v3237 = vld [vmem:[%s3220 + $0x80] sm:$0xff]
        %v3238 = vld [vmem:[%s3220 + $0x88] sm:$0xff]
        %v3239 = vld [vmem:[%s3220 + $0x90] sm:$0xff]
        %v3240 = vld [vmem:[%s3220 + $0x98] sm:$0xff]
        %v3241 = vld [vmem:[%s3220 + $0xa0] sm:$0xff]
        %v3242 = vld [vmem:[%s3220 + $0xa8] sm:$0xff]
        %v3243 = vld [vmem:[%s3220 + $0xb0] sm:$0xff]
        %v3244 = vld [vmem:[%s3220 + $0xb8] sm:$0xff]
        %v3245 = vld [vmem:[%s3220 + $0xc0] sm:$0xff]
        %v3246 = vld [vmem:[%s3220 + $0xc8] sm:$0xff]
        %v3247 = vld [vmem:[%s3220 + $0xd0] sm:$0xff]
        %v3248 = vld [vmem:[%s3220 + $0xd8] sm:$0xff]
        %v3249 = vld [vmem:[%s3220 + $0xe0] sm:$0xff]
        %v3250 = vld [vmem:[%s3220 + $0xe8] sm:$0xff]
        %v3251 = vld [vmem:[%s3220 + $0xf0] sm:$0xff]
        %v3252 = vld [vmem:[%s3220 + $0xf8] sm:$0xff]
        %v3253 = vrot.slane %v2759, 6
        %3255 = vmatpush.msra.mxu0 %v3251
        %3256 = vmatpush.msra.mxu0 %v3249
        %3257 = vmatpush.msra.mxu0 %v3247
        %3258 = vmatpush.msra.mxu0 %v3245
        %3259 = vmatpush.msra.mxu0 %v3243
        %3260 = vmatpush.msra.mxu0 %v3241
        %3261 = vmatpush.msra.mxu0 %v3239
        %3262 = vmatpush.msra.mxu0 %v3237
        %3263 = vmatpush.msra.mxu0 %v3235
        %3264 = vmatpush.msra.mxu0 %v3233
        %3265 = vmatpush.msra.mxu0 %v3231
        %3266 = vmatpush.msra.mxu0 %v3229
        %3267 = vmatpush.msra.mxu0 %v3227
        %3268 = vmatpush.msra.mxu0 %v3225
        %3269 = vmatpush.msra.mxu0 %v3223
        %3270 = vmatpush.msra.mxu0 %v3221
        %3271 = vmatmul.f32.gmra.mxu0 %v3253
        %v3272 = vpop.f32.mrf.mxu0
        %v3273 = vadd.f32 0.0, %v3272
        %3274 = vdwg.mxu0
        %3275 = vmatpush.msra.mxu0 %v3252
        %3276 = vmatpush.msra.mxu0 %v3250
        %3277 = vmatpush.msra.mxu0 %v3248
        %3278 = vmatpush.msra.mxu0 %v3246
        %3279 = vmatpush.msra.mxu0 %v3244
        %3280 = vmatpush.msra.mxu0 %v3242
        %3281 = vmatpush.msra.mxu0 %v3240
        %3282 = vmatpush.msra.mxu0 %v3238
        %3283 = vmatpush.msra.mxu0 %v3236
        %3284 = vmatpush.msra.mxu0 %v3234
        %3285 = vmatpush.msra.mxu0 %v3232
        %3286 = vmatpush.msra.mxu0 %v3230
        %3287 = vmatpush.msra.mxu0 %v3228
        %3288 = vmatpush.msra.mxu0 %v3226
        %3289 = vmatpush.msra.mxu0 %v3224
        %3290 = vmatpush.msra.mxu0 %v3222
        %3291 = vmatmul.f32.gmra.mxu0 %v3253
        %v3292 = vpop.f32.mrf.mxu0
        %v3293 = vadd.f32 0.0, %v3292
        %3294 = vdwg.mxu0
        %v3295 = vadd.f32 %v3218, %v3273
        %v3296 = vadd.f32 %v3219, %v3293
        %s3297 = scalar_lea.vmem %s19, 1792
        %v3298 = vld [vmem:[%s3297] sm:$0xff]
        %v3299 = vld [vmem:[%s3297 + $0x8] sm:$0xff]
        %v3300 = vld [vmem:[%s3297 + $0x10] sm:$0xff]
        %v3301 = vld [vmem:[%s3297 + $0x18] sm:$0xff]
        %v3302 = vld [vmem:[%s3297 + $0x20] sm:$0xff]
        %v3303 = vld [vmem:[%s3297 + $0x28] sm:$0xff]
        %v3304 = vld [vmem:[%s3297 + $0x30] sm:$0xff]
        %v3305 = vld [vmem:[%s3297 + $0x38] sm:$0xff]
        %v3306 = vld [vmem:[%s3297 + $0x40] sm:$0xff]
        %v3307 = vld [vmem:[%s3297 + $0x48] sm:$0xff]
        %v3308 = vld [vmem:[%s3297 + $0x50] sm:$0xff]
        %v3309 = vld [vmem:[%s3297 + $0x58] sm:$0xff]
        %v3310 = vld [vmem:[%s3297 + $0x60] sm:$0xff]
        %v3311 = vld [vmem:[%s3297 + $0x68] sm:$0xff]
        %v3312 = vld [vmem:[%s3297 + $0x70] sm:$0xff]
        %v3313 = vld [vmem:[%s3297 + $0x78] sm:$0xff]
        %v3314 = vld [vmem:[%s3297 + $0x80] sm:$0xff]
        %v3315 = vld [vmem:[%s3297 + $0x88] sm:$0xff]
        %v3316 = vld [vmem:[%s3297 + $0x90] sm:$0xff]
        %v3317 = vld [vmem:[%s3297 + $0x98] sm:$0xff]
        %v3318 = vld [vmem:[%s3297 + $0xa0] sm:$0xff]
        %v3319 = vld [vmem:[%s3297 + $0xa8] sm:$0xff]
        %v3320 = vld [vmem:[%s3297 + $0xb0] sm:$0xff]
        %v3321 = vld [vmem:[%s3297 + $0xb8] sm:$0xff]
        %v3322 = vld [vmem:[%s3297 + $0xc0] sm:$0xff]
        %v3323 = vld [vmem:[%s3297 + $0xc8] sm:$0xff]
        %v3324 = vld [vmem:[%s3297 + $0xd0] sm:$0xff]
        %v3325 = vld [vmem:[%s3297 + $0xd8] sm:$0xff]
        %v3326 = vld [vmem:[%s3297 + $0xe0] sm:$0xff]
        %v3327 = vld [vmem:[%s3297 + $0xe8] sm:$0xff]
        %v3328 = vld [vmem:[%s3297 + $0xf0] sm:$0xff]
        %v3329 = vld [vmem:[%s3297 + $0xf8] sm:$0xff]
        %v3330 = vrot.slane %v2759, 7
        %3332 = vmatpush.msra.mxu0 %v3328
        %3333 = vmatpush.msra.mxu0 %v3326
        %3334 = vmatpush.msra.mxu0 %v3324
        %3335 = vmatpush.msra.mxu0 %v3322
        %3336 = vmatpush.msra.mxu0 %v3320
        %3337 = vmatpush.msra.mxu0 %v3318
        %3338 = vmatpush.msra.mxu0 %v3316
        %3339 = vmatpush.msra.mxu0 %v3314
        %3340 = vmatpush.msra.mxu0 %v3312
        %3341 = vmatpush.msra.mxu0 %v3310
        %3342 = vmatpush.msra.mxu0 %v3308
        %3343 = vmatpush.msra.mxu0 %v3306
        %3344 = vmatpush.msra.mxu0 %v3304
        %3345 = vmatpush.msra.mxu0 %v3302
        %3346 = vmatpush.msra.mxu0 %v3300
        %3347 = vmatpush.msra.mxu0 %v3298
        %3348 = vmatmul.f32.gmra.mxu0 %v3330
        %v3349 = vpop.f32.mrf.mxu0
        %v3350 = vadd.f32 0.0, %v3349
        %3351 = vdwg.mxu0
        %3352 = vmatpush.msra.mxu0 %v3329
        %3353 = vmatpush.msra.mxu0 %v3327
        %3354 = vmatpush.msra.mxu0 %v3325
        %3355 = vmatpush.msra.mxu0 %v3323
        %3356 = vmatpush.msra.mxu0 %v3321
        %3357 = vmatpush.msra.mxu0 %v3319
        %3358 = vmatpush.msra.mxu0 %v3317
        %3359 = vmatpush.msra.mxu0 %v3315
        %3360 = vmatpush.msra.mxu0 %v3313
        %3361 = vmatpush.msra.mxu0 %v3311
        %3362 = vmatpush.msra.mxu0 %v3309
        %3363 = vmatpush.msra.mxu0 %v3307
        %3364 = vmatpush.msra.mxu0 %v3305
        %3365 = vmatpush.msra.mxu0 %v3303
        %3366 = vmatpush.msra.mxu0 %v3301
        %3367 = vmatpush.msra.mxu0 %v3299
        %3368 = vmatmul.f32.gmra.mxu0 %v3330
        %v3369 = vpop.f32.mrf.mxu0
        %v3370 = vadd.f32 0.0, %v3369
        %3371 = vdwg.mxu0
        %v3372 = vadd.f32 %v3295, %v3350
        %v3373 = vadd.f32 %v3296, %v3370
        %s3374 = scalar_lea.vmem %s19, 2048
        %v3375 = vld [vmem:[%s3374] sm:$0xff]
        %v3376 = vld [vmem:[%s3374 + $0x8] sm:$0xff]
        %v3377 = vld [vmem:[%s3374 + $0x10] sm:$0xff]
        %v3378 = vld [vmem:[%s3374 + $0x18] sm:$0xff]
        %v3379 = vld [vmem:[%s3374 + $0x20] sm:$0xff]
        %v3380 = vld [vmem:[%s3374 + $0x28] sm:$0xff]
        %v3381 = vld [vmem:[%s3374 + $0x30] sm:$0xff]
        %v3382 = vld [vmem:[%s3374 + $0x38] sm:$0xff]
        %v3383 = vld [vmem:[%s3374 + $0x40] sm:$0xff]
        %v3384 = vld [vmem:[%s3374 + $0x48] sm:$0xff]
        %v3385 = vld [vmem:[%s3374 + $0x50] sm:$0xff]
        %v3386 = vld [vmem:[%s3374 + $0x58] sm:$0xff]
        %v3387 = vld [vmem:[%s3374 + $0x60] sm:$0xff]
        %v3388 = vld [vmem:[%s3374 + $0x68] sm:$0xff]
        %v3389 = vld [vmem:[%s3374 + $0x70] sm:$0xff]
        %v3390 = vld [vmem:[%s3374 + $0x78] sm:$0xff]
        %v3391 = vld [vmem:[%s3374 + $0x80] sm:$0xff]
        %v3392 = vld [vmem:[%s3374 + $0x88] sm:$0xff]
        %v3393 = vld [vmem:[%s3374 + $0x90] sm:$0xff]
        %v3394 = vld [vmem:[%s3374 + $0x98] sm:$0xff]
        %v3395 = vld [vmem:[%s3374 + $0xa0] sm:$0xff]
        %v3396 = vld [vmem:[%s3374 + $0xa8] sm:$0xff]
        %v3397 = vld [vmem:[%s3374 + $0xb0] sm:$0xff]
        %v3398 = vld [vmem:[%s3374 + $0xb8] sm:$0xff]
        %v3399 = vld [vmem:[%s3374 + $0xc0] sm:$0xff]
        %v3400 = vld [vmem:[%s3374 + $0xc8] sm:$0xff]
        %v3401 = vld [vmem:[%s3374 + $0xd0] sm:$0xff]
        %v3402 = vld [vmem:[%s3374 + $0xd8] sm:$0xff]
        %v3403 = vld [vmem:[%s3374 + $0xe0] sm:$0xff]
        %v3404 = vld [vmem:[%s3374 + $0xe8] sm:$0xff]
        %v3405 = vld [vmem:[%s3374 + $0xf0] sm:$0xff]
        %v3406 = vld [vmem:[%s3374 + $0xf8] sm:$0xff]
        %3407 = vmatpush.msra.mxu0 %v3405
        %3408 = vmatpush.msra.mxu0 %v3403
        %3409 = vmatpush.msra.mxu0 %v3401
        %3410 = vmatpush.msra.mxu0 %v3399
        %3411 = vmatpush.msra.mxu0 %v3397
        %3412 = vmatpush.msra.mxu0 %v3395
        %3413 = vmatpush.msra.mxu0 %v3393
        %3414 = vmatpush.msra.mxu0 %v3391
        %3415 = vmatpush.msra.mxu0 %v3389
        %3416 = vmatpush.msra.mxu0 %v3387
        %3417 = vmatpush.msra.mxu0 %v3385
        %3418 = vmatpush.msra.mxu0 %v3383
        %3419 = vmatpush.msra.mxu0 %v3381
        %3420 = vmatpush.msra.mxu0 %v3379
        %3421 = vmatpush.msra.mxu0 %v3377
        %3422 = vmatpush.msra.mxu0 %v3375
        %3423 = vmatmul.f32.gmra.mxu0 %v2762
        %v3424 = vpop.f32.mrf.mxu0
        %v3425 = vadd.f32 0.0, %v3424
        %3426 = vdwg.mxu0
        %3427 = vmatpush.msra.mxu0 %v3406
        %3428 = vmatpush.msra.mxu0 %v3404
        %3429 = vmatpush.msra.mxu0 %v3402
        %3430 = vmatpush.msra.mxu0 %v3400
        %3431 = vmatpush.msra.mxu0 %v3398
        %3432 = vmatpush.msra.mxu0 %v3396
        %3433 = vmatpush.msra.mxu0 %v3394
        %3434 = vmatpush.msra.mxu0 %v3392
        %3435 = vmatpush.msra.mxu0 %v3390
        %3436 = vmatpush.msra.mxu0 %v3388
        %3437 = vmatpush.msra.mxu0 %v3386
        %3438 = vmatpush.msra.mxu0 %v3384
        %3439 = vmatpush.msra.mxu0 %v3382
        %3440 = vmatpush.msra.mxu0 %v3380
        %3441 = vmatpush.msra.mxu0 %v3378
        %3442 = vmatpush.msra.mxu0 %v3376
        %3443 = vmatmul.f32.gmra.mxu0 %v2762
        %v3444 = vpop.f32.mrf.mxu0
        %v3445 = vadd.f32 0.0, %v3444
        %3446 = vdwg.mxu0
        %v3447 = vadd.f32 %v3372, %v3425
        %v3448 = vadd.f32 %v3373, %v3445
        %s3449 = scalar_lea.vmem %s19, 2304
        %v3450 = vld [vmem:[%s3449] sm:$0xff]
        %v3451 = vld [vmem:[%s3449 + $0x8] sm:$0xff]
        %v3452 = vld [vmem:[%s3449 + $0x10] sm:$0xff]
        %v3453 = vld [vmem:[%s3449 + $0x18] sm:$0xff]
        %v3454 = vld [vmem:[%s3449 + $0x20] sm:$0xff]
        %v3455 = vld [vmem:[%s3449 + $0x28] sm:$0xff]
        %v3456 = vld [vmem:[%s3449 + $0x30] sm:$0xff]
        %v3457 = vld [vmem:[%s3449 + $0x38] sm:$0xff]
        %v3458 = vld [vmem:[%s3449 + $0x40] sm:$0xff]
        %v3459 = vld [vmem:[%s3449 + $0x48] sm:$0xff]
        %v3460 = vld [vmem:[%s3449 + $0x50] sm:$0xff]
        %v3461 = vld [vmem:[%s3449 + $0x58] sm:$0xff]
        %v3462 = vld [vmem:[%s3449 + $0x60] sm:$0xff]
        %v3463 = vld [vmem:[%s3449 + $0x68] sm:$0xff]
        %v3464 = vld [vmem:[%s3449 + $0x70] sm:$0xff]
        %v3465 = vld [vmem:[%s3449 + $0x78] sm:$0xff]
        %v3466 = vld [vmem:[%s3449 + $0x80] sm:$0xff]
        %v3467 = vld [vmem:[%s3449 + $0x88] sm:$0xff]
        %v3468 = vld [vmem:[%s3449 + $0x90] sm:$0xff]
        %v3469 = vld [vmem:[%s3449 + $0x98] sm:$0xff]
        %v3470 = vld [vmem:[%s3449 + $0xa0] sm:$0xff]
        %v3471 = vld [vmem:[%s3449 + $0xa8] sm:$0xff]
        %v3472 = vld [vmem:[%s3449 + $0xb0] sm:$0xff]
        %v3473 = vld [vmem:[%s3449 + $0xb8] sm:$0xff]
        %v3474 = vld [vmem:[%s3449 + $0xc0] sm:$0xff]
        %v3475 = vld [vmem:[%s3449 + $0xc8] sm:$0xff]
        %v3476 = vld [vmem:[%s3449 + $0xd0] sm:$0xff]
        %v3477 = vld [vmem:[%s3449 + $0xd8] sm:$0xff]
        %v3478 = vld [vmem:[%s3449 + $0xe0] sm:$0xff]
        %v3479 = vld [vmem:[%s3449 + $0xe8] sm:$0xff]
        %v3480 = vld [vmem:[%s3449 + $0xf0] sm:$0xff]
        %v3481 = vld [vmem:[%s3449 + $0xf8] sm:$0xff]
        %v3483 = vrot.slane %v2762, 1
        %3485 = vmatpush.msra.mxu0 %v3480
        %3486 = vmatpush.msra.mxu0 %v3478
        %3487 = vmatpush.msra.mxu0 %v3476
        %3488 = vmatpush.msra.mxu0 %v3474
        %3489 = vmatpush.msra.mxu0 %v3472
        %3490 = vmatpush.msra.mxu0 %v3470
        %3491 = vmatpush.msra.mxu0 %v3468
        %3492 = vmatpush.msra.mxu0 %v3466
        %3493 = vmatpush.msra.mxu0 %v3464
        %3494 = vmatpush.msra.mxu0 %v3462
        %3495 = vmatpush.msra.mxu0 %v3460
        %3496 = vmatpush.msra.mxu0 %v3458
        %3497 = vmatpush.msra.mxu0 %v3456
        %3498 = vmatpush.msra.mxu0 %v3454
        %3499 = vmatpush.msra.mxu0 %v3452
        %3500 = vmatpush.msra.mxu0 %v3450
        %3501 = vmatmul.f32.gmra.mxu0 %v3483
        %v3502 = vpop.f32.mrf.mxu0
        %v3503 = vadd.f32 0.0, %v3502
        %3504 = vdwg.mxu0
        %3505 = vmatpush.msra.mxu0 %v3481
        %3506 = vmatpush.msra.mxu0 %v3479
        %3507 = vmatpush.msra.mxu0 %v3477
        %3508 = vmatpush.msra.mxu0 %v3475
        %3509 = vmatpush.msra.mxu0 %v3473
        %3510 = vmatpush.msra.mxu0 %v3471
        %3511 = vmatpush.msra.mxu0 %v3469
        %3512 = vmatpush.msra.mxu0 %v3467
        %3513 = vmatpush.msra.mxu0 %v3465
        %3514 = vmatpush.msra.mxu0 %v3463
        %3515 = vmatpush.msra.mxu0 %v3461
        %3516 = vmatpush.msra.mxu0 %v3459
        %3517 = vmatpush.msra.mxu0 %v3457
        %3518 = vmatpush.msra.mxu0 %v3455
        %3519 = vmatpush.msra.mxu0 %v3453
        %3520 = vmatpush.msra.mxu0 %v3451
        %3521 = vmatmul.f32.gmra.mxu0 %v3483
        %v3522 = vpop.f32.mrf.mxu0
        %v3523 = vadd.f32 0.0, %v3522
        %3524 = vdwg.mxu0
        %v3525 = vadd.f32 %v3447, %v3503
        %v3526 = vadd.f32 %v3448, %v3523
        %s3527 = scalar_lea.vmem %s19, 2560
        %v3528 = vld [vmem:[%s3527] sm:$0xff]
        %v3529 = vld [vmem:[%s3527 + $0x8] sm:$0xff]
        %v3530 = vld [vmem:[%s3527 + $0x10] sm:$0xff]
        %v3531 = vld [vmem:[%s3527 + $0x18] sm:$0xff]
        %v3532 = vld [vmem:[%s3527 + $0x20] sm:$0xff]
        %v3533 = vld [vmem:[%s3527 + $0x28] sm:$0xff]
        %v3534 = vld [vmem:[%s3527 + $0x30] sm:$0xff]
        %v3535 = vld [vmem:[%s3527 + $0x38] sm:$0xff]
        %v3536 = vld [vmem:[%s3527 + $0x40] sm:$0xff]
        %v3537 = vld [vmem:[%s3527 + $0x48] sm:$0xff]
        %v3538 = vld [vmem:[%s3527 + $0x50] sm:$0xff]
        %v3539 = vld [vmem:[%s3527 + $0x58] sm:$0xff]
        %v3540 = vld [vmem:[%s3527 + $0x60] sm:$0xff]
        %v3541 = vld [vmem:[%s3527 + $0x68] sm:$0xff]
        %v3542 = vld [vmem:[%s3527 + $0x70] sm:$0xff]
        %v3543 = vld [vmem:[%s3527 + $0x78] sm:$0xff]
        %v3544 = vld [vmem:[%s3527 + $0x80] sm:$0xff]
        %v3545 = vld [vmem:[%s3527 + $0x88] sm:$0xff]
        %v3546 = vld [vmem:[%s3527 + $0x90] sm:$0xff]
        %v3547 = vld [vmem:[%s3527 + $0x98] sm:$0xff]
        %v3548 = vld [vmem:[%s3527 + $0xa0] sm:$0xff]
        %v3549 = vld [vmem:[%s3527 + $0xa8] sm:$0xff]
        %v3550 = vld [vmem:[%s3527 + $0xb0] sm:$0xff]
        %v3551 = vld [vmem:[%s3527 + $0xb8] sm:$0xff]
        %v3552 = vld [vmem:[%s3527 + $0xc0] sm:$0xff]
        %v3553 = vld [vmem:[%s3527 + $0xc8] sm:$0xff]
        %v3554 = vld [vmem:[%s3527 + $0xd0] sm:$0xff]
        %v3555 = vld [vmem:[%s3527 + $0xd8] sm:$0xff]
        %v3556 = vld [vmem:[%s3527 + $0xe0] sm:$0xff]
        %v3557 = vld [vmem:[%s3527 + $0xe8] sm:$0xff]
        %v3558 = vld [vmem:[%s3527 + $0xf0] sm:$0xff]
        %v3559 = vld [vmem:[%s3527 + $0xf8] sm:$0xff]
        %v3560 = vrot.slane %v2762, 2
        %3562 = vmatpush.msra.mxu0 %v3558
        %3563 = vmatpush.msra.mxu0 %v3556
        %3564 = vmatpush.msra.mxu0 %v3554
        %3565 = vmatpush.msra.mxu0 %v3552
        %3566 = vmatpush.msra.mxu0 %v3550
        %3567 = vmatpush.msra.mxu0 %v3548
        %3568 = vmatpush.msra.mxu0 %v3546
        %3569 = vmatpush.msra.mxu0 %v3544
        %3570 = vmatpush.msra.mxu0 %v3542
        %3571 = vmatpush.msra.mxu0 %v3540
        %3572 = vmatpush.msra.mxu0 %v3538
        %3573 = vmatpush.msra.mxu0 %v3536
        %3574 = vmatpush.msra.mxu0 %v3534
        %3575 = vmatpush.msra.mxu0 %v3532
        %3576 = vmatpush.msra.mxu0 %v3530
        %3577 = vmatpush.msra.mxu0 %v3528
        %3578 = vmatmul.f32.gmra.mxu0 %v3560
        %v3579 = vpop.f32.mrf.mxu0
        %v3580 = vadd.f32 0.0, %v3579
        %3581 = vdwg.mxu0
        %3582 = vmatpush.msra.mxu0 %v3559
        %3583 = vmatpush.msra.mxu0 %v3557
        %3584 = vmatpush.msra.mxu0 %v3555
        %3585 = vmatpush.msra.mxu0 %v3553
        %3586 = vmatpush.msra.mxu0 %v3551
        %3587 = vmatpush.msra.mxu0 %v3549
        %3588 = vmatpush.msra.mxu0 %v3547
        %3589 = vmatpush.msra.mxu0 %v3545
        %3590 = vmatpush.msra.mxu0 %v3543
        %3591 = vmatpush.msra.mxu0 %v3541
        %3592 = vmatpush.msra.mxu0 %v3539
        %3593 = vmatpush.msra.mxu0 %v3537
        %3594 = vmatpush.msra.mxu0 %v3535
        %3595 = vmatpush.msra.mxu0 %v3533
        %3596 = vmatpush.msra.mxu0 %v3531
        %3597 = vmatpush.msra.mxu0 %v3529
        %3598 = vmatmul.f32.gmra.mxu0 %v3560
        %v3599 = vpop.f32.mrf.mxu0
        %v3600 = vadd.f32 0.0, %v3599
        %3601 = vdwg.mxu0
        %v3602 = vadd.f32 %v3525, %v3580
        %v3603 = vadd.f32 %v3526, %v3600
        %s3604 = scalar_lea.vmem %s19, 2816
        %v3605 = vld [vmem:[%s3604] sm:$0xff]
        %v3606 = vld [vmem:[%s3604 + $0x8] sm:$0xff]
        %v3607 = vld [vmem:[%s3604 + $0x10] sm:$0xff]
        %v3608 = vld [vmem:[%s3604 + $0x18] sm:$0xff]
        %v3609 = vld [vmem:[%s3604 + $0x20] sm:$0xff]
        %v3610 = vld [vmem:[%s3604 + $0x28] sm:$0xff]
        %v3611 = vld [vmem:[%s3604 + $0x30] sm:$0xff]
        %v3612 = vld [vmem:[%s3604 + $0x38] sm:$0xff]
        %v3613 = vld [vmem:[%s3604 + $0x40] sm:$0xff]
        %v3614 = vld [vmem:[%s3604 + $0x48] sm:$0xff]
        %v3615 = vld [vmem:[%s3604 + $0x50] sm:$0xff]
        %v3616 = vld [vmem:[%s3604 + $0x58] sm:$0xff]
        %v3617 = vld [vmem:[%s3604 + $0x60] sm:$0xff]
        %v3618 = vld [vmem:[%s3604 + $0x68] sm:$0xff]
        %v3619 = vld [vmem:[%s3604 + $0x70] sm:$0xff]
        %v3620 = vld [vmem:[%s3604 + $0x78] sm:$0xff]
        %v3621 = vld [vmem:[%s3604 + $0x80] sm:$0xff]
        %v3622 = vld [vmem:[%s3604 + $0x88] sm:$0xff]
        %v3623 = vld [vmem:[%s3604 + $0x90] sm:$0xff]
        %v3624 = vld [vmem:[%s3604 + $0x98] sm:$0xff]
        %v3625 = vld [vmem:[%s3604 + $0xa0] sm:$0xff]
        %v3626 = vld [vmem:[%s3604 + $0xa8] sm:$0xff]
        %v3627 = vld [vmem:[%s3604 + $0xb0] sm:$0xff]
        %v3628 = vld [vmem:[%s3604 + $0xb8] sm:$0xff]
        %v3629 = vld [vmem:[%s3604 + $0xc0] sm:$0xff]
        %v3630 = vld [vmem:[%s3604 + $0xc8] sm:$0xff]
        %v3631 = vld [vmem:[%s3604 + $0xd0] sm:$0xff]
        %v3632 = vld [vmem:[%s3604 + $0xd8] sm:$0xff]
        %v3633 = vld [vmem:[%s3604 + $0xe0] sm:$0xff]
        %v3634 = vld [vmem:[%s3604 + $0xe8] sm:$0xff]
        %v3635 = vld [vmem:[%s3604 + $0xf0] sm:$0xff]
        %v3636 = vld [vmem:[%s3604 + $0xf8] sm:$0xff]
        %v3637 = vrot.slane %v2762, 3
        %3639 = vmatpush.msra.mxu0 %v3635
        %3640 = vmatpush.msra.mxu0 %v3633
        %3641 = vmatpush.msra.mxu0 %v3631
        %3642 = vmatpush.msra.mxu0 %v3629
        %3643 = vmatpush.msra.mxu0 %v3627
        %3644 = vmatpush.msra.mxu0 %v3625
        %3645 = vmatpush.msra.mxu0 %v3623
        %3646 = vmatpush.msra.mxu0 %v3621
        %3647 = vmatpush.msra.mxu0 %v3619
        %3648 = vmatpush.msra.mxu0 %v3617
        %3649 = vmatpush.msra.mxu0 %v3615
        %3650 = vmatpush.msra.mxu0 %v3613
        %3651 = vmatpush.msra.mxu0 %v3611
        %3652 = vmatpush.msra.mxu0 %v3609
        %3653 = vmatpush.msra.mxu0 %v3607
        %3654 = vmatpush.msra.mxu0 %v3605
        %3655 = vmatmul.f32.gmra.mxu0 %v3637
        %v3656 = vpop.f32.mrf.mxu0
        %v3657 = vadd.f32 0.0, %v3656
        %3658 = vdwg.mxu0
        %3659 = vmatpush.msra.mxu0 %v3636
        %3660 = vmatpush.msra.mxu0 %v3634
        %3661 = vmatpush.msra.mxu0 %v3632
        %3662 = vmatpush.msra.mxu0 %v3630
        %3663 = vmatpush.msra.mxu0 %v3628
        %3664 = vmatpush.msra.mxu0 %v3626
        %3665 = vmatpush.msra.mxu0 %v3624
        %3666 = vmatpush.msra.mxu0 %v3622
        %3667 = vmatpush.msra.mxu0 %v3620
        %3668 = vmatpush.msra.mxu0 %v3618
        %3669 = vmatpush.msra.mxu0 %v3616
        %3670 = vmatpush.msra.mxu0 %v3614
        %3671 = vmatpush.msra.mxu0 %v3612
        %3672 = vmatpush.msra.mxu0 %v3610
        %3673 = vmatpush.msra.mxu0 %v3608
        %3674 = vmatpush.msra.mxu0 %v3606
        %3675 = vmatmul.f32.gmra.mxu0 %v3637
        %v3676 = vpop.f32.mrf.mxu0
        %v3677 = vadd.f32 0.0, %v3676
        %3678 = vdwg.mxu0
        %v3679 = vadd.f32 %v3602, %v3657
        %v3680 = vadd.f32 %v3603, %v3677
        %s3681 = scalar_lea.vmem %s19, 3072
        %v3682 = vld [vmem:[%s3681] sm:$0xff]
        %v3683 = vld [vmem:[%s3681 + $0x8] sm:$0xff]
        %v3684 = vld [vmem:[%s3681 + $0x10] sm:$0xff]
        %v3685 = vld [vmem:[%s3681 + $0x18] sm:$0xff]
        %v3686 = vld [vmem:[%s3681 + $0x20] sm:$0xff]
        %v3687 = vld [vmem:[%s3681 + $0x28] sm:$0xff]
        %v3688 = vld [vmem:[%s3681 + $0x30] sm:$0xff]
        %v3689 = vld [vmem:[%s3681 + $0x38] sm:$0xff]
        %v3690 = vld [vmem:[%s3681 + $0x40] sm:$0xff]
        %v3691 = vld [vmem:[%s3681 + $0x48] sm:$0xff]
        %v3692 = vld [vmem:[%s3681 + $0x50] sm:$0xff]
        %v3693 = vld [vmem:[%s3681 + $0x58] sm:$0xff]
        %v3694 = vld [vmem:[%s3681 + $0x60] sm:$0xff]
        %v3695 = vld [vmem:[%s3681 + $0x68] sm:$0xff]
        %v3696 = vld [vmem:[%s3681 + $0x70] sm:$0xff]
        %v3697 = vld [vmem:[%s3681 + $0x78] sm:$0xff]
        %v3698 = vld [vmem:[%s3681 + $0x80] sm:$0xff]
        %v3699 = vld [vmem:[%s3681 + $0x88] sm:$0xff]
        %v3700 = vld [vmem:[%s3681 + $0x90] sm:$0xff]
        %v3701 = vld [vmem:[%s3681 + $0x98] sm:$0xff]
        %v3702 = vld [vmem:[%s3681 + $0xa0] sm:$0xff]
        %v3703 = vld [vmem:[%s3681 + $0xa8] sm:$0xff]
        %v3704 = vld [vmem:[%s3681 + $0xb0] sm:$0xff]
        %v3705 = vld [vmem:[%s3681 + $0xb8] sm:$0xff]
        %v3706 = vld [vmem:[%s3681 + $0xc0] sm:$0xff]
        %v3707 = vld [vmem:[%s3681 + $0xc8] sm:$0xff]
        %v3708 = vld [vmem:[%s3681 + $0xd0] sm:$0xff]
        %v3709 = vld [vmem:[%s3681 + $0xd8] sm:$0xff]
        %v3710 = vld [vmem:[%s3681 + $0xe0] sm:$0xff]
        %v3711 = vld [vmem:[%s3681 + $0xe8] sm:$0xff]
        %v3712 = vld [vmem:[%s3681 + $0xf0] sm:$0xff]
        %v3713 = vld [vmem:[%s3681 + $0xf8] sm:$0xff]
        %v3714 = vrot.slane %v2762, 4
        %3716 = vmatpush.msra.mxu0 %v3712
        %3717 = vmatpush.msra.mxu0 %v3710
        %3718 = vmatpush.msra.mxu0 %v3708
        %3719 = vmatpush.msra.mxu0 %v3706
        %3720 = vmatpush.msra.mxu0 %v3704
        %3721 = vmatpush.msra.mxu0 %v3702
        %3722 = vmatpush.msra.mxu0 %v3700
        %3723 = vmatpush.msra.mxu0 %v3698
        %3724 = vmatpush.msra.mxu0 %v3696
        %3725 = vmatpush.msra.mxu0 %v3694
        %3726 = vmatpush.msra.mxu0 %v3692
        %3727 = vmatpush.msra.mxu0 %v3690
        %3728 = vmatpush.msra.mxu0 %v3688
        %3729 = vmatpush.msra.mxu0 %v3686
        %3730 = vmatpush.msra.mxu0 %v3684
        %3731 = vmatpush.msra.mxu0 %v3682
        %3732 = vmatmul.f32.gmra.mxu0 %v3714
        %v3733 = vpop.f32.mrf.mxu0
        %v3734 = vadd.f32 0.0, %v3733
        %3735 = vdwg.mxu0
        %3736 = vmatpush.msra.mxu0 %v3713
        %3737 = vmatpush.msra.mxu0 %v3711
        %3738 = vmatpush.msra.mxu0 %v3709
        %3739 = vmatpush.msra.mxu0 %v3707
        %3740 = vmatpush.msra.mxu0 %v3705
        %3741 = vmatpush.msra.mxu0 %v3703
        %3742 = vmatpush.msra.mxu0 %v3701
        %3743 = vmatpush.msra.mxu0 %v3699
        %3744 = vmatpush.msra.mxu0 %v3697
        %3745 = vmatpush.msra.mxu0 %v3695
        %3746 = vmatpush.msra.mxu0 %v3693
        %3747 = vmatpush.msra.mxu0 %v3691
        %3748 = vmatpush.msra.mxu0 %v3689
        %3749 = vmatpush.msra.mxu0 %v3687
        %3750 = vmatpush.msra.mxu0 %v3685
        %3751 = vmatpush.msra.mxu0 %v3683
        %3752 = vmatmul.f32.gmra.mxu0 %v3714
        %v3753 = vpop.f32.mrf.mxu0
        %v3754 = vadd.f32 0.0, %v3753
        %3755 = vdwg.mxu0
        %v3756 = vadd.f32 %v3679, %v3734
        %v3757 = vadd.f32 %v3680, %v3754
        %s3758 = scalar_lea.vmem %s19, 3328
        %v3759 = vld [vmem:[%s3758] sm:$0xff]
        %v3760 = vld [vmem:[%s3758 + $0x8] sm:$0xff]
        %v3761 = vld [vmem:[%s3758 + $0x10] sm:$0xff]
        %v3762 = vld [vmem:[%s3758 + $0x18] sm:$0xff]
        %v3763 = vld [vmem:[%s3758 + $0x20] sm:$0xff]
        %v3764 = vld [vmem:[%s3758 + $0x28] sm:$0xff]
        %v3765 = vld [vmem:[%s3758 + $0x30] sm:$0xff]
        %v3766 = vld [vmem:[%s3758 + $0x38] sm:$0xff]
        %v3767 = vld [vmem:[%s3758 + $0x40] sm:$0xff]
        %v3768 = vld [vmem:[%s3758 + $0x48] sm:$0xff]
        %v3769 = vld [vmem:[%s3758 + $0x50] sm:$0xff]
        %v3770 = vld [vmem:[%s3758 + $0x58] sm:$0xff]
        %v3771 = vld [vmem:[%s3758 + $0x60] sm:$0xff]
        %v3772 = vld [vmem:[%s3758 + $0x68] sm:$0xff]
        %v3773 = vld [vmem:[%s3758 + $0x70] sm:$0xff]
        %v3774 = vld [vmem:[%s3758 + $0x78] sm:$0xff]
        %v3775 = vld [vmem:[%s3758 + $0x80] sm:$0xff]
        %v3776 = vld [vmem:[%s3758 + $0x88] sm:$0xff]
        %v3777 = vld [vmem:[%s3758 + $0x90] sm:$0xff]
        %v3778 = vld [vmem:[%s3758 + $0x98] sm:$0xff]
        %v3779 = vld [vmem:[%s3758 + $0xa0] sm:$0xff]
        %v3780 = vld [vmem:[%s3758 + $0xa8] sm:$0xff]
        %v3781 = vld [vmem:[%s3758 + $0xb0] sm:$0xff]
        %v3782 = vld [vmem:[%s3758 + $0xb8] sm:$0xff]
        %v3783 = vld [vmem:[%s3758 + $0xc0] sm:$0xff]
        %v3784 = vld [vmem:[%s3758 + $0xc8] sm:$0xff]
        %v3785 = vld [vmem:[%s3758 + $0xd0] sm:$0xff]
        %v3786 = vld [vmem:[%s3758 + $0xd8] sm:$0xff]
        %v3787 = vld [vmem:[%s3758 + $0xe0] sm:$0xff]
        %v3788 = vld [vmem:[%s3758 + $0xe8] sm:$0xff]
        %v3789 = vld [vmem:[%s3758 + $0xf0] sm:$0xff]
        %v3790 = vld [vmem:[%s3758 + $0xf8] sm:$0xff]
        %v3791 = vrot.slane %v2762, 5
        %3793 = vmatpush.msra.mxu0 %v3789
        %3794 = vmatpush.msra.mxu0 %v3787
        %3795 = vmatpush.msra.mxu0 %v3785
        %3796 = vmatpush.msra.mxu0 %v3783
        %3797 = vmatpush.msra.mxu0 %v3781
        %3798 = vmatpush.msra.mxu0 %v3779
        %3799 = vmatpush.msra.mxu0 %v3777
        %3800 = vmatpush.msra.mxu0 %v3775
        %3801 = vmatpush.msra.mxu0 %v3773
        %3802 = vmatpush.msra.mxu0 %v3771
        %3803 = vmatpush.msra.mxu0 %v3769
        %3804 = vmatpush.msra.mxu0 %v3767
        %3805 = vmatpush.msra.mxu0 %v3765
        %3806 = vmatpush.msra.mxu0 %v3763
        %3807 = vmatpush.msra.mxu0 %v3761
        %3808 = vmatpush.msra.mxu0 %v3759
        %3809 = vmatmul.f32.gmra.mxu0 %v3791
        %v3810 = vpop.f32.mrf.mxu0
        %v3811 = vadd.f32 0.0, %v3810
        %3812 = vdwg.mxu0
        %3813 = vmatpush.msra.mxu0 %v3790
        %3814 = vmatpush.msra.mxu0 %v3788
        %3815 = vmatpush.msra.mxu0 %v3786
        %3816 = vmatpush.msra.mxu0 %v3784
        %3817 = vmatpush.msra.mxu0 %v3782
        %3818 = vmatpush.msra.mxu0 %v3780
        %3819 = vmatpush.msra.mxu0 %v3778
        %3820 = vmatpush.msra.mxu0 %v3776
        %3821 = vmatpush.msra.mxu0 %v3774
        %3822 = vmatpush.msra.mxu0 %v3772
        %3823 = vmatpush.msra.mxu0 %v3770
        %3824 = vmatpush.msra.mxu0 %v3768
        %3825 = vmatpush.msra.mxu0 %v3766
        %3826 = vmatpush.msra.mxu0 %v3764
        %3827 = vmatpush.msra.mxu0 %v3762
        %3828 = vmatpush.msra.mxu0 %v3760
        %3829 = vmatmul.f32.gmra.mxu0 %v3791
        %v3830 = vpop.f32.mrf.mxu0
        %v3831 = vadd.f32 0.0, %v3830
        %3832 = vdwg.mxu0
        %v3833 = vadd.f32 %v3756, %v3811
        %v3834 = vadd.f32 %v3757, %v3831
        %s3835 = scalar_lea.vmem %s19, 3584
        %v3836 = vld [vmem:[%s3835] sm:$0xff]
        %v3837 = vld [vmem:[%s3835 + $0x8] sm:$0xff]
        %v3838 = vld [vmem:[%s3835 + $0x10] sm:$0xff]
        %v3839 = vld [vmem:[%s3835 + $0x18] sm:$0xff]
        %v3840 = vld [vmem:[%s3835 + $0x20] sm:$0xff]
        %v3841 = vld [vmem:[%s3835 + $0x28] sm:$0xff]
        %v3842 = vld [vmem:[%s3835 + $0x30] sm:$0xff]
        %v3843 = vld [vmem:[%s3835 + $0x38] sm:$0xff]
        %v3844 = vld [vmem:[%s3835 + $0x40] sm:$0xff]
        %v3845 = vld [vmem:[%s3835 + $0x48] sm:$0xff]
        %v3846 = vld [vmem:[%s3835 + $0x50] sm:$0xff]
        %v3847 = vld [vmem:[%s3835 + $0x58] sm:$0xff]
        %v3848 = vld [vmem:[%s3835 + $0x60] sm:$0xff]
        %v3849 = vld [vmem:[%s3835 + $0x68] sm:$0xff]
        %v3850 = vld [vmem:[%s3835 + $0x70] sm:$0xff]
        %v3851 = vld [vmem:[%s3835 + $0x78] sm:$0xff]
        %v3852 = vld [vmem:[%s3835 + $0x80] sm:$0xff]
        %v3853 = vld [vmem:[%s3835 + $0x88] sm:$0xff]
        %v3854 = vld [vmem:[%s3835 + $0x90] sm:$0xff]
        %v3855 = vld [vmem:[%s3835 + $0x98] sm:$0xff]
        %v3856 = vld [vmem:[%s3835 + $0xa0] sm:$0xff]
        %v3857 = vld [vmem:[%s3835 + $0xa8] sm:$0xff]
        %v3858 = vld [vmem:[%s3835 + $0xb0] sm:$0xff]
        %v3859 = vld [vmem:[%s3835 + $0xb8] sm:$0xff]
        %v3860 = vld [vmem:[%s3835 + $0xc0] sm:$0xff]
        %v3861 = vld [vmem:[%s3835 + $0xc8] sm:$0xff]
        %v3862 = vld [vmem:[%s3835 + $0xd0] sm:$0xff]
        %v3863 = vld [vmem:[%s3835 + $0xd8] sm:$0xff]
        %v3864 = vld [vmem:[%s3835 + $0xe0] sm:$0xff]
        %v3865 = vld [vmem:[%s3835 + $0xe8] sm:$0xff]
        %v3866 = vld [vmem:[%s3835 + $0xf0] sm:$0xff]
        %v3867 = vld [vmem:[%s3835 + $0xf8] sm:$0xff]
        %v3868 = vrot.slane %v2762, 6
        %3870 = vmatpush.msra.mxu0 %v3866
        %3871 = vmatpush.msra.mxu0 %v3864
        %3872 = vmatpush.msra.mxu0 %v3862
        %3873 = vmatpush.msra.mxu0 %v3860
        %3874 = vmatpush.msra.mxu0 %v3858
        %3875 = vmatpush.msra.mxu0 %v3856
        %3876 = vmatpush.msra.mxu0 %v3854
        %3877 = vmatpush.msra.mxu0 %v3852
        %3878 = vmatpush.msra.mxu0 %v3850
        %3879 = vmatpush.msra.mxu0 %v3848
        %3880 = vmatpush.msra.mxu0 %v3846
        %3881 = vmatpush.msra.mxu0 %v3844
        %3882 = vmatpush.msra.mxu0 %v3842
        %3883 = vmatpush.msra.mxu0 %v3840
        %3884 = vmatpush.msra.mxu0 %v3838
        %3885 = vmatpush.msra.mxu0 %v3836
        %3886 = vmatmul.f32.gmra.mxu0 %v3868
        %v3887 = vpop.f32.mrf.mxu0
        %v3888 = vadd.f32 0.0, %v3887
        %3889 = vdwg.mxu0
        %3890 = vmatpush.msra.mxu0 %v3867
        %3891 = vmatpush.msra.mxu0 %v3865
        %3892 = vmatpush.msra.mxu0 %v3863
        %3893 = vmatpush.msra.mxu0 %v3861
        %3894 = vmatpush.msra.mxu0 %v3859
        %3895 = vmatpush.msra.mxu0 %v3857
        %3896 = vmatpush.msra.mxu0 %v3855
        %3897 = vmatpush.msra.mxu0 %v3853
        %3898 = vmatpush.msra.mxu0 %v3851
        %3899 = vmatpush.msra.mxu0 %v3849
        %3900 = vmatpush.msra.mxu0 %v3847
        %3901 = vmatpush.msra.mxu0 %v3845
        %3902 = vmatpush.msra.mxu0 %v3843
        %3903 = vmatpush.msra.mxu0 %v3841
        %3904 = vmatpush.msra.mxu0 %v3839
        %3905 = vmatpush.msra.mxu0 %v3837
        %3906 = vmatmul.f32.gmra.mxu0 %v3868
        %v3907 = vpop.f32.mrf.mxu0
        %v3908 = vadd.f32 0.0, %v3907
        %3909 = vdwg.mxu0
        %v3910 = vadd.f32 %v3833, %v3888
        %v3911 = vadd.f32 %v3834, %v3908
        %s3912 = scalar_lea.vmem %s19, 3840
        %v3913 = vld [vmem:[%s3912] sm:$0xff]
        %v3914 = vld [vmem:[%s3912 + $0x8] sm:$0xff]
        %v3915 = vld [vmem:[%s3912 + $0x10] sm:$0xff]
        %v3916 = vld [vmem:[%s3912 + $0x18] sm:$0xff]
        %v3917 = vld [vmem:[%s3912 + $0x20] sm:$0xff]
        %v3918 = vld [vmem:[%s3912 + $0x28] sm:$0xff]
        %v3919 = vld [vmem:[%s3912 + $0x30] sm:$0xff]
        %v3920 = vld [vmem:[%s3912 + $0x38] sm:$0xff]
        %v3921 = vld [vmem:[%s3912 + $0x40] sm:$0xff]
        %v3922 = vld [vmem:[%s3912 + $0x48] sm:$0xff]
        %v3923 = vld [vmem:[%s3912 + $0x50] sm:$0xff]
        %v3924 = vld [vmem:[%s3912 + $0x58] sm:$0xff]
        %v3925 = vld [vmem:[%s3912 + $0x60] sm:$0xff]
        %v3926 = vld [vmem:[%s3912 + $0x68] sm:$0xff]
        %v3927 = vld [vmem:[%s3912 + $0x70] sm:$0xff]
        %v3928 = vld [vmem:[%s3912 + $0x78] sm:$0xff]
        %v3929 = vld [vmem:[%s3912 + $0x80] sm:$0xff]
        %v3930 = vld [vmem:[%s3912 + $0x88] sm:$0xff]
        %v3931 = vld [vmem:[%s3912 + $0x90] sm:$0xff]
        %v3932 = vld [vmem:[%s3912 + $0x98] sm:$0xff]
        %v3933 = vld [vmem:[%s3912 + $0xa0] sm:$0xff]
        %v3934 = vld [vmem:[%s3912 + $0xa8] sm:$0xff]
        %v3935 = vld [vmem:[%s3912 + $0xb0] sm:$0xff]
        %v3936 = vld [vmem:[%s3912 + $0xb8] sm:$0xff]
        %v3937 = vld [vmem:[%s3912 + $0xc0] sm:$0xff]
        %v3938 = vld [vmem:[%s3912 + $0xc8] sm:$0xff]
        %v3939 = vld [vmem:[%s3912 + $0xd0] sm:$0xff]
        %v3940 = vld [vmem:[%s3912 + $0xd8] sm:$0xff]
        %v3941 = vld [vmem:[%s3912 + $0xe0] sm:$0xff]
        %v3942 = vld [vmem:[%s3912 + $0xe8] sm:$0xff]
        %v3943 = vld [vmem:[%s3912 + $0xf0] sm:$0xff]
        %v3944 = vld [vmem:[%s3912 + $0xf8] sm:$0xff]
        %v3945 = vrot.slane %v2762, 7
        %3947 = vmatpush.msra.mxu0 %v3943
        %3948 = vmatpush.msra.mxu0 %v3941
        %3949 = vmatpush.msra.mxu0 %v3939
        %3950 = vmatpush.msra.mxu0 %v3937
        %3951 = vmatpush.msra.mxu0 %v3935
        %3952 = vmatpush.msra.mxu0 %v3933
        %3953 = vmatpush.msra.mxu0 %v3931
        %3954 = vmatpush.msra.mxu0 %v3929
        %3955 = vmatpush.msra.mxu0 %v3927
        %3956 = vmatpush.msra.mxu0 %v3925
        %3957 = vmatpush.msra.mxu0 %v3923
        %3958 = vmatpush.msra.mxu0 %v3921
        %3959 = vmatpush.msra.mxu0 %v3919
        %3960 = vmatpush.msra.mxu0 %v3917
        %3961 = vmatpush.msra.mxu0 %v3915
        %3962 = vmatpush.msra.mxu0 %v3913
        %3963 = vmatmul.f32.gmra.mxu0 %v3945
        %v3964 = vpop.f32.mrf.mxu0
        %v3965 = vadd.f32 0.0, %v3964
        %3966 = vdwg.mxu0
        %3967 = vmatpush.msra.mxu0 %v3944
        %3968 = vmatpush.msra.mxu0 %v3942
        %3969 = vmatpush.msra.mxu0 %v3940
        %3970 = vmatpush.msra.mxu0 %v3938
        %3971 = vmatpush.msra.mxu0 %v3936
        %3972 = vmatpush.msra.mxu0 %v3934
        %3973 = vmatpush.msra.mxu0 %v3932
        %3974 = vmatpush.msra.mxu0 %v3930
        %3975 = vmatpush.msra.mxu0 %v3928
        %3976 = vmatpush.msra.mxu0 %v3926
        %3977 = vmatpush.msra.mxu0 %v3924
        %3978 = vmatpush.msra.mxu0 %v3922
        %3979 = vmatpush.msra.mxu0 %v3920
        %3980 = vmatpush.msra.mxu0 %v3918
        %3981 = vmatpush.msra.mxu0 %v3916
        %3982 = vmatpush.msra.mxu0 %v3914
        %3983 = vmatmul.f32.gmra.mxu0 %v3945
        %v3984 = vpop.f32.mrf.mxu0
        %v3985 = vadd.f32 0.0, %v3984
        %3986 = vdwg.mxu0
        %v3987 = vadd.f32 %v3910, %v3965
        %v3988 = vadd.f32 %v3911, %v3985
        %v3989 = vld [vmem:[%s20] sm:$0x3]
        %v3991 = vperm.slane %v3989, 0
        %v3992 = vperm.slane %v3989, 1
        %v3995 = vadd.f32 %v3987, %v3991
        %v3996 = vadd.f32 %v3988, %v3992
        %s3997 = sld [smem:[#allocation3 + $0x3]]
        %v3998 = vadd.f32 %v3995, 0.0
        %v3999 = vadd.f32 %v3996, 0.0
        %v4000 = vld [vmem:[%s23] sm:$0xff]
        %v4001 = vld [vmem:[%s23 + $0x8] sm:$0xff]
        %v4002 = vld [vmem:[%s23 + $0x10] sm:$0xff]
        %v4003 = vld [vmem:[%s23 + $0x18] sm:$0xff]
        %v4004 = vld [vmem:[%s23 + $0x20] sm:$0xff]
        %v4005 = vld [vmem:[%s23 + $0x28] sm:$0xff]
        %v4006 = vld [vmem:[%s23 + $0x30] sm:$0xff]
        %v4007 = vld [vmem:[%s23 + $0x38] sm:$0xff]
        %v4008 = vld [vmem:[%s23 + $0x40] sm:$0xff]
        %v4009 = vld [vmem:[%s23 + $0x48] sm:$0xff]
        %v4010 = vld [vmem:[%s23 + $0x50] sm:$0xff]
        %v4011 = vld [vmem:[%s23 + $0x58] sm:$0xff]
        %v4012 = vld [vmem:[%s23 + $0x60] sm:$0xff]
        %v4013 = vld [vmem:[%s23 + $0x68] sm:$0xff]
        %v4014 = vld [vmem:[%s23 + $0x70] sm:$0xff]
        %v4015 = vld [vmem:[%s23 + $0x78] sm:$0xff]
        %v4016 = vld [vmem:[%s23 + $0x80] sm:$0xff]
        %v4017 = vld [vmem:[%s23 + $0x88] sm:$0xff]
        %v4018 = vld [vmem:[%s23 + $0x90] sm:$0xff]
        %v4019 = vld [vmem:[%s23 + $0x98] sm:$0xff]
        %v4020 = vld [vmem:[%s23 + $0xa0] sm:$0xff]
        %v4021 = vld [vmem:[%s23 + $0xa8] sm:$0xff]
        %v4022 = vld [vmem:[%s23 + $0xb0] sm:$0xff]
        %v4023 = vld [vmem:[%s23 + $0xb8] sm:$0xff]
        %v4024 = vld [vmem:[%s23 + $0xc0] sm:$0xff]
        %v4025 = vld [vmem:[%s23 + $0xc8] sm:$0xff]
        %v4026 = vld [vmem:[%s23 + $0xd0] sm:$0xff]
        %v4027 = vld [vmem:[%s23 + $0xd8] sm:$0xff]
        %v4028 = vld [vmem:[%s23 + $0xe0] sm:$0xff]
        %v4029 = vld [vmem:[%s23 + $0xe8] sm:$0xff]
        %v4030 = vld [vmem:[%s23 + $0xf0] sm:$0xff]
        %v4031 = vld [vmem:[%s23 + $0xf8] sm:$0xff]
        %v4032 = vld [vmem:[%s23 + $0x100] sm:$0xff]
        %v4033 = vld [vmem:[%s23 + $0x108] sm:$0xff]
        %v4034 = vld [vmem:[%s23 + $0x110] sm:$0xff]
        %v4035 = vld [vmem:[%s23 + $0x118] sm:$0xff]
        %v4036 = vld [vmem:[%s23 + $0x120] sm:$0xff]
        %v4037 = vld [vmem:[%s23 + $0x128] sm:$0xff]
        %v4038 = vld [vmem:[%s23 + $0x130] sm:$0xff]
        %v4039 = vld [vmem:[%s23 + $0x138] sm:$0xff]
        %v4040 = vld [vmem:[%s23 + $0x140] sm:$0xff]
        %v4041 = vld [vmem:[%s23 + $0x148] sm:$0xff]
        %v4042 = vld [vmem:[%s23 + $0x150] sm:$0xff]
        %v4043 = vld [vmem:[%s23 + $0x158] sm:$0xff]
        %v4044 = vld [vmem:[%s23 + $0x160] sm:$0xff]
        %v4045 = vld [vmem:[%s23 + $0x168] sm:$0xff]
        %v4046 = vld [vmem:[%s23 + $0x170] sm:$0xff]
        %v4047 = vld [vmem:[%s23 + $0x178] sm:$0xff]
        %v4048 = vld [vmem:[%s23 + $0x180] sm:$0xff]
        %v4049 = vld [vmem:[%s23 + $0x188] sm:$0xff]
        %v4050 = vld [vmem:[%s23 + $0x190] sm:$0xff]
        %v4051 = vld [vmem:[%s23 + $0x198] sm:$0xff]
        %v4052 = vld [vmem:[%s23 + $0x1a0] sm:$0xff]
        %v4053 = vld [vmem:[%s23 + $0x1a8] sm:$0xff]
        %v4054 = vld [vmem:[%s23 + $0x1b0] sm:$0xff]
        %v4055 = vld [vmem:[%s23 + $0x1b8] sm:$0xff]
        %v4056 = vld [vmem:[%s23 + $0x1c0] sm:$0xff]
        %v4057 = vld [vmem:[%s23 + $0x1c8] sm:$0xff]
        %v4058 = vld [vmem:[%s23 + $0x1d0] sm:$0xff]
        %v4059 = vld [vmem:[%s23 + $0x1d8] sm:$0xff]
        %v4060 = vld [vmem:[%s23 + $0x1e0] sm:$0xff]
        %v4061 = vld [vmem:[%s23 + $0x1e8] sm:$0xff]
        %v4062 = vld [vmem:[%s23 + $0x1f0] sm:$0xff]
        %v4063 = vld [vmem:[%s23 + $0x1f8] sm:$0xff]
        %4064 = vmatpush.msra.mxu0 %v4030
        %4065 = vmatpush.msra.mxu0 %v4028
        %4066 = vmatpush.msra.mxu0 %v4026
        %4067 = vmatpush.msra.mxu0 %v4024
        %4068 = vmatpush.msra.mxu0 %v4022
        %4069 = vmatpush.msra.mxu0 %v4020
        %4070 = vmatpush.msra.mxu0 %v4018
        %4071 = vmatpush.msra.mxu0 %v4016
        %4072 = vmatpush.msra.mxu0 %v4014
        %4073 = vmatpush.msra.mxu0 %v4012
        %4074 = vmatpush.msra.mxu0 %v4010
        %4075 = vmatpush.msra.mxu0 %v4008
        %4076 = vmatpush.msra.mxu0 %v4006
        %4077 = vmatpush.msra.mxu0 %v4004
        %4078 = vmatpush.msra.mxu0 %v4002
        %4079 = vmatpush.msra.mxu0 %v4000
        %4080 = vmatmul.f32.gmra.mxu0 %v3998
        %v4081 = vpop.f32.mrf.mxu0
        %v4082 = vadd.f32 0.0, %v4081
        %4083 = vdwg.mxu0
        %4084 = vmatpush.msra.mxu0 %v4062
        %4085 = vmatpush.msra.mxu0 %v4060
        %4086 = vmatpush.msra.mxu0 %v4058
        %4087 = vmatpush.msra.mxu0 %v4056
        %4088 = vmatpush.msra.mxu0 %v4054
        %4089 = vmatpush.msra.mxu0 %v4052
        %4090 = vmatpush.msra.mxu0 %v4050
        %4091 = vmatpush.msra.mxu0 %v4048
        %4092 = vmatpush.msra.mxu0 %v4046
        %4093 = vmatpush.msra.mxu0 %v4044
        %4094 = vmatpush.msra.mxu0 %v4042
        %4095 = vmatpush.msra.mxu0 %v4040
        %4096 = vmatpush.msra.mxu0 %v4038
        %4097 = vmatpush.msra.mxu0 %v4036
        %4098 = vmatpush.msra.mxu0 %v4034
        %4099 = vmatpush.msra.mxu0 %v4032
        %4100 = vmatmul.f32.gmra.mxu0 %v3999
        %v4101 = vpop.f32.mrf.mxu0
        %v4102 = vadd.f32 %v4082, %v4101
        %4103 = vdwg.mxu0
        %4104 = vmatpush.msra.mxu0 %v4031
        %4105 = vmatpush.msra.mxu0 %v4029
        %4106 = vmatpush.msra.mxu0 %v4027
        %4107 = vmatpush.msra.mxu0 %v4025
        %4108 = vmatpush.msra.mxu0 %v4023
        %4109 = vmatpush.msra.mxu0 %v4021
        %4110 = vmatpush.msra.mxu0 %v4019
        %4111 = vmatpush.msra.mxu0 %v4017
        %4112 = vmatpush.msra.mxu0 %v4015
        %4113 = vmatpush.msra.mxu0 %v4013
        %4114 = vmatpush.msra.mxu0 %v4011
        %4115 = vmatpush.msra.mxu0 %v4009
        %4116 = vmatpush.msra.mxu0 %v4007
        %4117 = vmatpush.msra.mxu0 %v4005
        %4118 = vmatpush.msra.mxu0 %v4003
        %4119 = vmatpush.msra.mxu0 %v4001
        %4120 = vmatmul.f32.gmra.mxu0 %v3998
        %v4121 = vpop.f32.mrf.mxu0
        %v4122 = vadd.f32 0.0, %v4121
        %4123 = vdwg.mxu0
        %4124 = vmatpush.msra.mxu0 %v4063
        %4125 = vmatpush.msra.mxu0 %v4061
        %4126 = vmatpush.msra.mxu0 %v4059
        %4127 = vmatpush.msra.mxu0 %v4057
        %4128 = vmatpush.msra.mxu0 %v4055
        %4129 = vmatpush.msra.mxu0 %v4053
        %4130 = vmatpush.msra.mxu0 %v4051
        %4131 = vmatpush.msra.mxu0 %v4049
        %4132 = vmatpush.msra.mxu0 %v4047
        %4133 = vmatpush.msra.mxu0 %v4045
        %4134 = vmatpush.msra.mxu0 %v4043
        %4135 = vmatpush.msra.mxu0 %v4041
        %4136 = vmatpush.msra.mxu0 %v4039
        %4137 = vmatpush.msra.mxu0 %v4037
        %4138 = vmatpush.msra.mxu0 %v4035
        %4139 = vmatpush.msra.mxu0 %v4033
        %4140 = vmatmul.f32.gmra.mxu0 %v3999
        %v4141 = vpop.f32.mrf.mxu0
        %v4142 = vadd.f32 %v4122, %v4141
        %4143 = vdwg.mxu0
        %v4144 = vsub.f32 %v3995, %v4102
        %v4145 = vsub.f32 %v3996, %v4142
        %v4146 = vmul.f32 %v4144, %v4144
        %v4147 = vmul.f32 %v4145, %v4145
        %v4148 = vadd.f32 %v4146, 0.0
        %v4149 = vadd.f32 %v4147, 0.0
        %4150 = vmatpush.msra.mxu0 %v4030
        %4151 = vmatpush.msra.mxu0 %v4028
        %4152 = vmatpush.msra.mxu0 %v4026
        %4153 = vmatpush.msra.mxu0 %v4024
        %4154 = vmatpush.msra.mxu0 %v4022
        %4155 = vmatpush.msra.mxu0 %v4020
        %4156 = vmatpush.msra.mxu0 %v4018
        %4157 = vmatpush.msra.mxu0 %v4016
        %4158 = vmatpush.msra.mxu0 %v4014
        %4159 = vmatpush.msra.mxu0 %v4012
        %4160 = vmatpush.msra.mxu0 %v4010
        %4161 = vmatpush.msra.mxu0 %v4008
        %4162 = vmatpush.msra.mxu0 %v4006
        %4163 = vmatpush.msra.mxu0 %v4004
        %4164 = vmatpush.msra.mxu0 %v4002
        %4165 = vmatpush.msra.mxu0 %v4000
        %4166 = vmatmul.f32.gmra.mxu0 %v4148
        %v4167 = vpop.f32.mrf.mxu0
        %v4168 = vadd.f32 1e-05, %v4167
        %4169 = vdwg.mxu0
        %4170 = vmatpush.msra.mxu0 %v4062
        %4171 = vmatpush.msra.mxu0 %v4060
        %4172 = vmatpush.msra.mxu0 %v4058
        %4173 = vmatpush.msra.mxu0 %v4056
        %4174 = vmatpush.msra.mxu0 %v4054
        %4175 = vmatpush.msra.mxu0 %v4052
        %4176 = vmatpush.msra.mxu0 %v4050
        %4177 = vmatpush.msra.mxu0 %v4048
        %4178 = vmatpush.msra.mxu0 %v4046
        %4179 = vmatpush.msra.mxu0 %v4044
        %4180 = vmatpush.msra.mxu0 %v4042
        %4181 = vmatpush.msra.mxu0 %v4040
        %4182 = vmatpush.msra.mxu0 %v4038
        %4183 = vmatpush.msra.mxu0 %v4036
        %4184 = vmatpush.msra.mxu0 %v4034
        %4185 = vmatpush.msra.mxu0 %v4032
        %4186 = vmatmul.f32.gmra.mxu0 %v4149
        %v4187 = vpop.f32.mrf.mxu0
        %v4188 = vadd.f32 %v4168, %v4187
        %4189 = vdwg.mxu0
        %4190 = vmatpush.msra.mxu0 %v4031
        %4191 = vmatpush.msra.mxu0 %v4029
        %4192 = vmatpush.msra.mxu0 %v4027
        %4193 = vmatpush.msra.mxu0 %v4025
        %4194 = vmatpush.msra.mxu0 %v4023
        %4195 = vmatpush.msra.mxu0 %v4021
        %4196 = vmatpush.msra.mxu0 %v4019
        %4197 = vmatpush.msra.mxu0 %v4017
        %4198 = vmatpush.msra.mxu0 %v4015
        %4199 = vmatpush.msra.mxu0 %v4013
        %4200 = vmatpush.msra.mxu0 %v4011
        %4201 = vmatpush.msra.mxu0 %v4009
        %4202 = vmatpush.msra.mxu0 %v4007
        %4203 = vmatpush.msra.mxu0 %v4005
        %4204 = vmatpush.msra.mxu0 %v4003
        %4205 = vmatpush.msra.mxu0 %v4001
        %4206 = vmatmul.f32.gmra.mxu0 %v4148
        %v4207 = vpop.f32.mrf.mxu0
        %v4208 = vadd.f32 1e-05, %v4207
        %4209 = vdwg.mxu0
        %4210 = vmatpush.msra.mxu0 %v4063
        %4211 = vmatpush.msra.mxu0 %v4061
        %4212 = vmatpush.msra.mxu0 %v4059
        %4213 = vmatpush.msra.mxu0 %v4057
        %4214 = vmatpush.msra.mxu0 %v4055
        %4215 = vmatpush.msra.mxu0 %v4053
        %4216 = vmatpush.msra.mxu0 %v4051
        %4217 = vmatpush.msra.mxu0 %v4049
        %4218 = vmatpush.msra.mxu0 %v4047
        %4219 = vmatpush.msra.mxu0 %v4045
        %4220 = vmatpush.msra.mxu0 %v4043
        %4221 = vmatpush.msra.mxu0 %v4041
        %4222 = vmatpush.msra.mxu0 %v4039
        %4223 = vmatpush.msra.mxu0 %v4037
        %4224 = vmatpush.msra.mxu0 %v4035
        %4225 = vmatpush.msra.mxu0 %v4033
        %4226 = vmatmul.f32.gmra.mxu0 %v4149
        %v4227 = vpop.f32.mrf.mxu0
        %v4228 = vadd.f32 %v4208, %v4227
        %4229 = vdwg.mxu0
        %v4230 = vrsqrt.pop %v4188
        %v4231 = vmul.f32 %v4230, %v4188
        %v4232 = vmul.f32 %v4231, %v4230
        %v4233 = vmul.f32 0.5, %v4232
        %v4234 = vsub.f32 1.5, %v4233
        %v4235 = vmul.f32 %v4230, %v4234
        %vm4236 = vweird.f32 %v4188
        %vm4237 = vweird.f32 %v4230
        %vm4238 = vmor %vm4236, %vm4237
        %v4239 = vsel %vm4238, %v4230, %v4235
        %v4240 = vrsqrt.pop %v4228
        %v4241 = vmul.f32 %v4240, %v4228
        %v4242 = vmul.f32 %v4241, %v4240
        %v4243 = vmul.f32 0.5, %v4242
        %v4244 = vsub.f32 1.5, %v4243
        %v4245 = vmul.f32 %v4240, %v4244
        %vm4246 = vweird.f32 %v4228
        %vm4247 = vweird.f32 %v4240
        %vm4248 = vmor %vm4246, %vm4247
        %v4249 = vsel %vm4248, %v4240, %v4245
        %v4250 = vmul.f32 %v4144, %v4239
        %v4251 = vmul.f32 %v4145, %v4249
        %v4252 = vld [vmem:[%s21] sm:$0x3]
        %v4254 = vperm.slane %v4252, 0
        %v4255 = vperm.slane %v4252, 1
        %v4258 = vmul.f32 %v4250, %v4254
        %v4259 = vmul.f32 %v4251, %v4255
        %v4260 = vld [vmem:[%s22] sm:$0x3]
        %v4262 = vperm.slane %v4260, 0
        %v4263 = vperm.slane %v4260, 1
        %v4266 = vadd.f32 %v4258, %v4262
        %v4267 = vadd.f32 %v4259, %v4263
        %vm4268 = vcmp.ge.f32.partialorder %v4266, 0.0
        %vm4269 = vcmp.ge.f32.partialorder %v4267, 0.0
        %v4270 = vstv %s3997
        %v4271 = vmul.f32 %v4270, %v4266
        %v4272 = vmul.f32 %v4270, %v4267
        %v4273 = vsel %vm4268, %v4266, %v4271
        %v4274 = vsel %vm4269, %v4267, %v4272
        %v4275 = vld [vmem:[%s25] sm:$0xff]
        %v4276 = vld [vmem:[%s25 + $0x8] sm:$0xff]
        %v4277 = vld [vmem:[%s25 + $0x10] sm:$0xff]
        %v4278 = vld [vmem:[%s25 + $0x18] sm:$0xff]
        %v4279 = vld [vmem:[%s25 + $0x20] sm:$0xff]
        %v4280 = vld [vmem:[%s25 + $0x28] sm:$0xff]
        %v4281 = vld [vmem:[%s25 + $0x30] sm:$0xff]
        %v4282 = vld [vmem:[%s25 + $0x38] sm:$0xff]
        %v4283 = vld [vmem:[%s25 + $0x40] sm:$0xff]
        %v4284 = vld [vmem:[%s25 + $0x48] sm:$0xff]
        %v4285 = vld [vmem:[%s25 + $0x50] sm:$0xff]
        %v4286 = vld [vmem:[%s25 + $0x58] sm:$0xff]
        %v4287 = vld [vmem:[%s25 + $0x60] sm:$0xff]
        %v4288 = vld [vmem:[%s25 + $0x68] sm:$0xff]
        %v4289 = vld [vmem:[%s25 + $0x70] sm:$0xff]
        %v4290 = vld [vmem:[%s25 + $0x78] sm:$0xff]
        %v4291 = vld [vmem:[%s25 + $0x80] sm:$0xff]
        %v4292 = vld [vmem:[%s25 + $0x88] sm:$0xff]
        %v4293 = vld [vmem:[%s25 + $0x90] sm:$0xff]
        %v4294 = vld [vmem:[%s25 + $0x98] sm:$0xff]
        %v4295 = vld [vmem:[%s25 + $0xa0] sm:$0xff]
        %v4296 = vld [vmem:[%s25 + $0xa8] sm:$0xff]
        %v4297 = vld [vmem:[%s25 + $0xb0] sm:$0xff]
        %v4298 = vld [vmem:[%s25 + $0xb8] sm:$0xff]
        %v4299 = vld [vmem:[%s25 + $0xc0] sm:$0xff]
        %v4300 = vld [vmem:[%s25 + $0xc8] sm:$0xff]
        %v4301 = vld [vmem:[%s25 + $0xd0] sm:$0xff]
        %v4302 = vld [vmem:[%s25 + $0xd8] sm:$0xff]
        %v4303 = vld [vmem:[%s25 + $0xe0] sm:$0xff]
        %v4304 = vld [vmem:[%s25 + $0xe8] sm:$0xff]
        %v4305 = vld [vmem:[%s25 + $0xf0] sm:$0xff]
        %v4306 = vld [vmem:[%s25 + $0xf8] sm:$0xff]
        %v4307 = vld [vmem:[#allocation2] sm:$0x1]
        %4308 = vmatpush.msra.mxu0 %v4290
        %4309 = vmatpush.msra.mxu0 %v4289
        %4310 = vmatpush.msra.mxu0 %v4288
        %4311 = vmatpush.msra.mxu0 %v4287
        %4312 = vmatpush.msra.mxu0 %v4286
        %4313 = vmatpush.msra.mxu0 %v4285
        %4314 = vmatpush.msra.mxu0 %v4284
        %4315 = vmatpush.msra.mxu0 %v4283
        %4316 = vmatpush.msra.mxu0 %v4282
        %4317 = vmatpush.msra.mxu0 %v4281
        %4318 = vmatpush.msra.mxu0 %v4280
        %4319 = vmatpush.msra.mxu0 %v4279
        %4320 = vmatpush.msra.mxu0 %v4278
        %4321 = vmatpush.msra.mxu0 %v4277
        %4322 = vmatpush.msra.mxu0 %v4276
        %4323 = vmatpush.msra.mxu0 %v4275
        %4324 = vmatmul.f32.gmra.mxu0 %v4273
        %v4325 = vpop.f32.mrf.mxu0
        %v4326 = vadd.f32 %v4307, %v4325
        %4327 = vdwg.mxu0
        %4328 = vmatpush.msra.mxu0 %v4306
        %4329 = vmatpush.msra.mxu0 %v4305
        %4330 = vmatpush.msra.mxu0 %v4304
        %4331 = vmatpush.msra.mxu0 %v4303
        %4332 = vmatpush.msra.mxu0 %v4302
        %4333 = vmatpush.msra.mxu0 %v4301
        %4334 = vmatpush.msra.mxu0 %v4300
        %4335 = vmatpush.msra.mxu0 %v4299
        %4336 = vmatpush.msra.mxu0 %v4298
        %4337 = vmatpush.msra.mxu0 %v4297
        %4338 = vmatpush.msra.mxu0 %v4296
        %4339 = vmatpush.msra.mxu0 %v4295
        %4340 = vmatpush.msra.mxu0 %v4294
        %4341 = vmatpush.msra.mxu0 %v4293
        %4342 = vmatpush.msra.mxu0 %v4292
        %4343 = vmatpush.msra.mxu0 %v4291
        %4344 = vmatmul.f32.gmra.mxu0 %v4274
        %v4345 = vpop.f32.mrf.mxu0
        %v4346 = vadd.f32 %v4326, %v4345
        %4347 = vdwg.mxu0
        %vm4348 = vcmask 0
        %4349 = vst.msk [vmem:[%s830] sm:$0x1] %vm4348, %v4346
        %p4350 = scmp.lt.s32.totalorder %s41, 1
        %s4351 = scalar_select %p4350, %s41, 1
        %s4352 = scalar_lea.vmem %s27, %s4351
        // Predicated region
        $region133: #{patchgan_forward.1} parent=127 // pred_check
          %p4353 = pneg %p631
        $region134: #{patchgan_forward.1} parent=127 // pred_check_branch
          %4355 = sbr.rel (%p4353) target = $region136
        $region135: #{patchgan_forward.1} parent=127 // pred_region
          _
        $region136: #{patchgan_forward.1} parent=127 // pred_fallthru
          _
      $region128: #{patchgan_forward.1} parent=5 // pred_fallthru
        _
      %p4356 = scmp.le.s32.totalorder 2, %s36
      // Predicated region
      $region137: #{patchgan_forward.1} parent=5 // pred_check
        %p4357 = pneg %p4356
      $region138: #{patchgan_forward.1} parent=5 // pred_check_branch
        %4359 = sbr.rel (%p4357) target = $region140
      $region139: #{patchgan_forward.1} parent=5 // pred_region
        %s4360 = ssub.s32 %s36, 2
        // Predicated region
        $region141: #{patchgan_forward.1} parent=139 // pred_check
          %p4361 = pneg %p637
        $region142: #{patchgan_forward.1} parent=139 // pred_check_branch
          %4363 = sbr.rel (%p4361) target = $region144
        $region143: #{patchgan_forward.1} parent=139 // pred_region
          %p4364 = scmp.lt.s32.totalorder %s42, 1
          %s4365 = scalar_select %p4364, %s42, 1
          %s4366 = scalar_lea.vmem %s27, %s4365
        $region144: #{patchgan_forward.1} parent=139 // pred_fallthru
          _
      $region140: #{patchgan_forward.1} parent=5 // pred_fallthru
        _
    $region6: #{patchgan_forward.1} parent=1 // loop_footer
      %s40 = sadd.s32 1, %s36
    $region7: #{patchgan_forward.1} parent=1 // loop_footer_branch
      %35 = sbr.rel target = $region3
    $region8: #{patchgan_forward.1} parent=1 // loop_exit
      _
    %4367 = vsyncpa [#allocation4], 1
    %s4368 = scalar_lea.sflag [#allocation4], 1
    %4369 = vsyncpa %s4368, 1

</llo_original>
